<compile_context>
chip_gen: v7x
topology: tpu7x:2x2x1
jax: 0.10.0
libtpu: 0.0.40
codegen_flags: <defaults>
</compile_context>

<pallas_src>
import functools
import math

import jax
import jax.numpy as jnp
from jax.experimental import pallas as pl
from jax.experimental.pallas import tpu as pltpu


NEG_SLOPE = 0.01  # nn.LeakyReLU() default negative_slope


def _leaky_relu(x):
    return jnp.where(x > 0, x, NEG_SLOPE * x)


def _round_up(x, m):
    return ((x + m - 1) // m) * m


def _pick_k_tiling(k_in, tk_cap):
    """Choose (k_pad, tk) with tk | k_pad and tk % 128 == 0.

    Whenever k_in is already a multiple of 128 (e.g. prod([3,96,96]) = 27648) no
    padding copy of W1/x is needed (k_pad == k_in) and tk is an exact divisor.
    """
    k_pad = _round_up(k_in, 128)
    if k_pad <= tk_cap:
        return k_pad, k_pad
    d = k_pad // 128
    best = 1
    for m in range(1, d + 1):
        if d % m == 0 and 128 * m <= tk_cap:
            best = m
    tk = 128 * best
    if tk < 1024:
        # Pathological K with no decent divisor: fall back to modest zero padding.
        tk = min(tk_cap, 2048)
        k_pad = _round_up(k_pad, tk)
    return k_pad, tk


def _copy_probe_kernel(x_ref, o_ref):
    o_ref[...] = x_ref[...]


@functools.lru_cache(maxsize=1)
def _single_buffering_supported():
    """Probe once whether pipeline_mode=pl.Buffered(1) compiles on this jax/Mosaic.

    Single-buffering the grid-invariant operands reclaims VMEM for larger tiles;
    if unsupported we silently fall back to default (double-buffered) specs.
    """
    try:
        fn = pl.pallas_call(
            _copy_probe_kernel,
            out_shape=jax.ShapeDtypeStruct((8, 128), jnp.float32),
            grid=(1,),
            in_specs=[pl.BlockSpec((8, 128), lambda i: (0, 0),
                                   pipeline_mode=pl.Buffered(1))],
            out_specs=pl.BlockSpec((8, 128), lambda i: (0, 0)),
        )
        jax.jit(fn).lower(jnp.zeros((8, 128), jnp.float32)).compile()
        return True
    except Exception:
        return False


def discriminator_kernel(x_ref,           # (tb, tk)        f32  (streamed; cast in-kernel)
                         w1_ref,          # (tk, H2)        bf16 (streamed)
                         b1_ref,          # (1, H2)         f32  (resident)
                         w2_ref, b2_ref,  # (H2, H1) bf16 / (1, H1) f32
                         w3_ref, b3_ref,  # (H1, H0) bf16 / (1, H0) f32
                         w4_ref, b4_ref,  # (H0, OUT_PAD) bf16 / (1, OUT_PAD) f32
                         out_ref,         # (tb, OUT_PAD)   f32
                         acc_ref):        # (tb, H2)        f32 scratch
    k = pl.program_id(1)

    @pl.when(k == 0)
    def _():
        acc_ref[...] = jnp.zeros_like(acc_ref)

    # Layer-1 partial product for this K tile: cast f32 activations to bf16 in-kernel
    # (fused, no extra HBM pass), bf16 MXU matmul, f32 accumulation.
    x_bf16 = x_ref[...].astype(jnp.bfloat16)
    acc_ref[...] += jnp.dot(x_bf16, w1_ref[...], preferred_element_type=jnp.float32)

    @pl.when(k == pl.num_programs(1) - 1)
    def _():
        # Layer 1 epilogue: bias + LeakyReLU (Dropout = identity in eval mode).
        h = _leaky_relu(acc_ref[...] + b1_ref[...])
        # Layer 2
        h = _leaky_relu(jnp.dot(h.astype(jnp.bfloat16), w2_ref[...],
                                preferred_element_type=jnp.float32) + b2_ref[...])
        # Layer 3
        h = _leaky_relu(jnp.dot(h.astype(jnp.bfloat16), w3_ref[...],
                                preferred_element_type=jnp.float32) + b3_ref[...])
        # Layer 4: Linear -> Sigmoid (lane-padded to OUT_PAD columns)
        logits = jnp.dot(h.astype(jnp.bfloat16), w4_ref[...],
                         preferred_element_type=jnp.float32) + b4_ref[...]
        out_ref[...] = jax.nn.sigmoid(logits).astype(out_ref.dtype)


@functools.partial(jax.jit,
                   static_argnames=("tb", "tk_cap", "single_buffer_resident"))
def _discriminator_forward_impl(img, params, *, tb, tk_cap, single_buffer_resident):
    b = img.shape[0]
    # torch .view(B, -1) on contiguous NCHW == row-major reshape (free in XLA).
    # The f32 -> bf16 cast of x happens inside the kernel.
    x = img.reshape(b, -1)
    k_in = x.shape[1]

    (w1, b1), (w2, b2), (w3, b3), (w4, b4) = params
    h2, h1, h0 = w1.shape[1], w2.shape[1], w3.shape[1]
    out_dim = w4.shape[1]

    # --- lane-dense final layer: pad N from out_dim -> multiple of 128 (tiny copy) ---
    out_pad = _round_up(out_dim, 128)
    w4p = jnp.zeros((h0, out_pad), w4.dtype).at[:, :out_dim].set(w4)
    b4p = jnp.zeros((1, out_pad), b4.dtype).at[:, :out_dim].set(b4)

    # --- K tiling: exact divisor => no HBM-side padding copy of W1/x in production ---
    k_pad, tk = _pick_k_tiling(k_in, tk_cap)

    # --- batch tiling: large tile amortizes W1 streaming (W1 is re-fetched from HBM
    #     once per batch tile; layer-1 arithmetic intensity ~ tb flops / W1 byte) -----
    if tb is None:
        tb = min(512, _round_up(b, 16))
    b_pad = _round_up(b, tb)
    # NOTE: for B <= tb we keep a single batch tile; megacore-splitting the batch would
    # double W1 HBM traffic (the binding term).  Large B gets >= 2 tiles automatically.

    # Pad only when actually required (production shapes hit the no-copy path).
    w1_in = w1 if k_pad == k_in else (
        jnp.zeros((k_pad, h2), w1.dtype).at[:k_in, :].set(w1))
    x_in = x if (b_pad, k_pad) == (b, k_in) else (
        jnp.zeros((b_pad, k_pad), x.dtype).at[:b, :k_in].set(x))

    grid = (b_pad // tb, k_pad // tk)
    n_btiles = grid[0]

    # --- cost estimate --------------------------------------------------------------
    flops = 2 * b_pad * (k_pad * h2 + h2 * h1 + h1 * h0 + h0 * out_pad)
    bytes_accessed = (b_pad * k_pad * 4                  # x, read once (f32)
                      + n_btiles * k_pad * h2 * 2        # W1, streamed per batch tile
                      + (w2.size + w3.size + w4p.size) * 2
                      + (b1.size + b2.size + b3.size + b4p.size) * 4
                      + b_pad * out_pad * 4)
    cost = pl.CostEstimate(flops=flops, transcendentals=b_pad * out_pad,
                           bytes_accessed=bytes_accessed)

    # --- scoped-VMEM budget derived per generation (≈48 MiB v7x, ≈96 MiB v5e/v6e) ----
    resident_mult = 1 if single_buffer_resident else 2
    resident_bytes = resident_mult * ((h2 * h1 + h1 * h0 + h0 * out_pad) * 2
                                      + (h2 + h1 + h0 + out_pad) * 4)
    streamed_bytes = 2 * (tb * tk * 4 + tk * h2 * 2)     # double-buffered x / W1 tiles
    out_bytes = 2 * tb * out_pad * 4
    scratch_bytes = tb * h2 * 4
    need = resident_bytes + streamed_bytes + out_bytes + scratch_bytes
    try:
        phys_vmem = pltpu.get_tpu_info().vmem_capacity_bytes
    except Exception:  # unknown -> assume the smallest per-TC VMEM (v7x: 64 MiB)
        phys_vmem = 64 << 20
    ceiling = int(0.75 * phys_vmem)          # leave headroom for compiler scratch
    vmem_limit = min(max(int(1.3 * need), 16 << 20), ceiling)

    def _resident_spec(shape):
        # Grid-invariant operand: single-buffer when supported to reclaim VMEM.
        if single_buffer_resident:
            return pl.BlockSpec(shape, lambda i, k: (0, 0),
                                pipeline_mode=pl.Buffered(1))
        return pl.BlockSpec(shape, lambda i, k: (0, 0))

    out = pl.pallas_call(
        discriminator_kernel,
        out_shape=jax.ShapeDtypeStruct((b_pad, out_pad), jnp.float32),
        grid=grid,
        in_specs=[
            pl.BlockSpec((tb, tk), lambda i, k: (i, k)),   # x tile (f32, streamed)
            pl.BlockSpec((tk, h2), lambda i, k: (k, 0)),   # W1 tile (bf16, streamed)
            _resident_spec((1, h2)),                       # b1
            _resident_spec((h2, h1)),                      # W2 (resident)
            _resident_spec((1, h1)),                       # b2
            _resident_spec((h1, h0)),                      # W3 (resident)
            _resident_spec((1, h0)),                       # b3
            _resident_spec((h0, out_pad)),                 # W4 padded (resident)
            _resident_spec((1, out_pad)),                  # b4 padded
        ],
        out_specs=pl.BlockSpec((tb, out_pad), lambda i, k: (i, 0)),
        scratch_shapes=[pltpu.VMEM((tb, h2), jnp.float32)],
        compiler_params=pltpu.CompilerParams(
            dimension_semantics=("parallel", "arbitrary"),
            vmem_limit_bytes=vmem_limit),
        cost_estimate=cost,
    )(x_in, w1_in, b1, w2, b2, w3, b3, w4p, b4p)

    return out[:b, :out_dim]


def discriminator_forward(img, params, *, tb=None, tk_cap=2304):
    """img: (B, C, H, W) float32 NCHW (as in PyTorch). Returns (B, output_dim) f32."""
    return _discriminator_forward_impl(
        img, params, tb=tb, tk_cap=tk_cap,
        single_buffer_resident=_single_buffering_supported())


def init_params(key, in_features, hidden_size, output_dim):
    """Deterministic init. Weights stored as (in, out) = PyTorch weight.T, in bf16."""
    dims = [in_features, hidden_size[2], hidden_size[1], hidden_size[0], output_dim]
    params = []
    for i in range(4):
        key, kw, kb = jax.random.split(key, 3)
        fan_in, fan_out = dims[i], dims[i + 1]
        bound = 1.0 / math.sqrt(fan_in)  # PyTorch nn.Linear default uniform init
        w = jax.random.uniform(kw, (fan_in, fan_out), jnp.float32,
                               -bound, bound).astype(jnp.bfloat16)
        b = jax.random.uniform(kb, (1, fan_out), jnp.float32, -bound, bound)
        params.append((w, b))
    return params


def reference_forward(img, params):
    """Pure-JAX reference with the same dtype flow (bf16 storage, f32 accumulate)."""
    x = img.reshape(img.shape[0], -1).astype(jnp.bfloat16)
    (w1, b1), (w2, b2), (w3, b3), (w4, b4) = params
    h = _leaky_relu(jnp.dot(x, w1, preferred_element_type=jnp.float32) + b1)
    h = _leaky_relu(jnp.dot(h.astype(jnp.bfloat16), w2,
                            preferred_element_type=jnp.float32) + b2)
    h = _leaky_relu(jnp.dot(h.astype(jnp.bfloat16), w3,
                            preferred_element_type=jnp.float32) + b3)
    logits = jnp.dot(h.astype(jnp.bfloat16), w4,
                     preferred_element_type=jnp.float32) + b4
    return jax.nn.sigmoid(logits)


if __name__ == "__main__":
    # Small-shape config consistent with the module structure:
    # img_size scaled down from [3, 96, 96] to [3, 16, 16];
    # hidden_size scaled down from [256, 512, 2048] to [256, 512, 1024].
    batch = 2
    img_size = [3, 16, 16]
    hidden_size = [256, 512, 1024]
    output_dim = 2
    in_features = img_size[0] * img_size[1] * img_size[2]

    key = jax.random.PRNGKey(0)
    key, k_img = jax.random.split(key)
    img = jax.random.normal(k_img, (batch, *img_size), jnp.float32)

    params = init_params(key, in_features, hidden_size, output_dim)

    out = discriminator_forward(img, params)
    out = jax.block_until_ready(out)

    ref = reference_forward(img, params)
    assert out.shape == (batch, output_dim), out.shape
    assert bool(jnp.all(jnp.isfinite(out))), out
    assert jnp.allclose(out, ref, atol=2e-3, rtol=2e-3), (out, ref)

    print("KERNEL_OK")
</pallas_src>

<mosaic_0001>
module attributes {stable_mosaic.version = 11 : i64} {
  func.func @discriminator_kernel(%arg0: i32, %arg1: i32, %arg2: memref<16x768xf32, #tpu.memory_space<vmem>>, %arg3: memref<768x1024xbf16, #tpu.memory_space<vmem>>, %arg4: memref<1x1024xf32, #tpu.memory_space<vmem>>, %arg5: memref<1024x512xbf16, #tpu.memory_space<vmem>>, %arg6: memref<1x512xf32, #tpu.memory_space<vmem>>, %arg7: memref<512x256xbf16, #tpu.memory_space<vmem>>, %arg8: memref<1x256xf32, #tpu.memory_space<vmem>>, %arg9: memref<256x128xbf16, #tpu.memory_space<vmem>>, %arg10: memref<1x128xf32, #tpu.memory_space<vmem>>, %arg11: memref<16x128xf32, #tpu.memory_space<vmem>>, %arg12: memref<16x1024xf32, #tpu.memory_space<vmem>>) attributes {dimension_semantics = [#tpu.dimension_semantics<parallel>, #tpu.dimension_semantics<arbitrary>], iteration_bounds = array<i64: 1, 1>, scalar_prefetch = 0 : i64, scratch_operands = 1 : i64, tpu.core_type = #tpu.core_type<tc>, window_params = [{transform_indices = @transform_0, window_bounds = array<i64: 16, 768>}, {transform_indices = @transform_1, window_bounds = array<i64: 768, 1024>}, {pipeline_mode = #tpu.pipeline_mode<synchronous>, transform_indices = @transform_2, window_bounds = array<i64: 1, 1024>}, {pipeline_mode = #tpu.pipeline_mode<synchronous>, transform_indices = @transform_3, window_bounds = array<i64: 1024, 512>}, {pipeline_mode = #tpu.pipeline_mode<synchronous>, transform_indices = @transform_4, window_bounds = array<i64: 1, 512>}, {pipeline_mode = #tpu.pipeline_mode<synchronous>, transform_indices = @transform_5, window_bounds = array<i64: 512, 256>}, {pipeline_mode = #tpu.pipeline_mode<synchronous>, transform_indices = @transform_6, window_bounds = array<i64: 1, 256>}, {pipeline_mode = #tpu.pipeline_mode<synchronous>, transform_indices = @transform_7, window_bounds = array<i64: 256, 128>}, {pipeline_mode = #tpu.pipeline_mode<synchronous>, transform_indices = @transform_8, window_bounds = array<i64: 1, 128>}, {transform_indices = @transform_9, window_bounds = array<i64: 16, 128>}]} {
    %c0_i32 = arith.constant 0 : i32
    %0 = arith.cmpi eq, %arg1, %c0_i32 : i32
    %1 = arith.extui %0 : i1 to i32
    %c0_i32_0 = arith.constant 0 : i32
    %2 = arith.cmpi ne, %1, %c0_i32_0 : i32
    scf.if %2 {
      %cst_10 = arith.constant 0.000000e+00 : f32
      %13 = vector.broadcast %cst_10 : f32 to vector<16x1024xf32>
      %c0_11 = arith.constant 0 : index
      %c0_12 = arith.constant 0 : index
      %14 = vector.load %arg12[%c0_11, %c0_12] : memref<16x1024xf32, #tpu.memory_space<vmem>>, vector<16x1024xf32>
      tpu.vector_store %arg12[%c0_11, %c0_12], %13 {strides = array<i32>} : memref<16x1024xf32, #tpu.memory_space<vmem>>, vector<16x1024xf32>,
    } else {
    }
    %c0 = arith.constant 0 : index
    %c0_1 = arith.constant 0 : index
    %3 = vector.load %arg2[%c0, %c0_1] : memref<16x768xf32, #tpu.memory_space<vmem>>, vector<16x768xf32>
    %4 = arith.truncf %3 : vector<16x768xf32> to vector<16x768xbf16>
    %c0_2 = arith.constant 0 : index
    %c0_3 = arith.constant 0 : index
    %5 = vector.load %arg12[%c0_2, %c0_3] : memref<16x1024xf32, #tpu.memory_space<vmem>>, vector<16x1024xf32>
    %c0_4 = arith.constant 0 : index
    %c0_5 = arith.constant 0 : index
    %6 = vector.load %arg3[%c0_4, %c0_5] : memref<768x1024xbf16, #tpu.memory_space<vmem>>, vector<768x1024xbf16>
    %cst = arith.constant dense<0.000000e+00> : vector<16x1024xf32>
    %7 = tpu.matmul %4, %6, %cst {dimension_numbers = #tpu.dot_dimension_numbers<[1], [0], [0], [1], [0, 0, 1, 1], [], []>} : vector<16x768xbf16>, vector<768x1024xbf16>, vector<16x1024xf32> -> vector<16x1024xf32>
    %8 = arith.addf %5, %7 : vector<16x1024xf32>
    %c0_6 = arith.constant 0 : index
    %c0_7 = arith.constant 0 : index
    %9 = vector.load %arg12[%c0_6, %c0_7] : memref<16x1024xf32, #tpu.memory_space<vmem>>, vector<16x1024xf32>
    tpu.vector_store %arg12[%c0_6, %c0_7], %8 {strides = array<i32>} : memref<16x1024xf32, #tpu.memory_space<vmem>>, vector<16x1024xf32>,
    %c0_i32_8 = arith.constant 0 : i32
    %10 = arith.cmpi eq, %arg1, %c0_i32_8 : i32
    %11 = arith.extui %10 : i1 to i32
    %c0_i32_9 = arith.constant 0 : i32
    %12 = arith.cmpi ne, %11, %c0_i32_9 : i32
    scf.if %12 {
      %c0_10 = arith.constant 0 : index
      %c0_11 = arith.constant 0 : index
      %13 = vector.load %arg12[%c0_10, %c0_11] : memref<16x1024xf32, #tpu.memory_space<vmem>>, vector<16x1024xf32>
      %c0_12 = arith.constant 0 : index
      %c0_13 = arith.constant 0 : index
      %14 = vector.load %arg4[%c0_12, %c0_13] : memref<1x1024xf32, #tpu.memory_space<vmem>>, vector<1x1024xf32>
      %15 = vector.broadcast %14 : vector<1x1024xf32> to vector<16x1024xf32>
      %16 = arith.addf %13, %15 : vector<16x1024xf32>
      %cst_14 = arith.constant 0.000000e+00 : f32
      %17 = vector.broadcast %cst_14 : f32 to vector<16x1024xf32>
      %18 = arith.cmpf ogt, %16, %17 : vector<16x1024xf32>
      %cst_15 = arith.constant 0.00999999977 : f32
      %19 = vector.broadcast %cst_15 : f32 to vector<16x1024xf32>
      %20 = arith.mulf %19, %16 : vector<16x1024xf32>
      %21 = arith.select %18, %16, %20 : vector<16x1024xi1>, vector<16x1024xf32>
      %22 = arith.truncf %21 : vector<16x1024xf32> to vector<16x1024xbf16>
      %c0_16 = arith.constant 0 : index
      %c0_17 = arith.constant 0 : index
      %23 = vector.load %arg5[%c0_16, %c0_17] : memref<1024x512xbf16, #tpu.memory_space<vmem>>, vector<1024x512xbf16>
      %cst_18 = arith.constant dense<0.000000e+00> : vector<16x512xf32>
      %24 = tpu.matmul %22, %23, %cst_18 {dimension_numbers = #tpu.dot_dimension_numbers<[1], [0], [0], [1], [0, 0, 1, 1], [], []>} : vector<16x1024xbf16>, vector<1024x512xbf16>, vector<16x512xf32> -> vector<16x512xf32>
      %c0_19 = arith.constant 0 : index
      %c0_20 = arith.constant 0 : index
      %25 = vector.load %arg6[%c0_19, %c0_20] : memref<1x512xf32, #tpu.memory_space<vmem>>, vector<1x512xf32>
      %26 = vector.broadcast %25 : vector<1x512xf32> to vector<16x512xf32>
      %27 = arith.addf %24, %26 : vector<16x512xf32>
      %cst_21 = arith.constant 0.000000e+00 : f32
      %28 = vector.broadcast %cst_21 : f32 to vector<16x512xf32>
      %29 = arith.cmpf ogt, %27, %28 : vector<16x512xf32>
      %cst_22 = arith.constant 0.00999999977 : f32
      %30 = vector.broadcast %cst_22 : f32 to vector<16x512xf32>
      %31 = arith.mulf %30, %27 : vector<16x512xf32>
      %32 = arith.select %29, %27, %31 : vector<16x512xi1>, vector<16x512xf32>
      %33 = arith.truncf %32 : vector<16x512xf32> to vector<16x512xbf16>
      %c0_23 = arith.constant 0 : index
      %c0_24 = arith.constant 0 : index
      %34 = vector.load %arg7[%c0_23, %c0_24] : memref<512x256xbf16, #tpu.memory_space<vmem>>, vector<512x256xbf16>
      %cst_25 = arith.constant dense<0.000000e+00> : vector<16x256xf32>
      %35 = tpu.matmul %33, %34, %cst_25 {dimension_numbers = #tpu.dot_dimension_numbers<[1], [0], [0], [1], [0, 0, 1, 1], [], []>} : vector<16x512xbf16>, vector<512x256xbf16>, vector<16x256xf32> -> vector<16x256xf32>
      %c0_26 = arith.constant 0 : index
      %c0_27 = arith.constant 0 : index
      %36 = vector.load %arg8[%c0_26, %c0_27] : memref<1x256xf32, #tpu.memory_space<vmem>>, vector<1x256xf32>
      %37 = vector.broadcast %36 : vector<1x256xf32> to vector<16x256xf32>
      %38 = arith.addf %35, %37 : vector<16x256xf32>
      %cst_28 = arith.constant 0.000000e+00 : f32
      %39 = vector.broadcast %cst_28 : f32 to vector<16x256xf32>
      %40 = arith.cmpf ogt, %38, %39 : vector<16x256xf32>
      %cst_29 = arith.constant 0.00999999977 : f32
      %41 = vector.broadcast %cst_29 : f32 to vector<16x256xf32>
      %42 = arith.mulf %41, %38 : vector<16x256xf32>
      %43 = arith.select %40, %38, %42 : vector<16x256xi1>, vector<16x256xf32>
      %44 = arith.truncf %43 : vector<16x256xf32> to vector<16x256xbf16>
      %c0_30 = arith.constant 0 : index
      %c0_31 = arith.constant 0 : index
      %45 = vector.load %arg9[%c0_30, %c0_31] : memref<256x128xbf16, #tpu.memory_space<vmem>>, vector<256x128xbf16>
      %cst_32 = arith.constant dense<0.000000e+00> : vector<16x128xf32>
      %46 = tpu.matmul %44, %45, %cst_32 {dimension_numbers = #tpu.dot_dimension_numbers<[1], [0], [0], [1], [0, 0, 1, 1], [], []>} : vector<16x256xbf16>, vector<256x128xbf16>, vector<16x128xf32> -> vector<16x128xf32>
      %c0_33 = arith.constant 0 : index
      %c0_34 = arith.constant 0 : index
      %47 = vector.load %arg10[%c0_33, %c0_34] : memref<1x128xf32, #tpu.memory_space<vmem>>, vector<1x128xf32>
      %48 = vector.broadcast %47 : vector<1x128xf32> to vector<16x128xf32>
      %49 = arith.addf %46, %48 : vector<16x128xf32>
      %50 = arith.negf %49 : vector<16x128xf32>
      %51 = math.exp %50 : vector<16x128xf32>
      %cst_35 = arith.constant 1.000000e+00 : f32
      %52 = vector.broadcast %cst_35 : f32 to vector<16x128xf32>
      %53 = arith.addf %52, %51 : vector<16x128xf32>
      %54 = arith.divf %52, %53 : vector<16x128xf32>
      %c0_36 = arith.constant 0 : index
      %c0_37 = arith.constant 0 : index
      %55 = vector.load %arg11[%c0_36, %c0_37] : memref<16x128xf32, #tpu.memory_space<vmem>>, vector<16x128xf32>
      tpu.vector_store %arg11[%c0_36, %c0_37], %54 {strides = array<i32>} : memref<16x128xf32, #tpu.memory_space<vmem>>, vector<16x128xf32>,
    } else {
    }
    return
  }
  func.func @transform_0(%arg0: i32, %arg1: i32) -> (i32, i32) {
    %c0_i32 = arith.constant 0 : i32
    return %arg0, %arg1 : i32, i32
  }
  func.func @transform_1(%arg0: i32, %arg1: i32) -> (i32, i32) {
    %c0_i32 = arith.constant 0 : i32
    %c0_i32_0 = arith.constant 0 : i32
    return %arg1, %c0_i32 : i32, i32
  }
  func.func @transform_2(%arg0: i32, %arg1: i32) -> (i32, i32) {
    %c0_i32 = arith.constant 0 : i32
    %c0_i32_0 = arith.constant 0 : i32
    %c0_i32_1 = arith.constant 0 : i32
    return %c0_i32, %c0_i32_0 : i32, i32
  }
  func.func @transform_3(%arg0: i32, %arg1: i32) -> (i32, i32) {
    %c0_i32 = arith.constant 0 : i32
    %c0_i32_0 = arith.constant 0 : i32
    %c0_i32_1 = arith.constant 0 : i32
    return %c0_i32, %c0_i32_0 : i32, i32
  }
  func.func @transform_4(%arg0: i32, %arg1: i32) -> (i32, i32) {
    %c0_i32 = arith.constant 0 : i32
    %c0_i32_0 = arith.constant 0 : i32
    %c0_i32_1 = arith.constant 0 : i32
    return %c0_i32, %c0_i32_0 : i32, i32
  }
  func.func @transform_5(%arg0: i32, %arg1: i32) -> (i32, i32) {
    %c0_i32 = arith.constant 0 : i32
    %c0_i32_0 = arith.constant 0 : i32
    %c0_i32_1 = arith.constant 0 : i32
    return %c0_i32, %c0_i32_0 : i32, i32
  }
  func.func @transform_6(%arg0: i32, %arg1: i32) -> (i32, i32) {
    %c0_i32 = arith.constant 0 : i32
    %c0_i32_0 = arith.constant 0 : i32
    %c0_i32_1 = arith.constant 0 : i32
    return %c0_i32, %c0_i32_0 : i32, i32
  }
  func.func @transform_7(%arg0: i32, %arg1: i32) -> (i32, i32) {
    %c0_i32 = arith.constant 0 : i32
    %c0_i32_0 = arith.constant 0 : i32
    %c0_i32_1 = arith.constant 0 : i32
    return %c0_i32, %c0_i32_0 : i32, i32
  }
  func.func @transform_8(%arg0: i32, %arg1: i32) -> (i32, i32) {
    %c0_i32 = arith.constant 0 : i32
    %c0_i32_0 = arith.constant 0 : i32
    %c0_i32_1 = arith.constant 0 : i32
    return %c0_i32, %c0_i32_0 : i32, i32
  }
  func.func @transform_9(%arg0: i32, %arg1: i32) -> (i32, i32) {
    %c0_i32 = arith.constant 0 : i32
    %c0_i32_0 = arith.constant 0 : i32
    return %arg0, %c0_i32 : i32, i32
  }
}

</mosaic_0001>

<llo_original>
// kernel: _discriminator_forward_impl.1
$region0: #{_discriminator_forward_impl.1}
  #allocation0 [shape = 'u32[]', space=smem, size = 0x4, offset = 0x4, fixed_abs, tag = 'smem constant byte address 0x4 - core index']
  #allocation1 [shape = 'u32[144,128]{1,0:T(1,128)}', space=vmem, size = 0x12000, scoped, tag = 'internal scratch']
  #allocation2 [shape = 'f32[16,1024]{1,0:T(8,128)}', space=vmem, size = 0x10000, scoped, tag = 'scratch operand']
  %s0 = inlined_call_operand.vmem [shape: f32[16,768], index: 0, kind: input, shape index: {}]
  %s1 = inlined_call_operand.hbm [shape: bf16[768,1024], index: 1, kind: input, shape index: {}]
  %s2 = inlined_call_operand.hbm [shape: f32[1,1024], index: 2, kind: input, shape index: {}]
  %s3 = inlined_call_operand.hbm [shape: bf16[1024,512], index: 3, kind: input, shape index: {}]
  %s4 = inlined_call_operand.hbm [shape: f32[1,512], index: 4, kind: input, shape index: {}]
  %s5 = inlined_call_operand.hbm [shape: bf16[512,256], index: 5, kind: input, shape index: {}]
  %s6 = inlined_call_operand.hbm [shape: f32[1,256], index: 6, kind: input, shape index: {}]
  %s7 = inlined_call_operand.vmem [shape: bf16[256,128], index: 7, kind: input, shape index: {}]
  %s8 = inlined_call_operand.vmem [shape: f32[1,128], index: 8, kind: input, shape index: {}]
  %s9 = inlined_call_operand.vmem [shape: f32[16,128], index: 9, kind: output, shape index: {}]
  %s10 = sld [smem:[#allocation0]]
  $region78: #{_discriminator_forward_impl.1} parent=0
    _
  %s12 = ssub.s32 1, %s10
  %s13 = scalar_select 0, %s12, %s10
  $region1: #{_discriminator_forward_impl.1} parent=0
    #allocation3 [shape = 'u8[1572864]{0}', space=vmem, size = 0x180000, scoped, tag = 'input window, operand 1, single buffered']
    #allocation4 [shape = 's32[1]{0}', space=sflag, size = 0x4, scoped, tag = 'scoped memory for _discriminator_forward_impl.1']
    #allocation5 [shape = 'u8[4096]{0}', space=vmem, size = 0x1000, scoped, tag = 'input window, operand 2, single buffered']
    #allocation6 [shape = 's32[1]{0}', space=sflag, size = 0x4, scoped, tag = 'scoped memory for _discriminator_forward_impl.1']
    #allocation7 [shape = 'u8[1048576]{0}', space=vmem, size = 0x100000, scoped, tag = 'input window, operand 3, single buffered']
    #allocation8 [shape = 'u8[2048]{0}', space=vmem, size = 0x800, scoped, tag = 'input window, operand 4, single buffered']
    #allocation9 [shape = 's32[1]{0}', space=sflag, size = 0x4, scoped, tag = 'scoped memory for _discriminator_forward_impl.1']
    #allocation10 [shape = 'u8[262144]{0}', space=vmem, size = 0x40000, scoped, tag = 'input window, operand 5, single buffered']
    #allocation11 [shape = 'u8[1024]{0}', space=vmem, size = 0x400, scoped, tag = 'input window, operand 6, single buffered']
    #allocation12 [shape = 's32[1]{0}', space=sflag, size = 0x4, scoped, tag = 'scoped memory for _discriminator_forward_impl.1']
    %14 = vsyncpa [#allocation4], 0
    %15 = vsyncpa [#allocation6], 0
    %16 = vsyncpa [#allocation9], 0
    %17 = vsyncpa [#allocation12], 0
    // Predicated region
    $region2: #{_discriminator_forward_impl.1} parent=1 // pred_check
      _
    $region3: #{_discriminator_forward_impl.1} parent=1 // pred_check_branch
      %19 = sbr.rel (0) target = $region5
    $region4: #{_discriminator_forward_impl.1} parent=1 // pred_region
      _
    $region5: #{_discriminator_forward_impl.1} parent=1 // pred_fallthru
      _
    // Predicated region
    $region6: #{_discriminator_forward_impl.1} parent=1 // pred_check
      _
    $region7: #{_discriminator_forward_impl.1} parent=1 // pred_check_branch
      %21 = sbr.rel (0) target = $region9
    $region8: #{_discriminator_forward_impl.1} parent=1 // pred_region
      %s23 = ssub.s32 49152, 49152
      %24 = vsyncadd [#allocation4], %s23
      %s25 = sshll.u32 [#allocation3], 4
      %s26 = int_to_ptr.vmem [resolvable:$true] %s25
      %31 = dma.hbm_to_vmem [thread:$0]  %s1, 49152, %s26, [#allocation4], 512, 512, 32
    $region9: #{_discriminator_forward_impl.1} parent=1 // pred_fallthru
      _
    // Predicated region
    $region10: #{_discriminator_forward_impl.1} parent=1 // pred_check
      _
    $region11: #{_discriminator_forward_impl.1} parent=1 // pred_check_branch
      %33 = sbr.rel (0) target = $region13
    $region12: #{_discriminator_forward_impl.1} parent=1 // pred_region
      %s35 = ssub.s32 128, 128
      %36 = vsyncadd [#allocation6], %s35
      %s38 = sshll.u32 [#allocation5], 4
      %s39 = int_to_ptr.vmem [resolvable:$true] %s38
      %41 = dma.hbm_to_vmem [thread:$0]  %s2, 128, %s39, [#allocation6]
    $region13: #{_discriminator_forward_impl.1} parent=1 // pred_fallthru
      _
    // Predicated region
    $region14: #{_discriminator_forward_impl.1} parent=1 // pred_check
      _
    $region15: #{_discriminator_forward_impl.1} parent=1 // pred_check_branch
      %43 = sbr.rel (0) target = $region17
    $region16: #{_discriminator_forward_impl.1} parent=1 // pred_region
      %s45 = ssub.s32 32768, 32768
      %46 = vsyncadd [#allocation6], %s45
      %s47 = sshll.u32 [#allocation7], 4
      %s48 = int_to_ptr.vmem [resolvable:$true] %s47
      %53 = dma.hbm_to_vmem [thread:$0]  %s3, 32768, %s48, [#allocation6], 256, 256, 16
    $region17: #{_discriminator_forward_impl.1} parent=1 // pred_fallthru
      _
    // Predicated region
    $region18: #{_discriminator_forward_impl.1} parent=1 // pred_check
      _
    $region19: #{_discriminator_forward_impl.1} parent=1 // pred_check_branch
      %55 = sbr.rel (0) target = $region21
    $region20: #{_discriminator_forward_impl.1} parent=1 // pred_region
      %s57 = ssub.s32 64, 64
      %58 = vsyncadd [#allocation9], %s57
      %s60 = sshll.u32 [#allocation8], 4
      %s61 = int_to_ptr.vmem [resolvable:$true] %s60
      %63 = dma.hbm_to_vmem [thread:$0]  %s4, 64, %s61, [#allocation9]
    $region21: #{_discriminator_forward_impl.1} parent=1 // pred_fallthru
      _
    // Predicated region
    $region22: #{_discriminator_forward_impl.1} parent=1 // pred_check
      _
    $region23: #{_discriminator_forward_impl.1} parent=1 // pred_check_branch
      %65 = sbr.rel (0) target = $region25
    $region24: #{_discriminator_forward_impl.1} parent=1 // pred_region
      %s67 = ssub.s32 8192, 8192
      %68 = vsyncadd [#allocation9], %s67
      %s69 = sshll.u32 [#allocation10], 4
      %s70 = int_to_ptr.vmem [resolvable:$true] %s69
      %75 = dma.hbm_to_vmem [thread:$0]  %s5, 8192, %s70, [#allocation9], 128, 128, 8
    $region25: #{_discriminator_forward_impl.1} parent=1 // pred_fallthru
      _
    // Predicated region
    $region26: #{_discriminator_forward_impl.1} parent=1 // pred_check
      _
    $region27: #{_discriminator_forward_impl.1} parent=1 // pred_check_branch
      %77 = sbr.rel (0) target = $region29
    $region28: #{_discriminator_forward_impl.1} parent=1 // pred_region
      %s79 = ssub.s32 32, 32
      %80 = vsyncadd [#allocation12], %s79
      %s82 = sshll.u32 [#allocation11], 4
      %s83 = int_to_ptr.vmem [resolvable:$true] %s82
      %85 = dma.hbm_to_vmem [thread:$0]  %s6, 32, %s83, [#allocation12]
    $region29: #{_discriminator_forward_impl.1} parent=1 // pred_fallthru
      _
    // Predicated region
    $region30: #{_discriminator_forward_impl.1} parent=1 // pred_check
      _
    $region31: #{_discriminator_forward_impl.1} parent=1 // pred_check_branch
      %87 = sbr.rel (0) target = $region33
    $region32: #{_discriminator_forward_impl.1} parent=1 // pred_region
      _
    $region33: #{_discriminator_forward_impl.1} parent=1 // pred_fallthru
      _
    // Predicated region
    $region34: #{_discriminator_forward_impl.1} parent=1 // pred_check
      _
    $region35: #{_discriminator_forward_impl.1} parent=1 // pred_check_branch
      %89 = sbr.rel (0) target = $region37
    $region36: #{_discriminator_forward_impl.1} parent=1 // pred_region
      _
    $region37: #{_discriminator_forward_impl.1} parent=1 // pred_fallthru
      _
    // Predicated region
    $region38: #{_discriminator_forward_impl.1} parent=1 // pred_check
      _
    $region39: #{_discriminator_forward_impl.1} parent=1 // pred_check_branch
      %91 = sbr.rel (0) target = $region41
    $region40: #{_discriminator_forward_impl.1} parent=1 // pred_region
      %92 = dma.done [#allocation4], 49152
    $region41: #{_discriminator_forward_impl.1} parent=1 // pred_fallthru
      _
    // Predicated region
    $region42: #{_discriminator_forward_impl.1} parent=1 // pred_check
      _
    $region43: #{_discriminator_forward_impl.1} parent=1 // pred_check_branch
      %94 = sbr.rel (0) target = $region45
    $region44: #{_discriminator_forward_impl.1} parent=1 // pred_region
      %95 = dma.done [#allocation6], 128
    $region45: #{_discriminator_forward_impl.1} parent=1 // pred_fallthru
      _
    // Predicated region
    $region46: #{_discriminator_forward_impl.1} parent=1 // pred_check
      _
    $region47: #{_discriminator_forward_impl.1} parent=1 // pred_check_branch
      %97 = sbr.rel (0) target = $region49
    $region48: #{_discriminator_forward_impl.1} parent=1 // pred_region
      %98 = dma.done [#allocation6], 32768
    $region49: #{_discriminator_forward_impl.1} parent=1 // pred_fallthru
      _
    // Predicated region
    $region50: #{_discriminator_forward_impl.1} parent=1 // pred_check
      _
    $region51: #{_discriminator_forward_impl.1} parent=1 // pred_check_branch
      %100 = sbr.rel (0) target = $region53
    $region52: #{_discriminator_forward_impl.1} parent=1 // pred_region
      %101 = dma.done [#allocation9], 64
    $region53: #{_discriminator_forward_impl.1} parent=1 // pred_fallthru
      _
    // Predicated region
    $region54: #{_discriminator_forward_impl.1} parent=1 // pred_check
      _
    $region55: #{_discriminator_forward_impl.1} parent=1 // pred_check_branch
      %103 = sbr.rel (0) target = $region57
    $region56: #{_discriminator_forward_impl.1} parent=1 // pred_region
      %104 = dma.done [#allocation9], 8192
    $region57: #{_discriminator_forward_impl.1} parent=1 // pred_fallthru
      _
    // Predicated region
    $region58: #{_discriminator_forward_impl.1} parent=1 // pred_check
      _
    $region59: #{_discriminator_forward_impl.1} parent=1 // pred_check_branch
      %106 = sbr.rel (0) target = $region61
    $region60: #{_discriminator_forward_impl.1} parent=1 // pred_region
      %107 = dma.done [#allocation12], 32
    $region61: #{_discriminator_forward_impl.1} parent=1 // pred_fallthru
      _
    %p109 = scmp.eq.s32.totalorder 0, 0
    // Predicated region
    $region62: #{_discriminator_forward_impl.1} parent=1 // pred_check
      %p110 = pneg %p109
    $region63: #{_discriminator_forward_impl.1} parent=1 // pred_check_branch
      %112 = sbr.rel (%p110) target = $region65
    $region64: #{_discriminator_forward_impl.1} parent=1 // pred_region
      %113 = vst [vmem:[#allocation2] sm:$0xff] 0.0
      %114 = vst [vmem:[#allocation2 + $0x8] sm:$0xff] 0.0
      %115 = vst [vmem:[#allocation2 + $0x10] sm:$0xff] 0.0
      %116 = vst [vmem:[#allocation2 + $0x18] sm:$0xff] 0.0
      %117 = vst [vmem:[#allocation2 + $0x20] sm:$0xff] 0.0
      %118 = vst [vmem:[#allocation2 + $0x28] sm:$0xff] 0.0
      %119 = vst [vmem:[#allocation2 + $0x30] sm:$0xff] 0.0
      %120 = vst [vmem:[#allocation2 + $0x38] sm:$0xff] 0.0
      %121 = vst [vmem:[#allocation2 + $0x40] sm:$0xff] 0.0
      %122 = vst [vmem:[#allocation2 + $0x48] sm:$0xff] 0.0
      %123 = vst [vmem:[#allocation2 + $0x50] sm:$0xff] 0.0
      %124 = vst [vmem:[#allocation2 + $0x58] sm:$0xff] 0.0
      %125 = vst [vmem:[#allocation2 + $0x60] sm:$0xff] 0.0
      %126 = vst [vmem:[#allocation2 + $0x68] sm:$0xff] 0.0
      %127 = vst [vmem:[#allocation2 + $0x70] sm:$0xff] 0.0
      %128 = vst [vmem:[#allocation2 + $0x78] sm:$0xff] 0.0
    $region65: #{_discriminator_forward_impl.1} parent=1 // pred_fallthru
      _
    %v129 = vld [vmem:[%s0] sm:$0xff]
    %v130 = vld [vmem:[%s0 + $0x8] sm:$0xff]
    %v131 = vld [vmem:[%s0 + $0x10] sm:$0xff]
    %v132 = vld [vmem:[%s0 + $0x18] sm:$0xff]
    %v133 = vld [vmem:[%s0 + $0x20] sm:$0xff]
    %v134 = vld [vmem:[%s0 + $0x28] sm:$0xff]
    %v135 = vld [vmem:[%s0 + $0x30] sm:$0xff]
    %v136 = vld [vmem:[%s0 + $0x38] sm:$0xff]
    %v137 = vld [vmem:[%s0 + $0x40] sm:$0xff]
    %v138 = vld [vmem:[%s0 + $0x48] sm:$0xff]
    %v139 = vld [vmem:[%s0 + $0x50] sm:$0xff]
    %v140 = vld [vmem:[%s0 + $0x58] sm:$0xff]
    %v141 = vpack.c.bf16 %v135, %v129
    %v142 = vpack.c.bf16 %v136, %v130
    %v143 = vpack.c.bf16 %v137, %v131
    %v144 = vpack.c.bf16 %v138, %v132
    %v145 = vpack.c.bf16 %v139, %v133
    %v146 = vpack.c.bf16 %v140, %v134
    %v147 = vld [vmem:[#allocation2] sm:$0xff]
    %v148 = vld [vmem:[#allocation2 + $0x8] sm:$0xff]
    %v149 = vld [vmem:[#allocation2 + $0x10] sm:$0xff]
    %v150 = vld [vmem:[#allocation2 + $0x18] sm:$0xff]
    %v151 = vld [vmem:[#allocation2 + $0x20] sm:$0xff]
    %v152 = vld [vmem:[#allocation2 + $0x28] sm:$0xff]
    %v153 = vld [vmem:[#allocation2 + $0x30] sm:$0xff]
    %v154 = vld [vmem:[#allocation2 + $0x38] sm:$0xff]
    %v155 = vld [vmem:[#allocation2 + $0x40] sm:$0xff]
    %v156 = vld [vmem:[#allocation2 + $0x48] sm:$0xff]
    %v157 = vld [vmem:[#allocation2 + $0x50] sm:$0xff]
    %v158 = vld [vmem:[#allocation2 + $0x58] sm:$0xff]
    %v159 = vld [vmem:[#allocation2 + $0x60] sm:$0xff]
    %v160 = vld [vmem:[#allocation2 + $0x68] sm:$0xff]
    %v161 = vld [vmem:[#allocation2 + $0x70] sm:$0xff]
    %v162 = vld [vmem:[#allocation2 + $0x78] sm:$0xff]
    %v163 = vld [vmem:[#allocation3] sm:$0xff]
    %v164 = vld [vmem:[#allocation3 + $0x8] sm:$0xff]
    %v165 = vld [vmem:[#allocation3 + $0x10] sm:$0xff]
    %v166 = vld [vmem:[#allocation3 + $0x18] sm:$0xff]
    %v167 = vld [vmem:[#allocation3 + $0x20] sm:$0xff]
    %v168 = vld [vmem:[#allocation3 + $0x28] sm:$0xff]
    %v169 = vld [vmem:[#allocation3 + $0x30] sm:$0xff]
    %v170 = vld [vmem:[#allocation3 + $0x38] sm:$0xff]
    %v171 = vld [vmem:[#allocation3 + $0x40] sm:$0xff]
    %v172 = vld [vmem:[#allocation3 + $0x48] sm:$0xff]
    %v173 = vld [vmem:[#allocation3 + $0x50] sm:$0xff]
    %v174 = vld [vmem:[#allocation3 + $0x58] sm:$0xff]
    %v175 = vld [vmem:[#allocation3 + $0x60] sm:$0xff]
    %v176 = vld [vmem:[#allocation3 + $0x68] sm:$0xff]
    %v177 = vld [vmem:[#allocation3 + $0x70] sm:$0xff]
    %v178 = vld [vmem:[#allocation3 + $0x78] sm:$0xff]
    %v179 = vld [vmem:[#allocation3 + $0x80] sm:$0xff]
    %v180 = vld [vmem:[#allocation3 + $0x88] sm:$0xff]
    %v181 = vld [vmem:[#allocation3 + $0x90] sm:$0xff]
    %v182 = vld [vmem:[#allocation3 + $0x98] sm:$0xff]
    %v183 = vld [vmem:[#allocation3 + $0xa0] sm:$0xff]
    %v184 = vld [vmem:[#allocation3 + $0xa8] sm:$0xff]
    %v185 = vld [vmem:[#allocation3 + $0xb0] sm:$0xff]
    %v186 = vld [vmem:[#allocation3 + $0xb8] sm:$0xff]
    %v187 = vld [vmem:[#allocation3 + $0xc0] sm:$0xff]
    %v188 = vld [vmem:[#allocation3 + $0xc8] sm:$0xff]
    %v189 = vld [vmem:[#allocation3 + $0xd0] sm:$0xff]
    %v190 = vld [vmem:[#allocation3 + $0xd8] sm:$0xff]
    %v191 = vld [vmem:[#allocation3 + $0xe0] sm:$0xff]
    %v192 = vld [vmem:[#allocation3 + $0xe8] sm:$0xff]
    %v193 = vld [vmem:[#allocation3 + $0xf0] sm:$0xff]
    %v194 = vld [vmem:[#allocation3 + $0xf8] sm:$0xff]
    %v195 = vld [vmem:[#allocation3 + $0x100] sm:$0xff]
    %v196 = vld [vmem:[#allocation3 + $0x108] sm:$0xff]
    %v197 = vld [vmem:[#allocation3 + $0x110] sm:$0xff]
    %v198 = vld [vmem:[#allocation3 + $0x118] sm:$0xff]
    %v199 = vld [vmem:[#allocation3 + $0x120] sm:$0xff]
    %v200 = vld [vmem:[#allocation3 + $0x128] sm:$0xff]
    %v201 = vld [vmem:[#allocation3 + $0x130] sm:$0xff]
    %v202 = vld [vmem:[#allocation3 + $0x138] sm:$0xff]
    %v203 = vld [vmem:[#allocation3 + $0x140] sm:$0xff]
    %v204 = vld [vmem:[#allocation3 + $0x148] sm:$0xff]
    %v205 = vld [vmem:[#allocation3 + $0x150] sm:$0xff]
    %v206 = vld [vmem:[#allocation3 + $0x158] sm:$0xff]
    %v207 = vld [vmem:[#allocation3 + $0x160] sm:$0xff]
    %v208 = vld [vmem:[#allocation3 + $0x168] sm:$0xff]
    %v209 = vld [vmem:[#allocation3 + $0x170] sm:$0xff]
    %v210 = vld [vmem:[#allocation3 + $0x178] sm:$0xff]
    %v211 = vld [vmem:[#allocation3 + $0x180] sm:$0xff]
    %v212 = vld [vmem:[#allocation3 + $0x188] sm:$0xff]
    %v213 = vld [vmem:[#allocation3 + $0x190] sm:$0xff]
    %v214 = vld [vmem:[#allocation3 + $0x198] sm:$0xff]
    %v215 = vld [vmem:[#allocation3 + $0x1a0] sm:$0xff]
    %v216 = vld [vmem:[#allocation3 + $0x1a8] sm:$0xff]
    %v217 = vld [vmem:[#allocation3 + $0x1b0] sm:$0xff]
    %v218 = vld [vmem:[#allocation3 + $0x1b8] sm:$0xff]
    %v219 = vld [vmem:[#allocation3 + $0x1c0] sm:$0xff]
    %v220 = vld [vmem:[#allocation3 + $0x1c8] sm:$0xff]
    %v221 = vld [vmem:[#allocation3 + $0x1d0] sm:$0xff]
    %v222 = vld [vmem:[#allocation3 + $0x1d8] sm:$0xff]
    %v223 = vld [vmem:[#allocation3 + $0x1e0] sm:$0xff]
    %v224 = vld [vmem:[#allocation3 + $0x1e8] sm:$0xff]
    %v225 = vld [vmem:[#allocation3 + $0x1f0] sm:$0xff]
    %v226 = vld [vmem:[#allocation3 + $0x1f8] sm:$0xff]
    %v227 = vld [vmem:[#allocation3 + $0x200] sm:$0xff]
    %v228 = vld [vmem:[#allocation3 + $0x208] sm:$0xff]
    %v229 = vld [vmem:[#allocation3 + $0x210] sm:$0xff]
    %v230 = vld [vmem:[#allocation3 + $0x218] sm:$0xff]
    %v231 = vld [vmem:[#allocation3 + $0x220] sm:$0xff]
    %v232 = vld [vmem:[#allocation3 + $0x228] sm:$0xff]
    %v233 = vld [vmem:[#allocation3 + $0x230] sm:$0xff]
    %v234 = vld [vmem:[#allocation3 + $0x238] sm:$0xff]
    %v235 = vld [vmem:[#allocation3 + $0x240] sm:$0xff]
    %v236 = vld [vmem:[#allocation3 + $0x248] sm:$0xff]
    %v237 = vld [vmem:[#allocation3 + $0x250] sm:$0xff]
    %v238 = vld [vmem:[#allocation3 + $0x258] sm:$0xff]
    %v239 = vld [vmem:[#allocation3 + $0x260] sm:$0xff]
    %v240 = vld [vmem:[#allocation3 + $0x268] sm:$0xff]
    %v241 = vld [vmem:[#allocation3 + $0x270] sm:$0xff]
    %v242 = vld [vmem:[#allocation3 + $0x278] sm:$0xff]
    %v243 = vld [vmem:[#allocation3 + $0x280] sm:$0xff]
    %v244 = vld [vmem:[#allocation3 + $0x288] sm:$0xff]
    %v245 = vld [vmem:[#allocation3 + $0x290] sm:$0xff]
    %v246 = vld [vmem:[#allocation3 + $0x298] sm:$0xff]
    %v247 = vld [vmem:[#allocation3 + $0x2a0] sm:$0xff]
    %v248 = vld [vmem:[#allocation3 + $0x2a8] sm:$0xff]
    %v249 = vld [vmem:[#allocation3 + $0x2b0] sm:$0xff]
    %v250 = vld [vmem:[#allocation3 + $0x2b8] sm:$0xff]
    %v251 = vld [vmem:[#allocation3 + $0x2c0] sm:$0xff]
    %v252 = vld [vmem:[#allocation3 + $0x2c8] sm:$0xff]
    %v253 = vld [vmem:[#allocation3 + $0x2d0] sm:$0xff]
    %v254 = vld [vmem:[#allocation3 + $0x2d8] sm:$0xff]
    %v255 = vld [vmem:[#allocation3 + $0x2e0] sm:$0xff]
    %v256 = vld [vmem:[#allocation3 + $0x2e8] sm:$0xff]
    %v257 = vld [vmem:[#allocation3 + $0x2f0] sm:$0xff]
    %v258 = vld [vmem:[#allocation3 + $0x2f8] sm:$0xff]
    %v259 = vld [vmem:[#allocation3 + $0x300] sm:$0xff]
    %v260 = vld [vmem:[#allocation3 + $0x308] sm:$0xff]
    %v261 = vld [vmem:[#allocation3 + $0x310] sm:$0xff]
    %v262 = vld [vmem:[#allocation3 + $0x318] sm:$0xff]
    %v263 = vld [vmem:[#allocation3 + $0x320] sm:$0xff]
    %v264 = vld [vmem:[#allocation3 + $0x328] sm:$0xff]
    %v265 = vld [vmem:[#allocation3 + $0x330] sm:$0xff]
    %v266 = vld [vmem:[#allocation3 + $0x338] sm:$0xff]
    %v267 = vld [vmem:[#allocation3 + $0x340] sm:$0xff]
    %v268 = vld [vmem:[#allocation3 + $0x348] sm:$0xff]
    %v269 = vld [vmem:[#allocation3 + $0x350] sm:$0xff]
    %v270 = vld [vmem:[#allocation3 + $0x358] sm:$0xff]
    %v271 = vld [vmem:[#allocation3 + $0x360] sm:$0xff]
    %v272 = vld [vmem:[#allocation3 + $0x368] sm:$0xff]
    %v273 = vld [vmem:[#allocation3 + $0x370] sm:$0xff]
    %v274 = vld [vmem:[#allocation3 + $0x378] sm:$0xff]
    %v275 = vld [vmem:[#allocation3 + $0x380] sm:$0xff]
    %v276 = vld [vmem:[#allocation3 + $0x388] sm:$0xff]
    %v277 = vld [vmem:[#allocation3 + $0x390] sm:$0xff]
    %v278 = vld [vmem:[#allocation3 + $0x398] sm:$0xff]
    %v279 = vld [vmem:[#allocation3 + $0x3a0] sm:$0xff]
    %v280 = vld [vmem:[#allocation3 + $0x3a8] sm:$0xff]
    %v281 = vld [vmem:[#allocation3 + $0x3b0] sm:$0xff]
    %v282 = vld [vmem:[#allocation3 + $0x3b8] sm:$0xff]
    %v283 = vld [vmem:[#allocation3 + $0x3c0] sm:$0xff]
    %v284 = vld [vmem:[#allocation3 + $0x3c8] sm:$0xff]
    %v285 = vld [vmem:[#allocation3 + $0x3d0] sm:$0xff]
    %v286 = vld [vmem:[#allocation3 + $0x3d8] sm:$0xff]
    %v287 = vld [vmem:[#allocation3 + $0x3e0] sm:$0xff]
    %v288 = vld [vmem:[#allocation3 + $0x3e8] sm:$0xff]
    %v289 = vld [vmem:[#allocation3 + $0x3f0] sm:$0xff]
    %v290 = vld [vmem:[#allocation3 + $0x3f8] sm:$0xff]
    %v291 = vld [vmem:[#allocation3 + $0x400] sm:$0xff]
    %v292 = vld [vmem:[#allocation3 + $0x408] sm:$0xff]
    %v293 = vld [vmem:[#allocation3 + $0x410] sm:$0xff]
    %v294 = vld [vmem:[#allocation3 + $0x418] sm:$0xff]
    %v295 = vld [vmem:[#allocation3 + $0x420] sm:$0xff]
    %v296 = vld [vmem:[#allocation3 + $0x428] sm:$0xff]
    %v297 = vld [vmem:[#allocation3 + $0x430] sm:$0xff]
    %v298 = vld [vmem:[#allocation3 + $0x438] sm:$0xff]
    %v299 = vld [vmem:[#allocation3 + $0x440] sm:$0xff]
    %v300 = vld [vmem:[#allocation3 + $0x448] sm:$0xff]
    %v301 = vld [vmem:[#allocation3 + $0x450] sm:$0xff]
    %v302 = vld [vmem:[#allocation3 + $0x458] sm:$0xff]
    %v303 = vld [vmem:[#allocation3 + $0x460] sm:$0xff]
    %v304 = vld [vmem:[#allocation3 + $0x468] sm:$0xff]
    %v305 = vld [vmem:[#allocation3 + $0x470] sm:$0xff]
    %v306 = vld [vmem:[#allocation3 + $0x478] sm:$0xff]
    %v307 = vld [vmem:[#allocation3 + $0x480] sm:$0xff]
    %v308 = vld [vmem:[#allocation3 + $0x488] sm:$0xff]
    %v309 = vld [vmem:[#allocation3 + $0x490] sm:$0xff]
    %v310 = vld [vmem:[#allocation3 + $0x498] sm:$0xff]
    %v311 = vld [vmem:[#allocation3 + $0x4a0] sm:$0xff]
    %v312 = vld [vmem:[#allocation3 + $0x4a8] sm:$0xff]
    %v313 = vld [vmem:[#allocation3 + $0x4b0] sm:$0xff]
    %v314 = vld [vmem:[#allocation3 + $0x4b8] sm:$0xff]
    %v315 = vld [vmem:[#allocation3 + $0x4c0] sm:$0xff]
    %v316 = vld [vmem:[#allocation3 + $0x4c8] sm:$0xff]
    %v317 = vld [vmem:[#allocation3 + $0x4d0] sm:$0xff]
    %v318 = vld [vmem:[#allocation3 + $0x4d8] sm:$0xff]
    %v319 = vld [vmem:[#allocation3 + $0x4e0] sm:$0xff]
    %v320 = vld [vmem:[#allocation3 + $0x4e8] sm:$0xff]
    %v321 = vld [vmem:[#allocation3 + $0x4f0] sm:$0xff]
    %v322 = vld [vmem:[#allocation3 + $0x4f8] sm:$0xff]
    %v323 = vld [vmem:[#allocation3 + $0x500] sm:$0xff]
    %v324 = vld [vmem:[#allocation3 + $0x508] sm:$0xff]
    %v325 = vld [vmem:[#allocation3 + $0x510] sm:$0xff]
    %v326 = vld [vmem:[#allocation3 + $0x518] sm:$0xff]
    %v327 = vld [vmem:[#allocation3 + $0x520] sm:$0xff]
    %v328 = vld [vmem:[#allocation3 + $0x528] sm:$0xff]
    %v329 = vld [vmem:[#allocation3 + $0x530] sm:$0xff]
    %v330 = vld [vmem:[#allocation3 + $0x538] sm:$0xff]
    %v331 = vld [vmem:[#allocation3 + $0x540] sm:$0xff]
    %v332 = vld [vmem:[#allocation3 + $0x548] sm:$0xff]
    %v333 = vld [vmem:[#allocation3 + $0x550] sm:$0xff]
    %v334 = vld [vmem:[#allocation3 + $0x558] sm:$0xff]
    %v335 = vld [vmem:[#allocation3 + $0x560] sm:$0xff]
    %v336 = vld [vmem:[#allocation3 + $0x568] sm:$0xff]
    %v337 = vld [vmem:[#allocation3 + $0x570] sm:$0xff]
    %v338 = vld [vmem:[#allocation3 + $0x578] sm:$0xff]
    %v339 = vld [vmem:[#allocation3 + $0x580] sm:$0xff]
    %v340 = vld [vmem:[#allocation3 + $0x588] sm:$0xff]
    %v341 = vld [vmem:[#allocation3 + $0x590] sm:$0xff]
    %v342 = vld [vmem:[#allocation3 + $0x598] sm:$0xff]
    %v343 = vld [vmem:[#allocation3 + $0x5a0] sm:$0xff]
    %v344 = vld [vmem:[#allocation3 + $0x5a8] sm:$0xff]
    %v345 = vld [vmem:[#allocation3 + $0x5b0] sm:$0xff]
    %v346 = vld [vmem:[#allocation3 + $0x5b8] sm:$0xff]
    %v347 = vld [vmem:[#allocation3 + $0x5c0] sm:$0xff]
    %v348 = vld [vmem:[#allocation3 + $0x5c8] sm:$0xff]
    %v349 = vld [vmem:[#allocation3 + $0x5d0] sm:$0xff]
    %v350 = vld [vmem:[#allocation3 + $0x5d8] sm:$0xff]
    %v351 = vld [vmem:[#allocation3 + $0x5e0] sm:$0xff]
    %v352 = vld [vmem:[#allocation3 + $0x5e8] sm:$0xff]
    %v353 = vld [vmem:[#allocation3 + $0x5f0] sm:$0xff]
    %v354 = vld [vmem:[#allocation3 + $0x5f8] sm:$0xff]
    %v355 = vld [vmem:[#allocation3 + $0x600] sm:$0xff]
    %v356 = vld [vmem:[#allocation3 + $0x608] sm:$0xff]
    %v357 = vld [vmem:[#allocation3 + $0x610] sm:$0xff]
    %v358 = vld [vmem:[#allocation3 + $0x618] sm:$0xff]
    %v359 = vld [vmem:[#allocation3 + $0x620] sm:$0xff]
    %v360 = vld [vmem:[#allocation3 + $0x628] sm:$0xff]
    %v361 = vld [vmem:[#allocation3 + $0x630] sm:$0xff]
    %v362 = vld [vmem:[#allocation3 + $0x638] sm:$0xff]
    %v363 = vld [vmem:[#allocation3 + $0x640] sm:$0xff]
    %v364 = vld [vmem:[#allocation3 + $0x648] sm:$0xff]
    %v365 = vld [vmem:[#allocation3 + $0x650] sm:$0xff]
    %v366 = vld [vmem:[#allocation3 + $0x658] sm:$0xff]
    %v367 = vld [vmem:[#allocation3 + $0x660] sm:$0xff]
    %v368 = vld [vmem:[#allocation3 + $0x668] sm:$0xff]
    %v369 = vld [vmem:[#allocation3 + $0x670] sm:$0xff]
    %v370 = vld [vmem:[#allocation3 + $0x678] sm:$0xff]
    %v371 = vld [vmem:[#allocation3 + $0x680] sm:$0xff]
    %v372 = vld [vmem:[#allocation3 + $0x688] sm:$0xff]
    %v373 = vld [vmem:[#allocation3 + $0x690] sm:$0xff]
    %v374 = vld [vmem:[#allocation3 + $0x698] sm:$0xff]
    %v375 = vld [vmem:[#allocation3 + $0x6a0] sm:$0xff]
    %v376 = vld [vmem:[#allocation3 + $0x6a8] sm:$0xff]
    %v377 = vld [vmem:[#allocation3 + $0x6b0] sm:$0xff]
    %v378 = vld [vmem:[#allocation3 + $0x6b8] sm:$0xff]
    %v379 = vld [vmem:[#allocation3 + $0x6c0] sm:$0xff]
    %v380 = vld [vmem:[#allocation3 + $0x6c8] sm:$0xff]
    %v381 = vld [vmem:[#allocation3 + $0x6d0] sm:$0xff]
    %v382 = vld [vmem:[#allocation3 + $0x6d8] sm:$0xff]
    %v383 = vld [vmem:[#allocation3 + $0x6e0] sm:$0xff]
    %v384 = vld [vmem:[#allocation3 + $0x6e8] sm:$0xff]
    %v385 = vld [vmem:[#allocation3 + $0x6f0] sm:$0xff]
    %v386 = vld [vmem:[#allocation3 + $0x6f8] sm:$0xff]
    %v387 = vld [vmem:[#allocation3 + $0x700] sm:$0xff]
    %v388 = vld [vmem:[#allocation3 + $0x708] sm:$0xff]
    %v389 = vld [vmem:[#allocation3 + $0x710] sm:$0xff]
    %v390 = vld [vmem:[#allocation3 + $0x718] sm:$0xff]
    %v391 = vld [vmem:[#allocation3 + $0x720] sm:$0xff]
    %v392 = vld [vmem:[#allocation3 + $0x728] sm:$0xff]
    %v393 = vld [vmem:[#allocation3 + $0x730] sm:$0xff]
    %v394 = vld [vmem:[#allocation3 + $0x738] sm:$0xff]
    %v395 = vld [vmem:[#allocation3 + $0x740] sm:$0xff]
    %v396 = vld [vmem:[#allocation3 + $0x748] sm:$0xff]
    %v397 = vld [vmem:[#allocation3 + $0x750] sm:$0xff]
    %v398 = vld [vmem:[#allocation3 + $0x758] sm:$0xff]
    %v399 = vld [vmem:[#allocation3 + $0x760] sm:$0xff]
    %v400 = vld [vmem:[#allocation3 + $0x768] sm:$0xff]
    %v401 = vld [vmem:[#allocation3 + $0x770] sm:$0xff]
    %v402 = vld [vmem:[#allocation3 + $0x778] sm:$0xff]
    %v403 = vld [vmem:[#allocation3 + $0x780] sm:$0xff]
    %v404 = vld [vmem:[#allocation3 + $0x788] sm:$0xff]
    %v405 = vld [vmem:[#allocation3 + $0x790] sm:$0xff]
    %v406 = vld [vmem:[#allocation3 + $0x798] sm:$0xff]
    %v407 = vld [vmem:[#allocation3 + $0x7a0] sm:$0xff]
    %v408 = vld [vmem:[#allocation3 + $0x7a8] sm:$0xff]
    %v409 = vld [vmem:[#allocation3 + $0x7b0] sm:$0xff]
    %v410 = vld [vmem:[#allocation3 + $0x7b8] sm:$0xff]
    %v411 = vld [vmem:[#allocation3 + $0x7c0] sm:$0xff]
    %v412 = vld [vmem:[#allocation3 + $0x7c8] sm:$0xff]
    %v413 = vld [vmem:[#allocation3 + $0x7d0] sm:$0xff]
    %v414 = vld [vmem:[#allocation3 + $0x7d8] sm:$0xff]
    %v415 = vld [vmem:[#allocation3 + $0x7e0] sm:$0xff]
    %v416 = vld [vmem:[#allocation3 + $0x7e8] sm:$0xff]
    %v417 = vld [vmem:[#allocation3 + $0x7f0] sm:$0xff]
    %v418 = vld [vmem:[#allocation3 + $0x7f8] sm:$0xff]
    %v419 = vld [vmem:[#allocation3 + $0x800] sm:$0xff]
    %v420 = vld [vmem:[#allocation3 + $0x808] sm:$0xff]
    %v421 = vld [vmem:[#allocation3 + $0x810] sm:$0xff]
    %v422 = vld [vmem:[#allocation3 + $0x818] sm:$0xff]
    %v423 = vld [vmem:[#allocation3 + $0x820] sm:$0xff]
    %v424 = vld [vmem:[#allocation3 + $0x828] sm:$0xff]
    %v425 = vld [vmem:[#allocation3 + $0x830] sm:$0xff]
    %v426 = vld [vmem:[#allocation3 + $0x838] sm:$0xff]
    %v427 = vld [vmem:[#allocation3 + $0x840] sm:$0xff]
    %v428 = vld [vmem:[#allocation3 + $0x848] sm:$0xff]
    %v429 = vld [vmem:[#allocation3 + $0x850] sm:$0xff]
    %v430 = vld [vmem:[#allocation3 + $0x858] sm:$0xff]
    %v431 = vld [vmem:[#allocation3 + $0x860] sm:$0xff]
    %v432 = vld [vmem:[#allocation3 + $0x868] sm:$0xff]
    %v433 = vld [vmem:[#allocation3 + $0x870] sm:$0xff]
    %v434 = vld [vmem:[#allocation3 + $0x878] sm:$0xff]
    %v435 = vld [vmem:[#allocation3 + $0x880] sm:$0xff]
    %v436 = vld [vmem:[#allocation3 + $0x888] sm:$0xff]
    %v437 = vld [vmem:[#allocation3 + $0x890] sm:$0xff]
    %v438 = vld [vmem:[#allocation3 + $0x898] sm:$0xff]
    %v439 = vld [vmem:[#allocation3 + $0x8a0] sm:$0xff]
    %v440 = vld [vmem:[#allocation3 + $0x8a8] sm:$0xff]
    %v441 = vld [vmem:[#allocation3 + $0x8b0] sm:$0xff]
    %v442 = vld [vmem:[#allocation3 + $0x8b8] sm:$0xff]
    %v443 = vld [vmem:[#allocation3 + $0x8c0] sm:$0xff]
    %v444 = vld [vmem:[#allocation3 + $0x8c8] sm:$0xff]
    %v445 = vld [vmem:[#allocation3 + $0x8d0] sm:$0xff]
    %v446 = vld [vmem:[#allocation3 + $0x8d8] sm:$0xff]
    %v447 = vld [vmem:[#allocation3 + $0x8e0] sm:$0xff]
    %v448 = vld [vmem:[#allocation3 + $0x8e8] sm:$0xff]
    %v449 = vld [vmem:[#allocation3 + $0x8f0] sm:$0xff]
    %v450 = vld [vmem:[#allocation3 + $0x8f8] sm:$0xff]
    %v451 = vld [vmem:[#allocation3 + $0x900] sm:$0xff]
    %v452 = vld [vmem:[#allocation3 + $0x908] sm:$0xff]
    %v453 = vld [vmem:[#allocation3 + $0x910] sm:$0xff]
    %v454 = vld [vmem:[#allocation3 + $0x918] sm:$0xff]
    %v455 = vld [vmem:[#allocation3 + $0x920] sm:$0xff]
    %v456 = vld [vmem:[#allocation3 + $0x928] sm:$0xff]
    %v457 = vld [vmem:[#allocation3 + $0x930] sm:$0xff]
    %v458 = vld [vmem:[#allocation3 + $0x938] sm:$0xff]
    %v459 = vld [vmem:[#allocation3 + $0x940] sm:$0xff]
    %v460 = vld [vmem:[#allocation3 + $0x948] sm:$0xff]
    %v461 = vld [vmem:[#allocation3 + $0x950] sm:$0xff]
    %v462 = vld [vmem:[#allocation3 + $0x958] sm:$0xff]
    %v463 = vld [vmem:[#allocation3 + $0x960] sm:$0xff]
    %v464 = vld [vmem:[#allocation3 + $0x968] sm:$0xff]
    %v465 = vld [vmem:[#allocation3 + $0x970] sm:$0xff]
    %v466 = vld [vmem:[#allocation3 + $0x978] sm:$0xff]
    %v467 = vld [vmem:[#allocation3 + $0x980] sm:$0xff]
    %v468 = vld [vmem:[#allocation3 + $0x988] sm:$0xff]
    %v469 = vld [vmem:[#allocation3 + $0x990] sm:$0xff]
    %v470 = vld [vmem:[#allocation3 + $0x998] sm:$0xff]
    %v471 = vld [vmem:[#allocation3 + $0x9a0] sm:$0xff]
    %v472 = vld [vmem:[#allocation3 + $0x9a8] sm:$0xff]
    %v473 = vld [vmem:[#allocation3 + $0x9b0] sm:$0xff]
    %v474 = vld [vmem:[#allocation3 + $0x9b8] sm:$0xff]
    %v475 = vld [vmem:[#allocation3 + $0x9c0] sm:$0xff]
    %v476 = vld [vmem:[#allocation3 + $0x9c8] sm:$0xff]
    %v477 = vld [vmem:[#allocation3 + $0x9d0] sm:$0xff]
    %v478 = vld [vmem:[#allocation3 + $0x9d8] sm:$0xff]
    %v479 = vld [vmem:[#allocation3 + $0x9e0] sm:$0xff]
    %v480 = vld [vmem:[#allocation3 + $0x9e8] sm:$0xff]
    %v481 = vld [vmem:[#allocation3 + $0x9f0] sm:$0xff]
    %v482 = vld [vmem:[#allocation3 + $0x9f8] sm:$0xff]
    %v483 = vld [vmem:[#allocation3 + $0xa00] sm:$0xff]
    %v484 = vld [vmem:[#allocation3 + $0xa08] sm:$0xff]
    %v485 = vld [vmem:[#allocation3 + $0xa10] sm:$0xff]
    %v486 = vld [vmem:[#allocation3 + $0xa18] sm:$0xff]
    %v487 = vld [vmem:[#allocation3 + $0xa20] sm:$0xff]
    %v488 = vld [vmem:[#allocation3 + $0xa28] sm:$0xff]
    %v489 = vld [vmem:[#allocation3 + $0xa30] sm:$0xff]
    %v490 = vld [vmem:[#allocation3 + $0xa38] sm:$0xff]
    %v491 = vld [vmem:[#allocation3 + $0xa40] sm:$0xff]
    %v492 = vld [vmem:[#allocation3 + $0xa48] sm:$0xff]
    %v493 = vld [vmem:[#allocation3 + $0xa50] sm:$0xff]
    %v494 = vld [vmem:[#allocation3 + $0xa58] sm:$0xff]
    %v495 = vld [vmem:[#allocation3 + $0xa60] sm:$0xff]
    %v496 = vld [vmem:[#allocation3 + $0xa68] sm:$0xff]
    %v497 = vld [vmem:[#allocation3 + $0xa70] sm:$0xff]
    %v498 = vld [vmem:[#allocation3 + $0xa78] sm:$0xff]
    %v499 = vld [vmem:[#allocation3 + $0xa80] sm:$0xff]
    %v500 = vld [vmem:[#allocation3 + $0xa88] sm:$0xff]
    %v501 = vld [vmem:[#allocation3 + $0xa90] sm:$0xff]
    %v502 = vld [vmem:[#allocation3 + $0xa98] sm:$0xff]
    %v503 = vld [vmem:[#allocation3 + $0xaa0] sm:$0xff]
    %v504 = vld [vmem:[#allocation3 + $0xaa8] sm:$0xff]
    %v505 = vld [vmem:[#allocation3 + $0xab0] sm:$0xff]
    %v506 = vld [vmem:[#allocation3 + $0xab8] sm:$0xff]
    %v507 = vld [vmem:[#allocation3 + $0xac0] sm:$0xff]
    %v508 = vld [vmem:[#allocation3 + $0xac8] sm:$0xff]
    %v509 = vld [vmem:[#allocation3 + $0xad0] sm:$0xff]
    %v510 = vld [vmem:[#allocation3 + $0xad8] sm:$0xff]
    %v511 = vld [vmem:[#allocation3 + $0xae0] sm:$0xff]
    %v512 = vld [vmem:[#allocation3 + $0xae8] sm:$0xff]
    %v513 = vld [vmem:[#allocation3 + $0xaf0] sm:$0xff]
    %v514 = vld [vmem:[#allocation3 + $0xaf8] sm:$0xff]
    %v515 = vld [vmem:[#allocation3 + $0xb00] sm:$0xff]
    %v516 = vld [vmem:[#allocation3 + $0xb08] sm:$0xff]
    %v517 = vld [vmem:[#allocation3 + $0xb10] sm:$0xff]
    %v518 = vld [vmem:[#allocation3 + $0xb18] sm:$0xff]
    %v519 = vld [vmem:[#allocation3 + $0xb20] sm:$0xff]
    %v520 = vld [vmem:[#allocation3 + $0xb28] sm:$0xff]
    %v521 = vld [vmem:[#allocation3 + $0xb30] sm:$0xff]
    %v522 = vld [vmem:[#allocation3 + $0xb38] sm:$0xff]
    %v523 = vld [vmem:[#allocation3 + $0xb40] sm:$0xff]
    %v524 = vld [vmem:[#allocation3 + $0xb48] sm:$0xff]
    %v525 = vld [vmem:[#allocation3 + $0xb50] sm:$0xff]
    %v526 = vld [vmem:[#allocation3 + $0xb58] sm:$0xff]
    %v527 = vld [vmem:[#allocation3 + $0xb60] sm:$0xff]
    %v528 = vld [vmem:[#allocation3 + $0xb68] sm:$0xff]
    %v529 = vld [vmem:[#allocation3 + $0xb70] sm:$0xff]
    %v530 = vld [vmem:[#allocation3 + $0xb78] sm:$0xff]
    %v531 = vld [vmem:[#allocation3 + $0xb80] sm:$0xff]
    %v532 = vld [vmem:[#allocation3 + $0xb88] sm:$0xff]
    %v533 = vld [vmem:[#allocation3 + $0xb90] sm:$0xff]
    %v534 = vld [vmem:[#allocation3 + $0xb98] sm:$0xff]
    %v535 = vld [vmem:[#allocation3 + $0xba0] sm:$0xff]
    %v536 = vld [vmem:[#allocation3 + $0xba8] sm:$0xff]
    %v537 = vld [vmem:[#allocation3 + $0xbb0] sm:$0xff]
    %v538 = vld [vmem:[#allocation3 + $0xbb8] sm:$0xff]
    %v539 = vld [vmem:[#allocation3 + $0xbc0] sm:$0xff]
    %v540 = vld [vmem:[#allocation3 + $0xbc8] sm:$0xff]
    %v541 = vld [vmem:[#allocation3 + $0xbd0] sm:$0xff]
    %v542 = vld [vmem:[#allocation3 + $0xbd8] sm:$0xff]
    %v543 = vld [vmem:[#allocation3 + $0xbe0] sm:$0xff]
    %v544 = vld [vmem:[#allocation3 + $0xbe8] sm:$0xff]
    %v545 = vld [vmem:[#allocation3 + $0xbf0] sm:$0xff]
    %v546 = vld [vmem:[#allocation3 + $0xbf8] sm:$0xff]
    %v931 = vunpack.c.l.b16 %v163
    %v932 = vunpack.c.h.b16 %v163
    %v933 = vunpack.c.l.b16 %v164
    %v934 = vunpack.c.h.b16 %v164
    %v935 = vunpack.c.l.b16 %v165
    %v936 = vunpack.c.h.b16 %v165
    %v937 = vunpack.c.l.b16 %v166
    %v938 = vunpack.c.h.b16 %v166
    %v939 = vunpack.c.l.b16 %v167
    %v940 = vunpack.c.h.b16 %v167
    %v941 = vunpack.c.l.b16 %v168
    %v942 = vunpack.c.h.b16 %v168
    %v943 = vunpack.c.l.b16 %v169
    %v944 = vunpack.c.h.b16 %v169
    %v945 = vunpack.c.l.b16 %v170
    %v946 = vunpack.c.h.b16 %v170
    %v947 = vunpack.c.l.b16 %v171
    %v948 = vunpack.c.h.b16 %v171
    %v949 = vunpack.c.l.b16 %v172
    %v950 = vunpack.c.h.b16 %v172
    %v951 = vunpack.c.l.b16 %v173
    %v952 = vunpack.c.h.b16 %v173
    %v953 = vunpack.c.l.b16 %v174
    %v954 = vunpack.c.h.b16 %v174
    %v955 = vunpack.c.l.b16 %v175
    %v956 = vunpack.c.h.b16 %v175
    %v957 = vunpack.c.l.b16 %v176
    %v958 = vunpack.c.h.b16 %v176
    %v959 = vunpack.c.l.b16 %v177
    %v960 = vunpack.c.h.b16 %v177
    %v961 = vunpack.c.l.b16 %v178
    %v962 = vunpack.c.h.b16 %v178
    %v963 = vunpack.c.l.b16 %v179
    %v964 = vunpack.c.h.b16 %v179
    %v965 = vunpack.c.l.b16 %v180
    %v966 = vunpack.c.h.b16 %v180
    %v967 = vunpack.c.l.b16 %v181
    %v968 = vunpack.c.h.b16 %v181
    %v969 = vunpack.c.l.b16 %v182
    %v970 = vunpack.c.h.b16 %v182
    %v971 = vunpack.c.l.b16 %v183
    %v972 = vunpack.c.h.b16 %v183
    %v973 = vunpack.c.l.b16 %v184
    %v974 = vunpack.c.h.b16 %v184
    %v975 = vunpack.c.l.b16 %v185
    %v976 = vunpack.c.h.b16 %v185
    %v977 = vunpack.c.l.b16 %v186
    %v978 = vunpack.c.h.b16 %v186
    %v979 = vunpack.c.l.b16 %v187
    %v980 = vunpack.c.h.b16 %v187
    %v981 = vunpack.c.l.b16 %v188
    %v982 = vunpack.c.h.b16 %v188
    %v983 = vunpack.c.l.b16 %v189
    %v984 = vunpack.c.h.b16 %v189
    %v985 = vunpack.c.l.b16 %v190
    %v986 = vunpack.c.h.b16 %v190
    %v987 = vunpack.c.l.b16 %v191
    %v988 = vunpack.c.h.b16 %v191
    %v989 = vunpack.c.l.b16 %v192
    %v990 = vunpack.c.h.b16 %v192
    %v991 = vunpack.c.l.b16 %v193
    %v992 = vunpack.c.h.b16 %v193
    %v993 = vunpack.c.l.b16 %v194
    %v994 = vunpack.c.h.b16 %v194
    %v995 = vunpack.c.l.b16 %v195
    %v996 = vunpack.c.h.b16 %v195
    %v997 = vunpack.c.l.b16 %v196
    %v998 = vunpack.c.h.b16 %v196
    %v999 = vunpack.c.l.b16 %v197
    %v1000 = vunpack.c.h.b16 %v197
    %v1001 = vunpack.c.l.b16 %v198
    %v1002 = vunpack.c.h.b16 %v198
    %v1003 = vunpack.c.l.b16 %v199
    %v1004 = vunpack.c.h.b16 %v199
    %v1005 = vunpack.c.l.b16 %v200
    %v1006 = vunpack.c.h.b16 %v200
    %v1007 = vunpack.c.l.b16 %v201
    %v1008 = vunpack.c.h.b16 %v201
    %v1009 = vunpack.c.l.b16 %v202
    %v1010 = vunpack.c.h.b16 %v202
    %v1011 = vunpack.c.l.b16 %v203
    %v1012 = vunpack.c.h.b16 %v203
    %v1013 = vunpack.c.l.b16 %v204
    %v1014 = vunpack.c.h.b16 %v204
    %v1015 = vunpack.c.l.b16 %v205
    %v1016 = vunpack.c.h.b16 %v205
    %v1017 = vunpack.c.l.b16 %v206
    %v1018 = vunpack.c.h.b16 %v206
    %v1019 = vunpack.c.l.b16 %v207
    %v1020 = vunpack.c.h.b16 %v207
    %v1021 = vunpack.c.l.b16 %v208
    %v1022 = vunpack.c.h.b16 %v208
    %v1023 = vunpack.c.l.b16 %v209
    %v1024 = vunpack.c.h.b16 %v209
    %v1025 = vunpack.c.l.b16 %v210
    %v1026 = vunpack.c.h.b16 %v210
    %v1027 = vunpack.c.l.b16 %v211
    %v1028 = vunpack.c.h.b16 %v211
    %v1029 = vunpack.c.l.b16 %v212
    %v1030 = vunpack.c.h.b16 %v212
    %v1031 = vunpack.c.l.b16 %v213
    %v1032 = vunpack.c.h.b16 %v213
    %v1033 = vunpack.c.l.b16 %v214
    %v1034 = vunpack.c.h.b16 %v214
    %v1035 = vunpack.c.l.b16 %v215
    %v1036 = vunpack.c.h.b16 %v215
    %v1037 = vunpack.c.l.b16 %v216
    %v1038 = vunpack.c.h.b16 %v216
    %v1039 = vunpack.c.l.b16 %v217
    %v1040 = vunpack.c.h.b16 %v217
    %v1041 = vunpack.c.l.b16 %v218
    %v1042 = vunpack.c.h.b16 %v218
    %v1043 = vunpack.c.l.b16 %v219
    %v1044 = vunpack.c.h.b16 %v219
    %v1045 = vunpack.c.l.b16 %v220
    %v1046 = vunpack.c.h.b16 %v220
    %v1047 = vunpack.c.l.b16 %v221
    %v1048 = vunpack.c.h.b16 %v221
    %v1049 = vunpack.c.l.b16 %v222
    %v1050 = vunpack.c.h.b16 %v222
    %v1051 = vunpack.c.l.b16 %v223
    %v1052 = vunpack.c.h.b16 %v223
    %v1053 = vunpack.c.l.b16 %v224
    %v1054 = vunpack.c.h.b16 %v224
    %v1055 = vunpack.c.l.b16 %v225
    %v1056 = vunpack.c.h.b16 %v225
    %v1057 = vunpack.c.l.b16 %v226
    %v1058 = vunpack.c.h.b16 %v226
    %v1059 = vunpack.c.l.b16 %v227
    %v1060 = vunpack.c.h.b16 %v227
    %v1061 = vunpack.c.l.b16 %v228
    %v1062 = vunpack.c.h.b16 %v228
    %v1063 = vunpack.c.l.b16 %v229
    %v1064 = vunpack.c.h.b16 %v229
    %v1065 = vunpack.c.l.b16 %v230
    %v1066 = vunpack.c.h.b16 %v230
    %v1067 = vunpack.c.l.b16 %v231
    %v1068 = vunpack.c.h.b16 %v231
    %v1069 = vunpack.c.l.b16 %v232
    %v1070 = vunpack.c.h.b16 %v232
    %v1071 = vunpack.c.l.b16 %v233
    %v1072 = vunpack.c.h.b16 %v233
    %v1073 = vunpack.c.l.b16 %v234
    %v1074 = vunpack.c.h.b16 %v234
    %v1075 = vunpack.c.l.b16 %v235
    %v1076 = vunpack.c.h.b16 %v235
    %v1077 = vunpack.c.l.b16 %v236
    %v1078 = vunpack.c.h.b16 %v236
    %v1079 = vunpack.c.l.b16 %v237
    %v1080 = vunpack.c.h.b16 %v237
    %v1081 = vunpack.c.l.b16 %v238
    %v1082 = vunpack.c.h.b16 %v238
    %v1083 = vunpack.c.l.b16 %v239
    %v1084 = vunpack.c.h.b16 %v239
    %v1085 = vunpack.c.l.b16 %v240
    %v1086 = vunpack.c.h.b16 %v240
    %v1087 = vunpack.c.l.b16 %v241
    %v1088 = vunpack.c.h.b16 %v241
    %v1089 = vunpack.c.l.b16 %v242
    %v1090 = vunpack.c.h.b16 %v242
    %v1091 = vunpack.c.l.b16 %v243
    %v1092 = vunpack.c.h.b16 %v243
    %v1093 = vunpack.c.l.b16 %v244
    %v1094 = vunpack.c.h.b16 %v244
    %v1095 = vunpack.c.l.b16 %v245
    %v1096 = vunpack.c.h.b16 %v245
    %v1097 = vunpack.c.l.b16 %v246
    %v1098 = vunpack.c.h.b16 %v246
    %v1099 = vunpack.c.l.b16 %v247
    %v1100 = vunpack.c.h.b16 %v247
    %v1101 = vunpack.c.l.b16 %v248
    %v1102 = vunpack.c.h.b16 %v248
    %v1103 = vunpack.c.l.b16 %v249
    %v1104 = vunpack.c.h.b16 %v249
    %v1105 = vunpack.c.l.b16 %v250
    %v1106 = vunpack.c.h.b16 %v250
    %v1107 = vunpack.c.l.b16 %v251
    %v1108 = vunpack.c.h.b16 %v251
    %v1109 = vunpack.c.l.b16 %v252
    %v1110 = vunpack.c.h.b16 %v252
    %v1111 = vunpack.c.l.b16 %v253
    %v1112 = vunpack.c.h.b16 %v253
    %v1113 = vunpack.c.l.b16 %v254
    %v1114 = vunpack.c.h.b16 %v254
    %v1115 = vunpack.c.l.b16 %v255
    %v1116 = vunpack.c.h.b16 %v255
    %v1117 = vunpack.c.l.b16 %v256
    %v1118 = vunpack.c.h.b16 %v256
    %v1119 = vunpack.c.l.b16 %v257
    %v1120 = vunpack.c.h.b16 %v257
    %v1121 = vunpack.c.l.b16 %v258
    %v1122 = vunpack.c.h.b16 %v258
    %v1123 = vunpack.c.l.b16 %v259
    %v1124 = vunpack.c.h.b16 %v259
    %v1125 = vunpack.c.l.b16 %v260
    %v1126 = vunpack.c.h.b16 %v260
    %v1127 = vunpack.c.l.b16 %v261
    %v1128 = vunpack.c.h.b16 %v261
    %v1129 = vunpack.c.l.b16 %v262
    %v1130 = vunpack.c.h.b16 %v262
    %v1131 = vunpack.c.l.b16 %v263
    %v1132 = vunpack.c.h.b16 %v263
    %v1133 = vunpack.c.l.b16 %v264
    %v1134 = vunpack.c.h.b16 %v264
    %v1135 = vunpack.c.l.b16 %v265
    %v1136 = vunpack.c.h.b16 %v265
    %v1137 = vunpack.c.l.b16 %v266
    %v1138 = vunpack.c.h.b16 %v266
    %v1139 = vunpack.c.l.b16 %v267
    %v1140 = vunpack.c.h.b16 %v267
    %v1141 = vunpack.c.l.b16 %v268
    %v1142 = vunpack.c.h.b16 %v268
    %v1143 = vunpack.c.l.b16 %v269
    %v1144 = vunpack.c.h.b16 %v269
    %v1145 = vunpack.c.l.b16 %v270
    %v1146 = vunpack.c.h.b16 %v270
    %v1147 = vunpack.c.l.b16 %v271
    %v1148 = vunpack.c.h.b16 %v271
    %v1149 = vunpack.c.l.b16 %v272
    %v1150 = vunpack.c.h.b16 %v272
    %v1151 = vunpack.c.l.b16 %v273
    %v1152 = vunpack.c.h.b16 %v273
    %v1153 = vunpack.c.l.b16 %v274
    %v1154 = vunpack.c.h.b16 %v274
    %v1155 = vunpack.c.l.b16 %v275
    %v1156 = vunpack.c.h.b16 %v275
    %v1157 = vunpack.c.l.b16 %v276
    %v1158 = vunpack.c.h.b16 %v276
    %v1159 = vunpack.c.l.b16 %v277
    %v1160 = vunpack.c.h.b16 %v277
    %v1161 = vunpack.c.l.b16 %v278
    %v1162 = vunpack.c.h.b16 %v278
    %v1163 = vunpack.c.l.b16 %v279
    %v1164 = vunpack.c.h.b16 %v279
    %v1165 = vunpack.c.l.b16 %v280
    %v1166 = vunpack.c.h.b16 %v280
    %v1167 = vunpack.c.l.b16 %v281
    %v1168 = vunpack.c.h.b16 %v281
    %v1169 = vunpack.c.l.b16 %v282
    %v1170 = vunpack.c.h.b16 %v282
    %v1171 = vunpack.c.l.b16 %v283
    %v1172 = vunpack.c.h.b16 %v283
    %v1173 = vunpack.c.l.b16 %v284
    %v1174 = vunpack.c.h.b16 %v284
    %v1175 = vunpack.c.l.b16 %v285
    %v1176 = vunpack.c.h.b16 %v285
    %v1177 = vunpack.c.l.b16 %v286
    %v1178 = vunpack.c.h.b16 %v286
    %v1179 = vunpack.c.l.b16 %v287
    %v1180 = vunpack.c.h.b16 %v287
    %v1181 = vunpack.c.l.b16 %v288
    %v1182 = vunpack.c.h.b16 %v288
    %v1183 = vunpack.c.l.b16 %v289
    %v1184 = vunpack.c.h.b16 %v289
    %v1185 = vunpack.c.l.b16 %v290
    %v1186 = vunpack.c.h.b16 %v290
    %v1187 = vunpack.c.l.b16 %v291
    %v1188 = vunpack.c.h.b16 %v291
    %v1189 = vunpack.c.l.b16 %v292
    %v1190 = vunpack.c.h.b16 %v292
    %v1191 = vunpack.c.l.b16 %v293
    %v1192 = vunpack.c.h.b16 %v293
    %v1193 = vunpack.c.l.b16 %v294
    %v1194 = vunpack.c.h.b16 %v294
    %v1195 = vunpack.c.l.b16 %v295
    %v1196 = vunpack.c.h.b16 %v295
    %v1197 = vunpack.c.l.b16 %v296
    %v1198 = vunpack.c.h.b16 %v296
    %v1199 = vunpack.c.l.b16 %v297
    %v1200 = vunpack.c.h.b16 %v297
    %v1201 = vunpack.c.l.b16 %v298
    %v1202 = vunpack.c.h.b16 %v298
    %v1203 = vunpack.c.l.b16 %v299
    %v1204 = vunpack.c.h.b16 %v299
    %v1205 = vunpack.c.l.b16 %v300
    %v1206 = vunpack.c.h.b16 %v300
    %v1207 = vunpack.c.l.b16 %v301
    %v1208 = vunpack.c.h.b16 %v301
    %v1209 = vunpack.c.l.b16 %v302
    %v1210 = vunpack.c.h.b16 %v302
    %v1211 = vunpack.c.l.b16 %v303
    %v1212 = vunpack.c.h.b16 %v303
    %v1213 = vunpack.c.l.b16 %v304
    %v1214 = vunpack.c.h.b16 %v304
    %v1215 = vunpack.c.l.b16 %v305
    %v1216 = vunpack.c.h.b16 %v305
    %v1217 = vunpack.c.l.b16 %v306
    %v1218 = vunpack.c.h.b16 %v306
    %v1219 = vunpack.c.l.b16 %v307
    %v1220 = vunpack.c.h.b16 %v307
    %v1221 = vunpack.c.l.b16 %v308
    %v1222 = vunpack.c.h.b16 %v308
    %v1223 = vunpack.c.l.b16 %v309
    %v1224 = vunpack.c.h.b16 %v309
    %v1225 = vunpack.c.l.b16 %v310
    %v1226 = vunpack.c.h.b16 %v310
    %v1227 = vunpack.c.l.b16 %v311
    %v1228 = vunpack.c.h.b16 %v311
    %v1229 = vunpack.c.l.b16 %v312
    %v1230 = vunpack.c.h.b16 %v312
    %v1231 = vunpack.c.l.b16 %v313
    %v1232 = vunpack.c.h.b16 %v313
    %v1233 = vunpack.c.l.b16 %v314
    %v1234 = vunpack.c.h.b16 %v314
    %v1235 = vunpack.c.l.b16 %v315
    %v1236 = vunpack.c.h.b16 %v315
    %v1237 = vunpack.c.l.b16 %v316
    %v1238 = vunpack.c.h.b16 %v316
    %v1239 = vunpack.c.l.b16 %v317
    %v1240 = vunpack.c.h.b16 %v317
    %v1241 = vunpack.c.l.b16 %v318
    %v1242 = vunpack.c.h.b16 %v318
    %v1243 = vunpack.c.l.b16 %v319
    %v1244 = vunpack.c.h.b16 %v319
    %v1245 = vunpack.c.l.b16 %v320
    %v1246 = vunpack.c.h.b16 %v320
    %v1247 = vunpack.c.l.b16 %v321
    %v1248 = vunpack.c.h.b16 %v321
    %v1249 = vunpack.c.l.b16 %v322
    %v1250 = vunpack.c.h.b16 %v322
    %v1251 = vunpack.c.l.b16 %v323
    %v1252 = vunpack.c.h.b16 %v323
    %v1253 = vunpack.c.l.b16 %v324
    %v1254 = vunpack.c.h.b16 %v324
    %v1255 = vunpack.c.l.b16 %v325
    %v1256 = vunpack.c.h.b16 %v325
    %v1257 = vunpack.c.l.b16 %v326
    %v1258 = vunpack.c.h.b16 %v326
    %v1259 = vunpack.c.l.b16 %v327
    %v1260 = vunpack.c.h.b16 %v327
    %v1261 = vunpack.c.l.b16 %v328
    %v1262 = vunpack.c.h.b16 %v328
    %v1263 = vunpack.c.l.b16 %v329
    %v1264 = vunpack.c.h.b16 %v329
    %v1265 = vunpack.c.l.b16 %v330
    %v1266 = vunpack.c.h.b16 %v330
    %v1267 = vunpack.c.l.b16 %v331
    %v1268 = vunpack.c.h.b16 %v331
    %v1269 = vunpack.c.l.b16 %v332
    %v1270 = vunpack.c.h.b16 %v332
    %v1271 = vunpack.c.l.b16 %v333
    %v1272 = vunpack.c.h.b16 %v333
    %v1273 = vunpack.c.l.b16 %v334
    %v1274 = vunpack.c.h.b16 %v334
    %v1275 = vunpack.c.l.b16 %v335
    %v1276 = vunpack.c.h.b16 %v335
    %v1277 = vunpack.c.l.b16 %v336
    %v1278 = vunpack.c.h.b16 %v336
    %v1279 = vunpack.c.l.b16 %v337
    %v1280 = vunpack.c.h.b16 %v337
    %v1281 = vunpack.c.l.b16 %v338
    %v1282 = vunpack.c.h.b16 %v338
    %v1283 = vunpack.c.l.b16 %v339
    %v1284 = vunpack.c.h.b16 %v339
    %v1285 = vunpack.c.l.b16 %v340
    %v1286 = vunpack.c.h.b16 %v340
    %v1287 = vunpack.c.l.b16 %v341
    %v1288 = vunpack.c.h.b16 %v341
    %v1289 = vunpack.c.l.b16 %v342
    %v1290 = vunpack.c.h.b16 %v342
    %v1291 = vunpack.c.l.b16 %v343
    %v1292 = vunpack.c.h.b16 %v343
    %v1293 = vunpack.c.l.b16 %v344
    %v1294 = vunpack.c.h.b16 %v344
    %v1295 = vunpack.c.l.b16 %v345
    %v1296 = vunpack.c.h.b16 %v345
    %v1297 = vunpack.c.l.b16 %v346
    %v1298 = vunpack.c.h.b16 %v346
    %v1299 = vunpack.c.l.b16 %v347
    %v1300 = vunpack.c.h.b16 %v347
    %v1301 = vunpack.c.l.b16 %v348
    %v1302 = vunpack.c.h.b16 %v348
    %v1303 = vunpack.c.l.b16 %v349
    %v1304 = vunpack.c.h.b16 %v349
    %v1305 = vunpack.c.l.b16 %v350
    %v1306 = vunpack.c.h.b16 %v350
    %v1307 = vunpack.c.l.b16 %v351
    %v1308 = vunpack.c.h.b16 %v351
    %v1309 = vunpack.c.l.b16 %v352
    %v1310 = vunpack.c.h.b16 %v352
    %v1311 = vunpack.c.l.b16 %v353
    %v1312 = vunpack.c.h.b16 %v353
    %v1313 = vunpack.c.l.b16 %v354
    %v1314 = vunpack.c.h.b16 %v354
    %v1315 = vunpack.c.l.b16 %v355
    %v1316 = vunpack.c.h.b16 %v355
    %v1317 = vunpack.c.l.b16 %v356
    %v1318 = vunpack.c.h.b16 %v356
    %v1319 = vunpack.c.l.b16 %v357
    %v1320 = vunpack.c.h.b16 %v357
    %v1321 = vunpack.c.l.b16 %v358
    %v1322 = vunpack.c.h.b16 %v358
    %v1323 = vunpack.c.l.b16 %v359
    %v1324 = vunpack.c.h.b16 %v359
    %v1325 = vunpack.c.l.b16 %v360
    %v1326 = vunpack.c.h.b16 %v360
    %v1327 = vunpack.c.l.b16 %v361
    %v1328 = vunpack.c.h.b16 %v361
    %v1329 = vunpack.c.l.b16 %v362
    %v1330 = vunpack.c.h.b16 %v362
    %v1331 = vunpack.c.l.b16 %v363
    %v1332 = vunpack.c.h.b16 %v363
    %v1333 = vunpack.c.l.b16 %v364
    %v1334 = vunpack.c.h.b16 %v364
    %v1335 = vunpack.c.l.b16 %v365
    %v1336 = vunpack.c.h.b16 %v365
    %v1337 = vunpack.c.l.b16 %v366
    %v1338 = vunpack.c.h.b16 %v366
    %v1339 = vunpack.c.l.b16 %v367
    %v1340 = vunpack.c.h.b16 %v367
    %v1341 = vunpack.c.l.b16 %v368
    %v1342 = vunpack.c.h.b16 %v368
    %v1343 = vunpack.c.l.b16 %v369
    %v1344 = vunpack.c.h.b16 %v369
    %v1345 = vunpack.c.l.b16 %v370
    %v1346 = vunpack.c.h.b16 %v370
    %v1347 = vunpack.c.l.b16 %v371
    %v1348 = vunpack.c.h.b16 %v371
    %v1349 = vunpack.c.l.b16 %v372
    %v1350 = vunpack.c.h.b16 %v372
    %v1351 = vunpack.c.l.b16 %v373
    %v1352 = vunpack.c.h.b16 %v373
    %v1353 = vunpack.c.l.b16 %v374
    %v1354 = vunpack.c.h.b16 %v374
    %v1355 = vunpack.c.l.b16 %v375
    %v1356 = vunpack.c.h.b16 %v375
    %v1357 = vunpack.c.l.b16 %v376
    %v1358 = vunpack.c.h.b16 %v376
    %v1359 = vunpack.c.l.b16 %v377
    %v1360 = vunpack.c.h.b16 %v377
    %v1361 = vunpack.c.l.b16 %v378
    %v1362 = vunpack.c.h.b16 %v378
    %v1363 = vunpack.c.l.b16 %v379
    %v1364 = vunpack.c.h.b16 %v379
    %v1365 = vunpack.c.l.b16 %v380
    %v1366 = vunpack.c.h.b16 %v380
    %v1367 = vunpack.c.l.b16 %v381
    %v1368 = vunpack.c.h.b16 %v381
    %v1369 = vunpack.c.l.b16 %v382
    %v1370 = vunpack.c.h.b16 %v382
    %v1371 = vunpack.c.l.b16 %v383
    %v1372 = vunpack.c.h.b16 %v383
    %v1373 = vunpack.c.l.b16 %v384
    %v1374 = vunpack.c.h.b16 %v384
    %v1375 = vunpack.c.l.b16 %v385
    %v1376 = vunpack.c.h.b16 %v385
    %v1377 = vunpack.c.l.b16 %v386
    %v1378 = vunpack.c.h.b16 %v386
    %v1379 = vunpack.c.l.b16 %v387
    %v1380 = vunpack.c.h.b16 %v387
    %v1381 = vunpack.c.l.b16 %v388
    %v1382 = vunpack.c.h.b16 %v388
    %v1383 = vunpack.c.l.b16 %v389
    %v1384 = vunpack.c.h.b16 %v389
    %v1385 = vunpack.c.l.b16 %v390
    %v1386 = vunpack.c.h.b16 %v390
    %v1387 = vunpack.c.l.b16 %v391
    %v1388 = vunpack.c.h.b16 %v391
    %v1389 = vunpack.c.l.b16 %v392
    %v1390 = vunpack.c.h.b16 %v392
    %v1391 = vunpack.c.l.b16 %v393
    %v1392 = vunpack.c.h.b16 %v393
    %v1393 = vunpack.c.l.b16 %v394
    %v1394 = vunpack.c.h.b16 %v394
    %v1395 = vunpack.c.l.b16 %v395
    %v1396 = vunpack.c.h.b16 %v395
    %v1397 = vunpack.c.l.b16 %v396
    %v1398 = vunpack.c.h.b16 %v396
    %v1399 = vunpack.c.l.b16 %v397
    %v1400 = vunpack.c.h.b16 %v397
    %v1401 = vunpack.c.l.b16 %v398
    %v1402 = vunpack.c.h.b16 %v398
    %v1403 = vunpack.c.l.b16 %v399
    %v1404 = vunpack.c.h.b16 %v399
    %v1405 = vunpack.c.l.b16 %v400
    %v1406 = vunpack.c.h.b16 %v400
    %v1407 = vunpack.c.l.b16 %v401
    %v1408 = vunpack.c.h.b16 %v401
    %v1409 = vunpack.c.l.b16 %v402
    %v1410 = vunpack.c.h.b16 %v402
    %v1411 = vunpack.c.l.b16 %v403
    %v1412 = vunpack.c.h.b16 %v403
    %v1413 = vunpack.c.l.b16 %v404
    %v1414 = vunpack.c.h.b16 %v404
    %v1415 = vunpack.c.l.b16 %v405
    %v1416 = vunpack.c.h.b16 %v405
    %v1417 = vunpack.c.l.b16 %v406
    %v1418 = vunpack.c.h.b16 %v406
    %v1419 = vunpack.c.l.b16 %v407
    %v1420 = vunpack.c.h.b16 %v407
    %v1421 = vunpack.c.l.b16 %v408
    %v1422 = vunpack.c.h.b16 %v408
    %v1423 = vunpack.c.l.b16 %v409
    %v1424 = vunpack.c.h.b16 %v409
    %v1425 = vunpack.c.l.b16 %v410
    %v1426 = vunpack.c.h.b16 %v410
    %v1427 = vunpack.c.l.b16 %v411
    %v1428 = vunpack.c.h.b16 %v411
    %v1429 = vunpack.c.l.b16 %v412
    %v1430 = vunpack.c.h.b16 %v412
    %v1431 = vunpack.c.l.b16 %v413
    %v1432 = vunpack.c.h.b16 %v413
    %v1433 = vunpack.c.l.b16 %v414
    %v1434 = vunpack.c.h.b16 %v414
    %v1435 = vunpack.c.l.b16 %v415
    %v1436 = vunpack.c.h.b16 %v415
    %v1437 = vunpack.c.l.b16 %v416
    %v1438 = vunpack.c.h.b16 %v416
    %v1439 = vunpack.c.l.b16 %v417
    %v1440 = vunpack.c.h.b16 %v417
    %v1441 = vunpack.c.l.b16 %v418
    %v1442 = vunpack.c.h.b16 %v418
    %v1443 = vunpack.c.l.b16 %v419
    %v1444 = vunpack.c.h.b16 %v419
    %v1445 = vunpack.c.l.b16 %v420
    %v1446 = vunpack.c.h.b16 %v420
    %v1447 = vunpack.c.l.b16 %v421
    %v1448 = vunpack.c.h.b16 %v421
    %v1449 = vunpack.c.l.b16 %v422
    %v1450 = vunpack.c.h.b16 %v422
    %v1451 = vunpack.c.l.b16 %v423
    %v1452 = vunpack.c.h.b16 %v423
    %v1453 = vunpack.c.l.b16 %v424
    %v1454 = vunpack.c.h.b16 %v424
    %v1455 = vunpack.c.l.b16 %v425
    %v1456 = vunpack.c.h.b16 %v425
    %v1457 = vunpack.c.l.b16 %v426
    %v1458 = vunpack.c.h.b16 %v426
    %v1459 = vunpack.c.l.b16 %v427
    %v1460 = vunpack.c.h.b16 %v427
    %v1461 = vunpack.c.l.b16 %v428
    %v1462 = vunpack.c.h.b16 %v428
    %v1463 = vunpack.c.l.b16 %v429
    %v1464 = vunpack.c.h.b16 %v429
    %v1465 = vunpack.c.l.b16 %v430
    %v1466 = vunpack.c.h.b16 %v430
    %v1467 = vunpack.c.l.b16 %v431
    %v1468 = vunpack.c.h.b16 %v431
    %v1469 = vunpack.c.l.b16 %v432
    %v1470 = vunpack.c.h.b16 %v432
    %v1471 = vunpack.c.l.b16 %v433
    %v1472 = vunpack.c.h.b16 %v433
    %v1473 = vunpack.c.l.b16 %v434
    %v1474 = vunpack.c.h.b16 %v434
    %v1475 = vunpack.c.l.b16 %v435
    %v1476 = vunpack.c.h.b16 %v435
    %v1477 = vunpack.c.l.b16 %v436
    %v1478 = vunpack.c.h.b16 %v436
    %v1479 = vunpack.c.l.b16 %v437
    %v1480 = vunpack.c.h.b16 %v437
    %v1481 = vunpack.c.l.b16 %v438
    %v1482 = vunpack.c.h.b16 %v438
    %v1483 = vunpack.c.l.b16 %v439
    %v1484 = vunpack.c.h.b16 %v439
    %v1485 = vunpack.c.l.b16 %v440
    %v1486 = vunpack.c.h.b16 %v440
    %v1487 = vunpack.c.l.b16 %v441
    %v1488 = vunpack.c.h.b16 %v441
    %v1489 = vunpack.c.l.b16 %v442
    %v1490 = vunpack.c.h.b16 %v442
    %v1491 = vunpack.c.l.b16 %v443
    %v1492 = vunpack.c.h.b16 %v443
    %v1493 = vunpack.c.l.b16 %v444
    %v1494 = vunpack.c.h.b16 %v444
    %v1495 = vunpack.c.l.b16 %v445
    %v1496 = vunpack.c.h.b16 %v445
    %v1497 = vunpack.c.l.b16 %v446
    %v1498 = vunpack.c.h.b16 %v446
    %v1499 = vunpack.c.l.b16 %v447
    %v1500 = vunpack.c.h.b16 %v447
    %v1501 = vunpack.c.l.b16 %v448
    %v1502 = vunpack.c.h.b16 %v448
    %v1503 = vunpack.c.l.b16 %v449
    %v1504 = vunpack.c.h.b16 %v449
    %v1505 = vunpack.c.l.b16 %v450
    %v1506 = vunpack.c.h.b16 %v450
    %v1507 = vunpack.c.l.b16 %v451
    %v1508 = vunpack.c.h.b16 %v451
    %v1509 = vunpack.c.l.b16 %v452
    %v1510 = vunpack.c.h.b16 %v452
    %v1511 = vunpack.c.l.b16 %v453
    %v1512 = vunpack.c.h.b16 %v453
    %v1513 = vunpack.c.l.b16 %v454
    %v1514 = vunpack.c.h.b16 %v454
    %v1515 = vunpack.c.l.b16 %v455
    %v1516 = vunpack.c.h.b16 %v455
    %v1517 = vunpack.c.l.b16 %v456
    %v1518 = vunpack.c.h.b16 %v456
    %v1519 = vunpack.c.l.b16 %v457
    %v1520 = vunpack.c.h.b16 %v457
    %v1521 = vunpack.c.l.b16 %v458
    %v1522 = vunpack.c.h.b16 %v458
    %v1523 = vunpack.c.l.b16 %v459
    %v1524 = vunpack.c.h.b16 %v459
    %v1525 = vunpack.c.l.b16 %v460
    %v1526 = vunpack.c.h.b16 %v460
    %v1527 = vunpack.c.l.b16 %v461
    %v1528 = vunpack.c.h.b16 %v461
    %v1529 = vunpack.c.l.b16 %v462
    %v1530 = vunpack.c.h.b16 %v462
    %v1531 = vunpack.c.l.b16 %v463
    %v1532 = vunpack.c.h.b16 %v463
    %v1533 = vunpack.c.l.b16 %v464
    %v1534 = vunpack.c.h.b16 %v464
    %v1535 = vunpack.c.l.b16 %v465
    %v1536 = vunpack.c.h.b16 %v465
    %v1537 = vunpack.c.l.b16 %v466
    %v1538 = vunpack.c.h.b16 %v466
    %v1539 = vunpack.c.l.b16 %v467
    %v1540 = vunpack.c.h.b16 %v467
    %v1541 = vunpack.c.l.b16 %v468
    %v1542 = vunpack.c.h.b16 %v468
    %v1543 = vunpack.c.l.b16 %v469
    %v1544 = vunpack.c.h.b16 %v469
    %v1545 = vunpack.c.l.b16 %v470
    %v1546 = vunpack.c.h.b16 %v470
    %v1547 = vunpack.c.l.b16 %v471
    %v1548 = vunpack.c.h.b16 %v471
    %v1549 = vunpack.c.l.b16 %v472
    %v1550 = vunpack.c.h.b16 %v472
    %v1551 = vunpack.c.l.b16 %v473
    %v1552 = vunpack.c.h.b16 %v473
    %v1553 = vunpack.c.l.b16 %v474
    %v1554 = vunpack.c.h.b16 %v474
    %v1555 = vunpack.c.l.b16 %v475
    %v1556 = vunpack.c.h.b16 %v475
    %v1557 = vunpack.c.l.b16 %v476
    %v1558 = vunpack.c.h.b16 %v476
    %v1559 = vunpack.c.l.b16 %v477
    %v1560 = vunpack.c.h.b16 %v477
    %v1561 = vunpack.c.l.b16 %v478
    %v1562 = vunpack.c.h.b16 %v478
    %v1563 = vunpack.c.l.b16 %v479
    %v1564 = vunpack.c.h.b16 %v479
    %v1565 = vunpack.c.l.b16 %v480
    %v1566 = vunpack.c.h.b16 %v480
    %v1567 = vunpack.c.l.b16 %v481
    %v1568 = vunpack.c.h.b16 %v481
    %v1569 = vunpack.c.l.b16 %v482
    %v1570 = vunpack.c.h.b16 %v482
    %v1571 = vunpack.c.l.b16 %v483
    %v1572 = vunpack.c.h.b16 %v483
    %v1573 = vunpack.c.l.b16 %v484
    %v1574 = vunpack.c.h.b16 %v484
    %v1575 = vunpack.c.l.b16 %v485
    %v1576 = vunpack.c.h.b16 %v485
    %v1577 = vunpack.c.l.b16 %v486
    %v1578 = vunpack.c.h.b16 %v486
    %v1579 = vunpack.c.l.b16 %v487
    %v1580 = vunpack.c.h.b16 %v487
    %v1581 = vunpack.c.l.b16 %v488
    %v1582 = vunpack.c.h.b16 %v488
    %v1583 = vunpack.c.l.b16 %v489
    %v1584 = vunpack.c.h.b16 %v489
    %v1585 = vunpack.c.l.b16 %v490
    %v1586 = vunpack.c.h.b16 %v490
    %v1587 = vunpack.c.l.b16 %v491
    %v1588 = vunpack.c.h.b16 %v491
    %v1589 = vunpack.c.l.b16 %v492
    %v1590 = vunpack.c.h.b16 %v492
    %v1591 = vunpack.c.l.b16 %v493
    %v1592 = vunpack.c.h.b16 %v493
    %v1593 = vunpack.c.l.b16 %v494
    %v1594 = vunpack.c.h.b16 %v494
    %v1595 = vunpack.c.l.b16 %v495
    %v1596 = vunpack.c.h.b16 %v495
    %v1597 = vunpack.c.l.b16 %v496
    %v1598 = vunpack.c.h.b16 %v496
    %v1599 = vunpack.c.l.b16 %v497
    %v1600 = vunpack.c.h.b16 %v497
    %v1601 = vunpack.c.l.b16 %v498
    %v1602 = vunpack.c.h.b16 %v498
    %v1603 = vunpack.c.l.b16 %v499
    %v1604 = vunpack.c.h.b16 %v499
    %v1605 = vunpack.c.l.b16 %v500
    %v1606 = vunpack.c.h.b16 %v500
    %v1607 = vunpack.c.l.b16 %v501
    %v1608 = vunpack.c.h.b16 %v501
    %v1609 = vunpack.c.l.b16 %v502
    %v1610 = vunpack.c.h.b16 %v502
    %v1611 = vunpack.c.l.b16 %v503
    %v1612 = vunpack.c.h.b16 %v503
    %v1613 = vunpack.c.l.b16 %v504
    %v1614 = vunpack.c.h.b16 %v504
    %v1615 = vunpack.c.l.b16 %v505
    %v1616 = vunpack.c.h.b16 %v505
    %v1617 = vunpack.c.l.b16 %v506
    %v1618 = vunpack.c.h.b16 %v506
    %v1619 = vunpack.c.l.b16 %v507
    %v1620 = vunpack.c.h.b16 %v507
    %v1621 = vunpack.c.l.b16 %v508
    %v1622 = vunpack.c.h.b16 %v508
    %v1623 = vunpack.c.l.b16 %v509
    %v1624 = vunpack.c.h.b16 %v509
    %v1625 = vunpack.c.l.b16 %v510
    %v1626 = vunpack.c.h.b16 %v510
    %v1627 = vunpack.c.l.b16 %v511
    %v1628 = vunpack.c.h.b16 %v511
    %v1629 = vunpack.c.l.b16 %v512
    %v1630 = vunpack.c.h.b16 %v512
    %v1631 = vunpack.c.l.b16 %v513
    %v1632 = vunpack.c.h.b16 %v513
    %v1633 = vunpack.c.l.b16 %v514
    %v1634 = vunpack.c.h.b16 %v514
    %v1635 = vunpack.c.l.b16 %v515
    %v1636 = vunpack.c.h.b16 %v515
    %v1637 = vunpack.c.l.b16 %v516
    %v1638 = vunpack.c.h.b16 %v516
    %v1639 = vunpack.c.l.b16 %v517
    %v1640 = vunpack.c.h.b16 %v517
    %v1641 = vunpack.c.l.b16 %v518
    %v1642 = vunpack.c.h.b16 %v518
    %v1643 = vunpack.c.l.b16 %v519
    %v1644 = vunpack.c.h.b16 %v519
    %v1645 = vunpack.c.l.b16 %v520
    %v1646 = vunpack.c.h.b16 %v520
    %v1647 = vunpack.c.l.b16 %v521
    %v1648 = vunpack.c.h.b16 %v521
    %v1649 = vunpack.c.l.b16 %v522
    %v1650 = vunpack.c.h.b16 %v522
    %v1651 = vunpack.c.l.b16 %v523
    %v1652 = vunpack.c.h.b16 %v523
    %v1653 = vunpack.c.l.b16 %v524
    %v1654 = vunpack.c.h.b16 %v524
    %v1655 = vunpack.c.l.b16 %v525
    %v1656 = vunpack.c.h.b16 %v525
    %v1657 = vunpack.c.l.b16 %v526
    %v1658 = vunpack.c.h.b16 %v526
    %v1659 = vunpack.c.l.b16 %v527
    %v1660 = vunpack.c.h.b16 %v527
    %v1661 = vunpack.c.l.b16 %v528
    %v1662 = vunpack.c.h.b16 %v528
    %v1663 = vunpack.c.l.b16 %v529
    %v1664 = vunpack.c.h.b16 %v529
    %v1665 = vunpack.c.l.b16 %v530
    %v1666 = vunpack.c.h.b16 %v530
    %v1667 = vunpack.c.l.b16 %v531
    %v1668 = vunpack.c.h.b16 %v531
    %v1669 = vunpack.c.l.b16 %v532
    %v1670 = vunpack.c.h.b16 %v532
    %v1671 = vunpack.c.l.b16 %v533
    %v1672 = vunpack.c.h.b16 %v533
    %v1673 = vunpack.c.l.b16 %v534
    %v1674 = vunpack.c.h.b16 %v534
    %v1675 = vunpack.c.l.b16 %v535
    %v1676 = vunpack.c.h.b16 %v535
    %v1677 = vunpack.c.l.b16 %v536
    %v1678 = vunpack.c.h.b16 %v536
    %v1679 = vunpack.c.l.b16 %v537
    %v1680 = vunpack.c.h.b16 %v537
    %v1681 = vunpack.c.l.b16 %v538
    %v1682 = vunpack.c.h.b16 %v538
    %v1683 = vunpack.c.l.b16 %v539
    %v1684 = vunpack.c.h.b16 %v539
    %v1685 = vunpack.c.l.b16 %v540
    %v1686 = vunpack.c.h.b16 %v540
    %v1687 = vunpack.c.l.b16 %v541
    %v1688 = vunpack.c.h.b16 %v541
    %v1689 = vunpack.c.l.b16 %v542
    %v1690 = vunpack.c.h.b16 %v542
    %v1691 = vunpack.c.l.b16 %v543
    %v1692 = vunpack.c.h.b16 %v543
    %v1693 = vunpack.c.l.b16 %v544
    %v1694 = vunpack.c.h.b16 %v544
    %v1695 = vunpack.c.l.b16 %v545
    %v1696 = vunpack.c.h.b16 %v545
    %v1697 = vunpack.c.l.b16 %v546
    %v1698 = vunpack.c.h.b16 %v546
    %v1699 = vpack.c.b16 %v939, %v931
    %v1700 = vpack.c.b16 %v940, %v932
    %v1701 = vpack.c.b16 %v941, %v933
    %v1702 = vpack.c.b16 %v942, %v934
    %v1703 = vpack.c.b16 %v943, %v935
    %v1704 = vpack.c.b16 %v944, %v936
    %v1705 = vpack.c.b16 %v945, %v937
    %v1706 = vpack.c.b16 %v946, %v938
    %v1707 = vpack.c.b16 %v955, %v947
    %v1708 = vpack.c.b16 %v956, %v948
    %v1709 = vpack.c.b16 %v957, %v949
    %v1710 = vpack.c.b16 %v958, %v950
    %v1711 = vpack.c.b16 %v959, %v951
    %v1712 = vpack.c.b16 %v960, %v952
    %v1713 = vpack.c.b16 %v961, %v953
    %v1714 = vpack.c.b16 %v962, %v954
    %v1715 = vpack.c.b16 %v971, %v963
    %v1716 = vpack.c.b16 %v972, %v964
    %v1717 = vpack.c.b16 %v973, %v965
    %v1718 = vpack.c.b16 %v974, %v966
    %v1719 = vpack.c.b16 %v975, %v967
    %v1720 = vpack.c.b16 %v976, %v968
    %v1721 = vpack.c.b16 %v977, %v969
    %v1722 = vpack.c.b16 %v978, %v970
    %v1723 = vpack.c.b16 %v987, %v979
    %v1724 = vpack.c.b16 %v988, %v980
    %v1725 = vpack.c.b16 %v989, %v981
    %v1726 = vpack.c.b16 %v990, %v982
    %v1727 = vpack.c.b16 %v991, %v983
    %v1728 = vpack.c.b16 %v992, %v984
    %v1729 = vpack.c.b16 %v993, %v985
    %v1730 = vpack.c.b16 %v994, %v986
    %v1731 = vpack.c.b16 %v1003, %v995
    %v1732 = vpack.c.b16 %v1004, %v996
    %v1733 = vpack.c.b16 %v1005, %v997
    %v1734 = vpack.c.b16 %v1006, %v998
    %v1735 = vpack.c.b16 %v1007, %v999
    %v1736 = vpack.c.b16 %v1008, %v1000
    %v1737 = vpack.c.b16 %v1009, %v1001
    %v1738 = vpack.c.b16 %v1010, %v1002
    %v1739 = vpack.c.b16 %v1019, %v1011
    %v1740 = vpack.c.b16 %v1020, %v1012
    %v1741 = vpack.c.b16 %v1021, %v1013
    %v1742 = vpack.c.b16 %v1022, %v1014
    %v1743 = vpack.c.b16 %v1023, %v1015
    %v1744 = vpack.c.b16 %v1024, %v1016
    %v1745 = vpack.c.b16 %v1025, %v1017
    %v1746 = vpack.c.b16 %v1026, %v1018
    %v1747 = vpack.c.b16 %v1035, %v1027
    %v1748 = vpack.c.b16 %v1036, %v1028
    %v1749 = vpack.c.b16 %v1037, %v1029
    %v1750 = vpack.c.b16 %v1038, %v1030
    %v1751 = vpack.c.b16 %v1039, %v1031
    %v1752 = vpack.c.b16 %v1040, %v1032
    %v1753 = vpack.c.b16 %v1041, %v1033
    %v1754 = vpack.c.b16 %v1042, %v1034
    %v1755 = vpack.c.b16 %v1051, %v1043
    %v1756 = vpack.c.b16 %v1052, %v1044
    %v1757 = vpack.c.b16 %v1053, %v1045
    %v1758 = vpack.c.b16 %v1054, %v1046
    %v1759 = vpack.c.b16 %v1055, %v1047
    %v1760 = vpack.c.b16 %v1056, %v1048
    %v1761 = vpack.c.b16 %v1057, %v1049
    %v1762 = vpack.c.b16 %v1058, %v1050
    %v1763 = vpack.c.b16 %v1067, %v1059
    %v1764 = vpack.c.b16 %v1068, %v1060
    %v1765 = vpack.c.b16 %v1069, %v1061
    %v1766 = vpack.c.b16 %v1070, %v1062
    %v1767 = vpack.c.b16 %v1071, %v1063
    %v1768 = vpack.c.b16 %v1072, %v1064
    %v1769 = vpack.c.b16 %v1073, %v1065
    %v1770 = vpack.c.b16 %v1074, %v1066
    %v1771 = vpack.c.b16 %v1083, %v1075
    %v1772 = vpack.c.b16 %v1084, %v1076
    %v1773 = vpack.c.b16 %v1085, %v1077
    %v1774 = vpack.c.b16 %v1086, %v1078
    %v1775 = vpack.c.b16 %v1087, %v1079
    %v1776 = vpack.c.b16 %v1088, %v1080
    %v1777 = vpack.c.b16 %v1089, %v1081
    %v1778 = vpack.c.b16 %v1090, %v1082
    %v1779 = vpack.c.b16 %v1099, %v1091
    %v1780 = vpack.c.b16 %v1100, %v1092
    %v1781 = vpack.c.b16 %v1101, %v1093
    %v1782 = vpack.c.b16 %v1102, %v1094
    %v1783 = vpack.c.b16 %v1103, %v1095
    %v1784 = vpack.c.b16 %v1104, %v1096
    %v1785 = vpack.c.b16 %v1105, %v1097
    %v1786 = vpack.c.b16 %v1106, %v1098
    %v1787 = vpack.c.b16 %v1115, %v1107
    %v1788 = vpack.c.b16 %v1116, %v1108
    %v1789 = vpack.c.b16 %v1117, %v1109
    %v1790 = vpack.c.b16 %v1118, %v1110
    %v1791 = vpack.c.b16 %v1119, %v1111
    %v1792 = vpack.c.b16 %v1120, %v1112
    %v1793 = vpack.c.b16 %v1121, %v1113
    %v1794 = vpack.c.b16 %v1122, %v1114
    %v1795 = vpack.c.b16 %v1131, %v1123
    %v1796 = vpack.c.b16 %v1132, %v1124
    %v1797 = vpack.c.b16 %v1133, %v1125
    %v1798 = vpack.c.b16 %v1134, %v1126
    %v1799 = vpack.c.b16 %v1135, %v1127
    %v1800 = vpack.c.b16 %v1136, %v1128
    %v1801 = vpack.c.b16 %v1137, %v1129
    %v1802 = vpack.c.b16 %v1138, %v1130
    %v1803 = vpack.c.b16 %v1147, %v1139
    %v1804 = vpack.c.b16 %v1148, %v1140
    %v1805 = vpack.c.b16 %v1149, %v1141
    %v1806 = vpack.c.b16 %v1150, %v1142
    %v1807 = vpack.c.b16 %v1151, %v1143
    %v1808 = vpack.c.b16 %v1152, %v1144
    %v1809 = vpack.c.b16 %v1153, %v1145
    %v1810 = vpack.c.b16 %v1154, %v1146
    %v1811 = vpack.c.b16 %v1163, %v1155
    %v1812 = vpack.c.b16 %v1164, %v1156
    %v1813 = vpack.c.b16 %v1165, %v1157
    %v1814 = vpack.c.b16 %v1166, %v1158
    %v1815 = vpack.c.b16 %v1167, %v1159
    %v1816 = vpack.c.b16 %v1168, %v1160
    %v1817 = vpack.c.b16 %v1169, %v1161
    %v1818 = vpack.c.b16 %v1170, %v1162
    %v1819 = vpack.c.b16 %v1179, %v1171
    %v1820 = vpack.c.b16 %v1180, %v1172
    %v1821 = vpack.c.b16 %v1181, %v1173
    %v1822 = vpack.c.b16 %v1182, %v1174
    %v1823 = vpack.c.b16 %v1183, %v1175
    %v1824 = vpack.c.b16 %v1184, %v1176
    %v1825 = vpack.c.b16 %v1185, %v1177
    %v1826 = vpack.c.b16 %v1186, %v1178
    %v1827 = vpack.c.b16 %v1195, %v1187
    %v1828 = vpack.c.b16 %v1196, %v1188
    %v1829 = vpack.c.b16 %v1197, %v1189
    %v1830 = vpack.c.b16 %v1198, %v1190
    %v1831 = vpack.c.b16 %v1199, %v1191
    %v1832 = vpack.c.b16 %v1200, %v1192
    %v1833 = vpack.c.b16 %v1201, %v1193
    %v1834 = vpack.c.b16 %v1202, %v1194
    %v1835 = vpack.c.b16 %v1211, %v1203
    %v1836 = vpack.c.b16 %v1212, %v1204
    %v1837 = vpack.c.b16 %v1213, %v1205
    %v1838 = vpack.c.b16 %v1214, %v1206
    %v1839 = vpack.c.b16 %v1215, %v1207
    %v1840 = vpack.c.b16 %v1216, %v1208
    %v1841 = vpack.c.b16 %v1217, %v1209
    %v1842 = vpack.c.b16 %v1218, %v1210
    %v1843 = vpack.c.b16 %v1227, %v1219
    %v1844 = vpack.c.b16 %v1228, %v1220
    %v1845 = vpack.c.b16 %v1229, %v1221
    %v1846 = vpack.c.b16 %v1230, %v1222
    %v1847 = vpack.c.b16 %v1231, %v1223
    %v1848 = vpack.c.b16 %v1232, %v1224
    %v1849 = vpack.c.b16 %v1233, %v1225
    %v1850 = vpack.c.b16 %v1234, %v1226
    %v1851 = vpack.c.b16 %v1243, %v1235
    %v1852 = vpack.c.b16 %v1244, %v1236
    %v1853 = vpack.c.b16 %v1245, %v1237
    %v1854 = vpack.c.b16 %v1246, %v1238
    %v1855 = vpack.c.b16 %v1247, %v1239
    %v1856 = vpack.c.b16 %v1248, %v1240
    %v1857 = vpack.c.b16 %v1249, %v1241
    %v1858 = vpack.c.b16 %v1250, %v1242
    %v1859 = vpack.c.b16 %v1259, %v1251
    %v1860 = vpack.c.b16 %v1260, %v1252
    %v1861 = vpack.c.b16 %v1261, %v1253
    %v1862 = vpack.c.b16 %v1262, %v1254
    %v1863 = vpack.c.b16 %v1263, %v1255
    %v1864 = vpack.c.b16 %v1264, %v1256
    %v1865 = vpack.c.b16 %v1265, %v1257
    %v1866 = vpack.c.b16 %v1266, %v1258
    %v1867 = vpack.c.b16 %v1275, %v1267
    %v1868 = vpack.c.b16 %v1276, %v1268
    %v1869 = vpack.c.b16 %v1277, %v1269
    %v1870 = vpack.c.b16 %v1278, %v1270
    %v1871 = vpack.c.b16 %v1279, %v1271
    %v1872 = vpack.c.b16 %v1280, %v1272
    %v1873 = vpack.c.b16 %v1281, %v1273
    %v1874 = vpack.c.b16 %v1282, %v1274
    %v1875 = vpack.c.b16 %v1291, %v1283
    %v1876 = vpack.c.b16 %v1292, %v1284
    %v1877 = vpack.c.b16 %v1293, %v1285
    %v1878 = vpack.c.b16 %v1294, %v1286
    %v1879 = vpack.c.b16 %v1295, %v1287
    %v1880 = vpack.c.b16 %v1296, %v1288
    %v1881 = vpack.c.b16 %v1297, %v1289
    %v1882 = vpack.c.b16 %v1298, %v1290
    %v1883 = vpack.c.b16 %v1307, %v1299
    %v1884 = vpack.c.b16 %v1308, %v1300
    %v1885 = vpack.c.b16 %v1309, %v1301
    %v1886 = vpack.c.b16 %v1310, %v1302
    %v1887 = vpack.c.b16 %v1311, %v1303
    %v1888 = vpack.c.b16 %v1312, %v1304
    %v1889 = vpack.c.b16 %v1313, %v1305
    %v1890 = vpack.c.b16 %v1314, %v1306
    %v1891 = vpack.c.b16 %v1323, %v1315
    %v1892 = vpack.c.b16 %v1324, %v1316
    %v1893 = vpack.c.b16 %v1325, %v1317
    %v1894 = vpack.c.b16 %v1326, %v1318
    %v1895 = vpack.c.b16 %v1327, %v1319
    %v1896 = vpack.c.b16 %v1328, %v1320
    %v1897 = vpack.c.b16 %v1329, %v1321
    %v1898 = vpack.c.b16 %v1330, %v1322
    %v1899 = vpack.c.b16 %v1339, %v1331
    %v1900 = vpack.c.b16 %v1340, %v1332
    %v1901 = vpack.c.b16 %v1341, %v1333
    %v1902 = vpack.c.b16 %v1342, %v1334
    %v1903 = vpack.c.b16 %v1343, %v1335
    %v1904 = vpack.c.b16 %v1344, %v1336
    %v1905 = vpack.c.b16 %v1345, %v1337
    %v1906 = vpack.c.b16 %v1346, %v1338
    %v1907 = vpack.c.b16 %v1355, %v1347
    %v1908 = vpack.c.b16 %v1356, %v1348
    %v1909 = vpack.c.b16 %v1357, %v1349
    %v1910 = vpack.c.b16 %v1358, %v1350
    %v1911 = vpack.c.b16 %v1359, %v1351
    %v1912 = vpack.c.b16 %v1360, %v1352
    %v1913 = vpack.c.b16 %v1361, %v1353
    %v1914 = vpack.c.b16 %v1362, %v1354
    %v1915 = vpack.c.b16 %v1371, %v1363
    %v1916 = vpack.c.b16 %v1372, %v1364
    %v1917 = vpack.c.b16 %v1373, %v1365
    %v1918 = vpack.c.b16 %v1374, %v1366
    %v1919 = vpack.c.b16 %v1375, %v1367
    %v1920 = vpack.c.b16 %v1376, %v1368
    %v1921 = vpack.c.b16 %v1377, %v1369
    %v1922 = vpack.c.b16 %v1378, %v1370
    %v1923 = vpack.c.b16 %v1387, %v1379
    %v1924 = vpack.c.b16 %v1388, %v1380
    %v1925 = vpack.c.b16 %v1389, %v1381
    %v1926 = vpack.c.b16 %v1390, %v1382
    %v1927 = vpack.c.b16 %v1391, %v1383
    %v1928 = vpack.c.b16 %v1392, %v1384
    %v1929 = vpack.c.b16 %v1393, %v1385
    %v1930 = vpack.c.b16 %v1394, %v1386
    %v1931 = vpack.c.b16 %v1403, %v1395
    %v1932 = vpack.c.b16 %v1404, %v1396
    %v1933 = vpack.c.b16 %v1405, %v1397
    %v1934 = vpack.c.b16 %v1406, %v1398
    %v1935 = vpack.c.b16 %v1407, %v1399
    %v1936 = vpack.c.b16 %v1408, %v1400
    %v1937 = vpack.c.b16 %v1409, %v1401
    %v1938 = vpack.c.b16 %v1410, %v1402
    %v1939 = vpack.c.b16 %v1419, %v1411
    %v1940 = vpack.c.b16 %v1420, %v1412
    %v1941 = vpack.c.b16 %v1421, %v1413
    %v1942 = vpack.c.b16 %v1422, %v1414
    %v1943 = vpack.c.b16 %v1423, %v1415
    %v1944 = vpack.c.b16 %v1424, %v1416
    %v1945 = vpack.c.b16 %v1425, %v1417
    %v1946 = vpack.c.b16 %v1426, %v1418
    %v1947 = vpack.c.b16 %v1435, %v1427
    %v1948 = vpack.c.b16 %v1436, %v1428
    %v1949 = vpack.c.b16 %v1437, %v1429
    %v1950 = vpack.c.b16 %v1438, %v1430
    %v1951 = vpack.c.b16 %v1439, %v1431
    %v1952 = vpack.c.b16 %v1440, %v1432
    %v1953 = vpack.c.b16 %v1441, %v1433
    %v1954 = vpack.c.b16 %v1442, %v1434
    %v1955 = vpack.c.b16 %v1451, %v1443
    %v1956 = vpack.c.b16 %v1452, %v1444
    %v1957 = vpack.c.b16 %v1453, %v1445
    %v1958 = vpack.c.b16 %v1454, %v1446
    %v1959 = vpack.c.b16 %v1455, %v1447
    %v1960 = vpack.c.b16 %v1456, %v1448
    %v1961 = vpack.c.b16 %v1457, %v1449
    %v1962 = vpack.c.b16 %v1458, %v1450
    %v1963 = vpack.c.b16 %v1467, %v1459
    %v1964 = vpack.c.b16 %v1468, %v1460
    %v1965 = vpack.c.b16 %v1469, %v1461
    %v1966 = vpack.c.b16 %v1470, %v1462
    %v1967 = vpack.c.b16 %v1471, %v1463
    %v1968 = vpack.c.b16 %v1472, %v1464
    %v1969 = vpack.c.b16 %v1473, %v1465
    %v1970 = vpack.c.b16 %v1474, %v1466
    %v1971 = vpack.c.b16 %v1483, %v1475
    %v1972 = vpack.c.b16 %v1484, %v1476
    %v1973 = vpack.c.b16 %v1485, %v1477
    %v1974 = vpack.c.b16 %v1486, %v1478
    %v1975 = vpack.c.b16 %v1487, %v1479
    %v1976 = vpack.c.b16 %v1488, %v1480
    %v1977 = vpack.c.b16 %v1489, %v1481
    %v1978 = vpack.c.b16 %v1490, %v1482
    %v1979 = vpack.c.b16 %v1499, %v1491
    %v1980 = vpack.c.b16 %v1500, %v1492
    %v1981 = vpack.c.b16 %v1501, %v1493
    %v1982 = vpack.c.b16 %v1502, %v1494
    %v1983 = vpack.c.b16 %v1503, %v1495
    %v1984 = vpack.c.b16 %v1504, %v1496
    %v1985 = vpack.c.b16 %v1505, %v1497
    %v1986 = vpack.c.b16 %v1506, %v1498
    %v1987 = vpack.c.b16 %v1515, %v1507
    %v1988 = vpack.c.b16 %v1516, %v1508
    %v1989 = vpack.c.b16 %v1517, %v1509
    %v1990 = vpack.c.b16 %v1518, %v1510
    %v1991 = vpack.c.b16 %v1519, %v1511
    %v1992 = vpack.c.b16 %v1520, %v1512
    %v1993 = vpack.c.b16 %v1521, %v1513
    %v1994 = vpack.c.b16 %v1522, %v1514
    %v1995 = vpack.c.b16 %v1531, %v1523
    %v1996 = vpack.c.b16 %v1532, %v1524
    %v1997 = vpack.c.b16 %v1533, %v1525
    %v1998 = vpack.c.b16 %v1534, %v1526
    %v1999 = vpack.c.b16 %v1535, %v1527
    %v2000 = vpack.c.b16 %v1536, %v1528
    %v2001 = vpack.c.b16 %v1537, %v1529
    %v2002 = vpack.c.b16 %v1538, %v1530
    %v2003 = vpack.c.b16 %v1547, %v1539
    %v2004 = vpack.c.b16 %v1548, %v1540
    %v2005 = vpack.c.b16 %v1549, %v1541
    %v2006 = vpack.c.b16 %v1550, %v1542
    %v2007 = vpack.c.b16 %v1551, %v1543
    %v2008 = vpack.c.b16 %v1552, %v1544
    %v2009 = vpack.c.b16 %v1553, %v1545
    %v2010 = vpack.c.b16 %v1554, %v1546
    %v2011 = vpack.c.b16 %v1563, %v1555
    %v2012 = vpack.c.b16 %v1564, %v1556
    %v2013 = vpack.c.b16 %v1565, %v1557
    %v2014 = vpack.c.b16 %v1566, %v1558
    %v2015 = vpack.c.b16 %v1567, %v1559
    %v2016 = vpack.c.b16 %v1568, %v1560
    %v2017 = vpack.c.b16 %v1569, %v1561
    %v2018 = vpack.c.b16 %v1570, %v1562
    %v2019 = vpack.c.b16 %v1579, %v1571
    %v2020 = vpack.c.b16 %v1580, %v1572
    %v2021 = vpack.c.b16 %v1581, %v1573
    %v2022 = vpack.c.b16 %v1582, %v1574
    %v2023 = vpack.c.b16 %v1583, %v1575
    %v2024 = vpack.c.b16 %v1584, %v1576
    %v2025 = vpack.c.b16 %v1585, %v1577
    %v2026 = vpack.c.b16 %v1586, %v1578
    %v2027 = vpack.c.b16 %v1595, %v1587
    %v2028 = vpack.c.b16 %v1596, %v1588
    %v2029 = vpack.c.b16 %v1597, %v1589
    %v2030 = vpack.c.b16 %v1598, %v1590
    %v2031 = vpack.c.b16 %v1599, %v1591
    %v2032 = vpack.c.b16 %v1600, %v1592
    %v2033 = vpack.c.b16 %v1601, %v1593
    %v2034 = vpack.c.b16 %v1602, %v1594
    %v2035 = vpack.c.b16 %v1611, %v1603
    %v2036 = vpack.c.b16 %v1612, %v1604
    %v2037 = vpack.c.b16 %v1613, %v1605
    %v2038 = vpack.c.b16 %v1614, %v1606
    %v2039 = vpack.c.b16 %v1615, %v1607
    %v2040 = vpack.c.b16 %v1616, %v1608
    %v2041 = vpack.c.b16 %v1617, %v1609
    %v2042 = vpack.c.b16 %v1618, %v1610
    %v2043 = vpack.c.b16 %v1627, %v1619
    %v2044 = vpack.c.b16 %v1628, %v1620
    %v2045 = vpack.c.b16 %v1629, %v1621
    %v2046 = vpack.c.b16 %v1630, %v1622
    %v2047 = vpack.c.b16 %v1631, %v1623
    %v2048 = vpack.c.b16 %v1632, %v1624
    %v2049 = vpack.c.b16 %v1633, %v1625
    %v2050 = vpack.c.b16 %v1634, %v1626
    %v2051 = vpack.c.b16 %v1643, %v1635
    %v2052 = vpack.c.b16 %v1644, %v1636
    %v2053 = vpack.c.b16 %v1645, %v1637
    %v2054 = vpack.c.b16 %v1646, %v1638
    %v2055 = vpack.c.b16 %v1647, %v1639
    %v2056 = vpack.c.b16 %v1648, %v1640
    %v2057 = vpack.c.b16 %v1649, %v1641
    %v2058 = vpack.c.b16 %v1650, %v1642
    %v2059 = vpack.c.b16 %v1659, %v1651
    %v2060 = vpack.c.b16 %v1660, %v1652
    %v2061 = vpack.c.b16 %v1661, %v1653
    %v2062 = vpack.c.b16 %v1662, %v1654
    %v2063 = vpack.c.b16 %v1663, %v1655
    %v2064 = vpack.c.b16 %v1664, %v1656
    %v2065 = vpack.c.b16 %v1665, %v1657
    %v2066 = vpack.c.b16 %v1666, %v1658
    %v2067 = vpack.c.b16 %v1675, %v1667
    %v2068 = vpack.c.b16 %v1676, %v1668
    %v2069 = vpack.c.b16 %v1677, %v1669
    %v2070 = vpack.c.b16 %v1678, %v1670
    %v2071 = vpack.c.b16 %v1679, %v1671
    %v2072 = vpack.c.b16 %v1680, %v1672
    %v2073 = vpack.c.b16 %v1681, %v1673
    %v2074 = vpack.c.b16 %v1682, %v1674
    %v2075 = vpack.c.b16 %v1691, %v1683
    %v2076 = vpack.c.b16 %v1692, %v1684
    %v2077 = vpack.c.b16 %v1693, %v1685
    %v2078 = vpack.c.b16 %v1694, %v1686
    %v2079 = vpack.c.b16 %v1695, %v1687
    %v2080 = vpack.c.b16 %v1696, %v1688
    %v2081 = vpack.c.b16 %v1697, %v1689
    %v2082 = vpack.c.b16 %v1698, %v1690
    %2467 = vmatprep.subr.bf16.mxu0 %v1700
    %2468 = vmatpush1.bf16.msra.mxu0 %v1699
    %2469 = vmatprep.subr.bf16.mxu0 %v1708
    %2470 = vmatpush1.bf16.msra.mxu0 %v1707
    %2471 = vmatprep.subr.bf16.mxu0 %v1716
    %2472 = vmatpush1.bf16.msra.mxu0 %v1715
    %2473 = vmatprep.subr.bf16.mxu0 %v1724
    %2474 = vmatpush1.bf16.msra.mxu0 %v1723
    %2475 = vmatprep.subr.bf16.mxu0 %v1732
    %2476 = vmatpush1.bf16.msra.mxu0 %v1731
    %2477 = vmatprep.subr.bf16.mxu0 %v1740
    %2478 = vmatpush1.bf16.msra.mxu0 %v1739
    %2479 = vmatprep.subr.bf16.mxu0 %v1748
    %2480 = vmatpush1.bf16.msra.mxu0 %v1747
    %2481 = vmatprep.subr.bf16.mxu0 %v1756
    %2482 = vmatpush1.bf16.msra.mxu0 %v1755
    %2483 = vmatprep.subr.bf16.mxu0 %v1764
    %2484 = vmatpush1.bf16.msra.mxu0 %v1763
    %2485 = vmatprep.subr.bf16.mxu0 %v1772
    %2486 = vmatpush1.bf16.msra.mxu0 %v1771
    %2487 = vmatprep.subr.bf16.mxu0 %v1780
    %2488 = vmatpush1.bf16.msra.mxu0 %v1779
    %2489 = vmatprep.subr.bf16.mxu0 %v1788
    %2490 = vmatpush1.bf16.msra.mxu0 %v1787
    %2491 = vmatprep.subr.bf16.mxu0 %v1796
    %2492 = vmatpush1.bf16.msra.mxu0 %v1795
    %2493 = vmatprep.subr.bf16.mxu0 %v1804
    %2494 = vmatpush1.bf16.msra.mxu0 %v1803
    %2495 = vmatprep.subr.bf16.mxu0 %v1812
    %2496 = vmatpush1.bf16.msra.mxu0 %v1811
    %2497 = vmatprep.subr.bf16.mxu0 %v1820
    %2498 = vmatpush1.bf16.msra.mxu0 %v1819
    %2499 = vmatprep.mubr.bf16.mxu0 %v142
    %2500 = vmatmul.mubr.bf16.gmra.mrb[0].mxu0 %v141
    %v2501 = vpop.f32.mrb[0].mxu0
    %v2502 = vadd.f32 0.0, %v2501
    %v2503 = vpop.f32.mrb[0].mxu0
    %v2504 = vadd.f32 0.0, %v2503
    %v2505 = vpop.f32.mrb[0].mxu0
    %v2506 = vadd.f32 0.0, %v2505
    %v2507 = vpop.f32.mrb[0].mxu0
    %v2508 = vadd.f32 0.0, %v2507
    %2509 = vdwg.mxu0
    %2510 = vmatprep.subr.bf16.mxu0 %v1828
    %2511 = vmatpush1.bf16.msra.mxu0 %v1827
    %2512 = vmatprep.subr.bf16.mxu0 %v1836
    %2513 = vmatpush1.bf16.msra.mxu0 %v1835
    %2514 = vmatprep.subr.bf16.mxu0 %v1844
    %2515 = vmatpush1.bf16.msra.mxu0 %v1843
    %2516 = vmatprep.subr.bf16.mxu0 %v1852
    %2517 = vmatpush1.bf16.msra.mxu0 %v1851
    %2518 = vmatprep.subr.bf16.mxu0 %v1860
    %2519 = vmatpush1.bf16.msra.mxu0 %v1859
    %2520 = vmatprep.subr.bf16.mxu0 %v1868
    %2521 = vmatpush1.bf16.msra.mxu0 %v1867
    %2522 = vmatprep.subr.bf16.mxu0 %v1876
    %2523 = vmatpush1.bf16.msra.mxu0 %v1875
    %2524 = vmatprep.subr.bf16.mxu0 %v1884
    %2525 = vmatpush1.bf16.msra.mxu0 %v1883
    %2526 = vmatprep.subr.bf16.mxu0 %v1892
    %2527 = vmatpush1.bf16.msra.mxu0 %v1891
    %2528 = vmatprep.subr.bf16.mxu0 %v1900
    %2529 = vmatpush1.bf16.msra.mxu0 %v1899
    %2530 = vmatprep.subr.bf16.mxu0 %v1908
    %2531 = vmatpush1.bf16.msra.mxu0 %v1907
    %2532 = vmatprep.subr.bf16.mxu0 %v1916
    %2533 = vmatpush1.bf16.msra.mxu0 %v1915
    %2534 = vmatprep.subr.bf16.mxu0 %v1924
    %2535 = vmatpush1.bf16.msra.mxu0 %v1923
    %2536 = vmatprep.subr.bf16.mxu0 %v1932
    %2537 = vmatpush1.bf16.msra.mxu0 %v1931
    %2538 = vmatprep.subr.bf16.mxu0 %v1940
    %2539 = vmatpush1.bf16.msra.mxu0 %v1939
    %2540 = vmatprep.subr.bf16.mxu0 %v1948
    %2541 = vmatpush1.bf16.msra.mxu0 %v1947
    %2542 = vmatprep.mubr.bf16.mxu0 %v144
    %2543 = vmatmul.mubr.bf16.gmra.mrb[0].mxu0 %v143
    %v2544 = vpop.f32.mrb[0].mxu0
    %v2545 = vadd.f32 %v2502, %v2544
    %v2546 = vpop.f32.mrb[0].mxu0
    %v2547 = vadd.f32 %v2504, %v2546
    %v2548 = vpop.f32.mrb[0].mxu0
    %v2549 = vadd.f32 %v2506, %v2548
    %v2550 = vpop.f32.mrb[0].mxu0
    %v2551 = vadd.f32 %v2508, %v2550
    %2552 = vdwg.mxu0
    %2553 = vmatprep.subr.bf16.mxu0 %v1956
    %2554 = vmatpush1.bf16.msra.mxu0 %v1955
    %2555 = vmatprep.subr.bf16.mxu0 %v1964
    %2556 = vmatpush1.bf16.msra.mxu0 %v1963
    %2557 = vmatprep.subr.bf16.mxu0 %v1972
    %2558 = vmatpush1.bf16.msra.mxu0 %v1971
    %2559 = vmatprep.subr.bf16.mxu0 %v1980
    %2560 = vmatpush1.bf16.msra.mxu0 %v1979
    %2561 = vmatprep.subr.bf16.mxu0 %v1988
    %2562 = vmatpush1.bf16.msra.mxu0 %v1987
    %2563 = vmatprep.subr.bf16.mxu0 %v1996
    %2564 = vmatpush1.bf16.msra.mxu0 %v1995
    %2565 = vmatprep.subr.bf16.mxu0 %v2004
    %2566 = vmatpush1.bf16.msra.mxu0 %v2003
    %2567 = vmatprep.subr.bf16.mxu0 %v2012
    %2568 = vmatpush1.bf16.msra.mxu0 %v2011
    %2569 = vmatprep.subr.bf16.mxu0 %v2020
    %2570 = vmatpush1.bf16.msra.mxu0 %v2019
    %2571 = vmatprep.subr.bf16.mxu0 %v2028
    %2572 = vmatpush1.bf16.msra.mxu0 %v2027
    %2573 = vmatprep.subr.bf16.mxu0 %v2036
    %2574 = vmatpush1.bf16.msra.mxu0 %v2035
    %2575 = vmatprep.subr.bf16.mxu0 %v2044
    %2576 = vmatpush1.bf16.msra.mxu0 %v2043
    %2577 = vmatprep.subr.bf16.mxu0 %v2052
    %2578 = vmatpush1.bf16.msra.mxu0 %v2051
    %2579 = vmatprep.subr.bf16.mxu0 %v2060
    %2580 = vmatpush1.bf16.msra.mxu0 %v2059
    %2581 = vmatprep.subr.bf16.mxu0 %v2068
    %2582 = vmatpush1.bf16.msra.mxu0 %v2067
    %2583 = vmatprep.subr.bf16.mxu0 %v2076
    %2584 = vmatpush1.bf16.msra.mxu0 %v2075
    %2585 = vmatprep.mubr.bf16.mxu0 %v146
    %2586 = vmatmul.mubr.bf16.gmra.mrb[0].mxu0 %v145
    %v2587 = vpop.f32.mrb[0].mxu0
    %v2588 = vadd.f32 %v2545, %v2587
    %v2589 = vpop.f32.mrb[0].mxu0
    %v2590 = vadd.f32 %v2547, %v2589
    %v2591 = vpop.f32.mrb[0].mxu0
    %v2592 = vadd.f32 %v2549, %v2591
    %v2593 = vpop.f32.mrb[0].mxu0
    %v2594 = vadd.f32 %v2551, %v2593
    %2595 = vdwg.mxu0
    %2596 = vmatprep.subr.bf16.mxu0 %v1702
    %2597 = vmatpush1.bf16.msra.mxu0 %v1701
    %2598 = vmatprep.subr.bf16.mxu0 %v1710
    %2599 = vmatpush1.bf16.msra.mxu0 %v1709
    %2600 = vmatprep.subr.bf16.mxu0 %v1718
    %2601 = vmatpush1.bf16.msra.mxu0 %v1717
    %2602 = vmatprep.subr.bf16.mxu0 %v1726
    %2603 = vmatpush1.bf16.msra.mxu0 %v1725
    %2604 = vmatprep.subr.bf16.mxu0 %v1734
    %2605 = vmatpush1.bf16.msra.mxu0 %v1733
    %2606 = vmatprep.subr.bf16.mxu0 %v1742
    %2607 = vmatpush1.bf16.msra.mxu0 %v1741
    %2608 = vmatprep.subr.bf16.mxu0 %v1750
    %2609 = vmatpush1.bf16.msra.mxu0 %v1749
    %2610 = vmatprep.subr.bf16.mxu0 %v1758
    %2611 = vmatpush1.bf16.msra.mxu0 %v1757
    %2612 = vmatprep.subr.bf16.mxu0 %v1766
    %2613 = vmatpush1.bf16.msra.mxu0 %v1765
    %2614 = vmatprep.subr.bf16.mxu0 %v1774
    %2615 = vmatpush1.bf16.msra.mxu0 %v1773
    %2616 = vmatprep.subr.bf16.mxu0 %v1782
    %2617 = vmatpush1.bf16.msra.mxu0 %v1781
    %2618 = vmatprep.subr.bf16.mxu0 %v1790
    %2619 = vmatpush1.bf16.msra.mxu0 %v1789
    %2620 = vmatprep.subr.bf16.mxu0 %v1798
    %2621 = vmatpush1.bf16.msra.mxu0 %v1797
    %2622 = vmatprep.subr.bf16.mxu0 %v1806
    %2623 = vmatpush1.bf16.msra.mxu0 %v1805
    %2624 = vmatprep.subr.bf16.mxu0 %v1814
    %2625 = vmatpush1.bf16.msra.mxu0 %v1813
    %2626 = vmatprep.subr.bf16.mxu0 %v1822
    %2627 = vmatpush1.bf16.msra.mxu0 %v1821
    %2628 = vmatprep.mubr.bf16.mxu0 %v142
    %2629 = vmatmul.mubr.bf16.gmra.mrb[0].mxu0 %v141
    %v2630 = vpop.f32.mrb[0].mxu0
    %v2631 = vadd.f32 0.0, %v2630
    %v2632 = vpop.f32.mrb[0].mxu0
    %v2633 = vadd.f32 0.0, %v2632
    %v2634 = vpop.f32.mrb[0].mxu0
    %v2635 = vadd.f32 0.0, %v2634
    %v2636 = vpop.f32.mrb[0].mxu0
    %v2637 = vadd.f32 0.0, %v2636
    %2638 = vdwg.mxu0
    %2639 = vmatprep.subr.bf16.mxu0 %v1830
    %2640 = vmatpush1.bf16.msra.mxu0 %v1829
    %2641 = vmatprep.subr.bf16.mxu0 %v1838
    %2642 = vmatpush1.bf16.msra.mxu0 %v1837
    %2643 = vmatprep.subr.bf16.mxu0 %v1846
    %2644 = vmatpush1.bf16.msra.mxu0 %v1845
    %2645 = vmatprep.subr.bf16.mxu0 %v1854
    %2646 = vmatpush1.bf16.msra.mxu0 %v1853
    %2647 = vmatprep.subr.bf16.mxu0 %v1862
    %2648 = vmatpush1.bf16.msra.mxu0 %v1861
    %2649 = vmatprep.subr.bf16.mxu0 %v1870
    %2650 = vmatpush1.bf16.msra.mxu0 %v1869
    %2651 = vmatprep.subr.bf16.mxu0 %v1878
    %2652 = vmatpush1.bf16.msra.mxu0 %v1877
    %2653 = vmatprep.subr.bf16.mxu0 %v1886
    %2654 = vmatpush1.bf16.msra.mxu0 %v1885
    %2655 = vmatprep.subr.bf16.mxu0 %v1894
    %2656 = vmatpush1.bf16.msra.mxu0 %v1893
    %2657 = vmatprep.subr.bf16.mxu0 %v1902
    %2658 = vmatpush1.bf16.msra.mxu0 %v1901
    %2659 = vmatprep.subr.bf16.mxu0 %v1910
    %2660 = vmatpush1.bf16.msra.mxu0 %v1909
    %2661 = vmatprep.subr.bf16.mxu0 %v1918
    %2662 = vmatpush1.bf16.msra.mxu0 %v1917
    %2663 = vmatprep.subr.bf16.mxu0 %v1926
    %2664 = vmatpush1.bf16.msra.mxu0 %v1925
    %2665 = vmatprep.subr.bf16.mxu0 %v1934
    %2666 = vmatpush1.bf16.msra.mxu0 %v1933
    %2667 = vmatprep.subr.bf16.mxu0 %v1942
    %2668 = vmatpush1.bf16.msra.mxu0 %v1941
    %2669 = vmatprep.subr.bf16.mxu0 %v1950
    %2670 = vmatpush1.bf16.msra.mxu0 %v1949
    %2671 = vmatprep.mubr.bf16.mxu0 %v144
    %2672 = vmatmul.mubr.bf16.gmra.mrb[0].mxu0 %v143
    %v2673 = vpop.f32.mrb[0].mxu0
    %v2674 = vadd.f32 %v2631, %v2673
    %v2675 = vpop.f32.mrb[0].mxu0
    %v2676 = vadd.f32 %v2633, %v2675
    %v2677 = vpop.f32.mrb[0].mxu0
    %v2678 = vadd.f32 %v2635, %v2677
    %v2679 = vpop.f32.mrb[0].mxu0
    %v2680 = vadd.f32 %v2637, %v2679
    %2681 = vdwg.mxu0
    %2682 = vmatprep.subr.bf16.mxu0 %v1958
    %2683 = vmatpush1.bf16.msra.mxu0 %v1957
    %2684 = vmatprep.subr.bf16.mxu0 %v1966
    %2685 = vmatpush1.bf16.msra.mxu0 %v1965
    %2686 = vmatprep.subr.bf16.mxu0 %v1974
    %2687 = vmatpush1.bf16.msra.mxu0 %v1973
    %2688 = vmatprep.subr.bf16.mxu0 %v1982
    %2689 = vmatpush1.bf16.msra.mxu0 %v1981
    %2690 = vmatprep.subr.bf16.mxu0 %v1990
    %2691 = vmatpush1.bf16.msra.mxu0 %v1989
    %2692 = vmatprep.subr.bf16.mxu0 %v1998
    %2693 = vmatpush1.bf16.msra.mxu0 %v1997
    %2694 = vmatprep.subr.bf16.mxu0 %v2006
    %2695 = vmatpush1.bf16.msra.mxu0 %v2005
    %2696 = vmatprep.subr.bf16.mxu0 %v2014
    %2697 = vmatpush1.bf16.msra.mxu0 %v2013
    %2698 = vmatprep.subr.bf16.mxu0 %v2022
    %2699 = vmatpush1.bf16.msra.mxu0 %v2021
    %2700 = vmatprep.subr.bf16.mxu0 %v2030
    %2701 = vmatpush1.bf16.msra.mxu0 %v2029
    %2702 = vmatprep.subr.bf16.mxu0 %v2038
    %2703 = vmatpush1.bf16.msra.mxu0 %v2037
    %2704 = vmatprep.subr.bf16.mxu0 %v2046
    %2705 = vmatpush1.bf16.msra.mxu0 %v2045
    %2706 = vmatprep.subr.bf16.mxu0 %v2054
    %2707 = vmatpush1.bf16.msra.mxu0 %v2053
    %2708 = vmatprep.subr.bf16.mxu0 %v2062
    %2709 = vmatpush1.bf16.msra.mxu0 %v2061
    %2710 = vmatprep.subr.bf16.mxu0 %v2070
    %2711 = vmatpush1.bf16.msra.mxu0 %v2069
    %2712 = vmatprep.subr.bf16.mxu0 %v2078
    %2713 = vmatpush1.bf16.msra.mxu0 %v2077
    %2714 = vmatprep.mubr.bf16.mxu0 %v146
    %2715 = vmatmul.mubr.bf16.gmra.mrb[0].mxu0 %v145
    %v2716 = vpop.f32.mrb[0].mxu0
    %v2717 = vadd.f32 %v2674, %v2716
    %v2718 = vpop.f32.mrb[0].mxu0
    %v2719 = vadd.f32 %v2676, %v2718
    %v2720 = vpop.f32.mrb[0].mxu0
    %v2721 = vadd.f32 %v2678, %v2720
    %v2722 = vpop.f32.mrb[0].mxu0
    %v2723 = vadd.f32 %v2680, %v2722
    %2724 = vdwg.mxu0
    %2725 = vmatprep.subr.bf16.mxu0 %v1704
    %2726 = vmatpush1.bf16.msra.mxu0 %v1703
    %2727 = vmatprep.subr.bf16.mxu0 %v1712
    %2728 = vmatpush1.bf16.msra.mxu0 %v1711
    %2729 = vmatprep.subr.bf16.mxu0 %v1720
    %2730 = vmatpush1.bf16.msra.mxu0 %v1719
    %2731 = vmatprep.subr.bf16.mxu0 %v1728
    %2732 = vmatpush1.bf16.msra.mxu0 %v1727
    %2733 = vmatprep.subr.bf16.mxu0 %v1736
    %2734 = vmatpush1.bf16.msra.mxu0 %v1735
    %2735 = vmatprep.subr.bf16.mxu0 %v1744
    %2736 = vmatpush1.bf16.msra.mxu0 %v1743
    %2737 = vmatprep.subr.bf16.mxu0 %v1752
    %2738 = vmatpush1.bf16.msra.mxu0 %v1751
    %2739 = vmatprep.subr.bf16.mxu0 %v1760
    %2740 = vmatpush1.bf16.msra.mxu0 %v1759
    %2741 = vmatprep.subr.bf16.mxu0 %v1768
    %2742 = vmatpush1.bf16.msra.mxu0 %v1767
    %2743 = vmatprep.subr.bf16.mxu0 %v1776
    %2744 = vmatpush1.bf16.msra.mxu0 %v1775
    %2745 = vmatprep.subr.bf16.mxu0 %v1784
    %2746 = vmatpush1.bf16.msra.mxu0 %v1783
    %2747 = vmatprep.subr.bf16.mxu0 %v1792
    %2748 = vmatpush1.bf16.msra.mxu0 %v1791
    %2749 = vmatprep.subr.bf16.mxu0 %v1800
    %2750 = vmatpush1.bf16.msra.mxu0 %v1799
    %2751 = vmatprep.subr.bf16.mxu0 %v1808
    %2752 = vmatpush1.bf16.msra.mxu0 %v1807
    %2753 = vmatprep.subr.bf16.mxu0 %v1816
    %2754 = vmatpush1.bf16.msra.mxu0 %v1815
    %2755 = vmatprep.subr.bf16.mxu0 %v1824
    %2756 = vmatpush1.bf16.msra.mxu0 %v1823
    %2757 = vmatprep.mubr.bf16.mxu0 %v142
    %2758 = vmatmul.mubr.bf16.gmra.mrb[0].mxu0 %v141
    %v2759 = vpop.f32.mrb[0].mxu0
    %v2760 = vadd.f32 0.0, %v2759
    %v2761 = vpop.f32.mrb[0].mxu0
    %v2762 = vadd.f32 0.0, %v2761
    %v2763 = vpop.f32.mrb[0].mxu0
    %v2764 = vadd.f32 0.0, %v2763
    %v2765 = vpop.f32.mrb[0].mxu0
    %v2766 = vadd.f32 0.0, %v2765
    %2767 = vdwg.mxu0
    %2768 = vmatprep.subr.bf16.mxu0 %v1832
    %2769 = vmatpush1.bf16.msra.mxu0 %v1831
    %2770 = vmatprep.subr.bf16.mxu0 %v1840
    %2771 = vmatpush1.bf16.msra.mxu0 %v1839
    %2772 = vmatprep.subr.bf16.mxu0 %v1848
    %2773 = vmatpush1.bf16.msra.mxu0 %v1847
    %2774 = vmatprep.subr.bf16.mxu0 %v1856
    %2775 = vmatpush1.bf16.msra.mxu0 %v1855
    %2776 = vmatprep.subr.bf16.mxu0 %v1864
    %2777 = vmatpush1.bf16.msra.mxu0 %v1863
    %2778 = vmatprep.subr.bf16.mxu0 %v1872
    %2779 = vmatpush1.bf16.msra.mxu0 %v1871
    %2780 = vmatprep.subr.bf16.mxu0 %v1880
    %2781 = vmatpush1.bf16.msra.mxu0 %v1879
    %2782 = vmatprep.subr.bf16.mxu0 %v1888
    %2783 = vmatpush1.bf16.msra.mxu0 %v1887
    %2784 = vmatprep.subr.bf16.mxu0 %v1896
    %2785 = vmatpush1.bf16.msra.mxu0 %v1895
    %2786 = vmatprep.subr.bf16.mxu0 %v1904
    %2787 = vmatpush1.bf16.msra.mxu0 %v1903
    %2788 = vmatprep.subr.bf16.mxu0 %v1912
    %2789 = vmatpush1.bf16.msra.mxu0 %v1911
    %2790 = vmatprep.subr.bf16.mxu0 %v1920
    %2791 = vmatpush1.bf16.msra.mxu0 %v1919
    %2792 = vmatprep.subr.bf16.mxu0 %v1928
    %2793 = vmatpush1.bf16.msra.mxu0 %v1927
    %2794 = vmatprep.subr.bf16.mxu0 %v1936
    %2795 = vmatpush1.bf16.msra.mxu0 %v1935
    %2796 = vmatprep.subr.bf16.mxu0 %v1944
    %2797 = vmatpush1.bf16.msra.mxu0 %v1943
    %2798 = vmatprep.subr.bf16.mxu0 %v1952
    %2799 = vmatpush1.bf16.msra.mxu0 %v1951
    %2800 = vmatprep.mubr.bf16.mxu0 %v144
    %2801 = vmatmul.mubr.bf16.gmra.mrb[0].mxu0 %v143
    %v2802 = vpop.f32.mrb[0].mxu0
    %v2803 = vadd.f32 %v2760, %v2802
    %v2804 = vpop.f32.mrb[0].mxu0
    %v2805 = vadd.f32 %v2762, %v2804
    %v2806 = vpop.f32.mrb[0].mxu0
    %v2807 = vadd.f32 %v2764, %v2806
    %v2808 = vpop.f32.mrb[0].mxu0
    %v2809 = vadd.f32 %v2766, %v2808
    %2810 = vdwg.mxu0
    %2811 = vmatprep.subr.bf16.mxu0 %v1960
    %2812 = vmatpush1.bf16.msra.mxu0 %v1959
    %2813 = vmatprep.subr.bf16.mxu0 %v1968
    %2814 = vmatpush1.bf16.msra.mxu0 %v1967
    %2815 = vmatprep.subr.bf16.mxu0 %v1976
    %2816 = vmatpush1.bf16.msra.mxu0 %v1975
    %2817 = vmatprep.subr.bf16.mxu0 %v1984
    %2818 = vmatpush1.bf16.msra.mxu0 %v1983
    %2819 = vmatprep.subr.bf16.mxu0 %v1992
    %2820 = vmatpush1.bf16.msra.mxu0 %v1991
    %2821 = vmatprep.subr.bf16.mxu0 %v2000
    %2822 = vmatpush1.bf16.msra.mxu0 %v1999
    %2823 = vmatprep.subr.bf16.mxu0 %v2008
    %2824 = vmatpush1.bf16.msra.mxu0 %v2007
    %2825 = vmatprep.subr.bf16.mxu0 %v2016
    %2826 = vmatpush1.bf16.msra.mxu0 %v2015
    %2827 = vmatprep.subr.bf16.mxu0 %v2024
    %2828 = vmatpush1.bf16.msra.mxu0 %v2023
    %2829 = vmatprep.subr.bf16.mxu0 %v2032
    %2830 = vmatpush1.bf16.msra.mxu0 %v2031
    %2831 = vmatprep.subr.bf16.mxu0 %v2040
    %2832 = vmatpush1.bf16.msra.mxu0 %v2039
    %2833 = vmatprep.subr.bf16.mxu0 %v2048
    %2834 = vmatpush1.bf16.msra.mxu0 %v2047
    %2835 = vmatprep.subr.bf16.mxu0 %v2056
    %2836 = vmatpush1.bf16.msra.mxu0 %v2055
    %2837 = vmatprep.subr.bf16.mxu0 %v2064
    %2838 = vmatpush1.bf16.msra.mxu0 %v2063
    %2839 = vmatprep.subr.bf16.mxu0 %v2072
    %2840 = vmatpush1.bf16.msra.mxu0 %v2071
    %2841 = vmatprep.subr.bf16.mxu0 %v2080
    %2842 = vmatpush1.bf16.msra.mxu0 %v2079
    %2843 = vmatprep.mubr.bf16.mxu0 %v146
    %2844 = vmatmul.mubr.bf16.gmra.mrb[0].mxu0 %v145
    %v2845 = vpop.f32.mrb[0].mxu0
    %v2846 = vadd.f32 %v2803, %v2845
    %v2847 = vpop.f32.mrb[0].mxu0
    %v2848 = vadd.f32 %v2805, %v2847
    %v2849 = vpop.f32.mrb[0].mxu0
    %v2850 = vadd.f32 %v2807, %v2849
    %v2851 = vpop.f32.mrb[0].mxu0
    %v2852 = vadd.f32 %v2809, %v2851
    %2853 = vdwg.mxu0
    %2854 = vmatprep.subr.bf16.mxu0 %v1706
    %2855 = vmatpush1.bf16.msra.mxu0 %v1705
    %2856 = vmatprep.subr.bf16.mxu0 %v1714
    %2857 = vmatpush1.bf16.msra.mxu0 %v1713
    %2858 = vmatprep.subr.bf16.mxu0 %v1722
    %2859 = vmatpush1.bf16.msra.mxu0 %v1721
    %2860 = vmatprep.subr.bf16.mxu0 %v1730
    %2861 = vmatpush1.bf16.msra.mxu0 %v1729
    %2862 = vmatprep.subr.bf16.mxu0 %v1738
    %2863 = vmatpush1.bf16.msra.mxu0 %v1737
    %2864 = vmatprep.subr.bf16.mxu0 %v1746
    %2865 = vmatpush1.bf16.msra.mxu0 %v1745
    %2866 = vmatprep.subr.bf16.mxu0 %v1754
    %2867 = vmatpush1.bf16.msra.mxu0 %v1753
    %2868 = vmatprep.subr.bf16.mxu0 %v1762
    %2869 = vmatpush1.bf16.msra.mxu0 %v1761
    %2870 = vmatprep.subr.bf16.mxu0 %v1770
    %2871 = vmatpush1.bf16.msra.mxu0 %v1769
    %2872 = vmatprep.subr.bf16.mxu0 %v1778
    %2873 = vmatpush1.bf16.msra.mxu0 %v1777
    %2874 = vmatprep.subr.bf16.mxu0 %v1786
    %2875 = vmatpush1.bf16.msra.mxu0 %v1785
    %2876 = vmatprep.subr.bf16.mxu0 %v1794
    %2877 = vmatpush1.bf16.msra.mxu0 %v1793
    %2878 = vmatprep.subr.bf16.mxu0 %v1802
    %2879 = vmatpush1.bf16.msra.mxu0 %v1801
    %2880 = vmatprep.subr.bf16.mxu0 %v1810
    %2881 = vmatpush1.bf16.msra.mxu0 %v1809
    %2882 = vmatprep.subr.bf16.mxu0 %v1818
    %2883 = vmatpush1.bf16.msra.mxu0 %v1817
    %2884 = vmatprep.subr.bf16.mxu0 %v1826
    %2885 = vmatpush1.bf16.msra.mxu0 %v1825
    %2886 = vmatprep.mubr.bf16.mxu0 %v142
    %2887 = vmatmul.mubr.bf16.gmra.mrb[0].mxu0 %v141
    %v2888 = vpop.f32.mrb[0].mxu0
    %v2889 = vadd.f32 0.0, %v2888
    %v2890 = vpop.f32.mrb[0].mxu0
    %v2891 = vadd.f32 0.0, %v2890
    %v2892 = vpop.f32.mrb[0].mxu0
    %v2893 = vadd.f32 0.0, %v2892
    %v2894 = vpop.f32.mrb[0].mxu0
    %v2895 = vadd.f32 0.0, %v2894
    %2896 = vdwg.mxu0
    %2897 = vmatprep.subr.bf16.mxu0 %v1834
    %2898 = vmatpush1.bf16.msra.mxu0 %v1833
    %2899 = vmatprep.subr.bf16.mxu0 %v1842
    %2900 = vmatpush1.bf16.msra.mxu0 %v1841
    %2901 = vmatprep.subr.bf16.mxu0 %v1850
    %2902 = vmatpush1.bf16.msra.mxu0 %v1849
    %2903 = vmatprep.subr.bf16.mxu0 %v1858
    %2904 = vmatpush1.bf16.msra.mxu0 %v1857
    %2905 = vmatprep.subr.bf16.mxu0 %v1866
    %2906 = vmatpush1.bf16.msra.mxu0 %v1865
    %2907 = vmatprep.subr.bf16.mxu0 %v1874
    %2908 = vmatpush1.bf16.msra.mxu0 %v1873
    %2909 = vmatprep.subr.bf16.mxu0 %v1882
    %2910 = vmatpush1.bf16.msra.mxu0 %v1881
    %2911 = vmatprep.subr.bf16.mxu0 %v1890
    %2912 = vmatpush1.bf16.msra.mxu0 %v1889
    %2913 = vmatprep.subr.bf16.mxu0 %v1898
    %2914 = vmatpush1.bf16.msra.mxu0 %v1897
    %2915 = vmatprep.subr.bf16.mxu0 %v1906
    %2916 = vmatpush1.bf16.msra.mxu0 %v1905
    %2917 = vmatprep.subr.bf16.mxu0 %v1914
    %2918 = vmatpush1.bf16.msra.mxu0 %v1913
    %2919 = vmatprep.subr.bf16.mxu0 %v1922
    %2920 = vmatpush1.bf16.msra.mxu0 %v1921
    %2921 = vmatprep.subr.bf16.mxu0 %v1930
    %2922 = vmatpush1.bf16.msra.mxu0 %v1929
    %2923 = vmatprep.subr.bf16.mxu0 %v1938
    %2924 = vmatpush1.bf16.msra.mxu0 %v1937
    %2925 = vmatprep.subr.bf16.mxu0 %v1946
    %2926 = vmatpush1.bf16.msra.mxu0 %v1945
    %2927 = vmatprep.subr.bf16.mxu0 %v1954
    %2928 = vmatpush1.bf16.msra.mxu0 %v1953
    %2929 = vmatprep.mubr.bf16.mxu0 %v144
    %2930 = vmatmul.mubr.bf16.gmra.mrb[0].mxu0 %v143
    %v2931 = vpop.f32.mrb[0].mxu0
    %v2932 = vadd.f32 %v2889, %v2931
    %v2933 = vpop.f32.mrb[0].mxu0
    %v2934 = vadd.f32 %v2891, %v2933
    %v2935 = vpop.f32.mrb[0].mxu0
    %v2936 = vadd.f32 %v2893, %v2935
    %v2937 = vpop.f32.mrb[0].mxu0
    %v2938 = vadd.f32 %v2895, %v2937
    %2939 = vdwg.mxu0
    %2940 = vmatprep.subr.bf16.mxu0 %v1962
    %2941 = vmatpush1.bf16.msra.mxu0 %v1961
    %2942 = vmatprep.subr.bf16.mxu0 %v1970
    %2943 = vmatpush1.bf16.msra.mxu0 %v1969
    %2944 = vmatprep.subr.bf16.mxu0 %v1978
    %2945 = vmatpush1.bf16.msra.mxu0 %v1977
    %2946 = vmatprep.subr.bf16.mxu0 %v1986
    %2947 = vmatpush1.bf16.msra.mxu0 %v1985
    %2948 = vmatprep.subr.bf16.mxu0 %v1994
    %2949 = vmatpush1.bf16.msra.mxu0 %v1993
    %2950 = vmatprep.subr.bf16.mxu0 %v2002
    %2951 = vmatpush1.bf16.msra.mxu0 %v2001
    %2952 = vmatprep.subr.bf16.mxu0 %v2010
    %2953 = vmatpush1.bf16.msra.mxu0 %v2009
    %2954 = vmatprep.subr.bf16.mxu0 %v2018
    %2955 = vmatpush1.bf16.msra.mxu0 %v2017
    %2956 = vmatprep.subr.bf16.mxu0 %v2026
    %2957 = vmatpush1.bf16.msra.mxu0 %v2025
    %2958 = vmatprep.subr.bf16.mxu0 %v2034
    %2959 = vmatpush1.bf16.msra.mxu0 %v2033
    %2960 = vmatprep.subr.bf16.mxu0 %v2042
    %2961 = vmatpush1.bf16.msra.mxu0 %v2041
    %2962 = vmatprep.subr.bf16.mxu0 %v2050
    %2963 = vmatpush1.bf16.msra.mxu0 %v2049
    %2964 = vmatprep.subr.bf16.mxu0 %v2058
    %2965 = vmatpush1.bf16.msra.mxu0 %v2057
    %2966 = vmatprep.subr.bf16.mxu0 %v2066
    %2967 = vmatpush1.bf16.msra.mxu0 %v2065
    %2968 = vmatprep.subr.bf16.mxu0 %v2074
    %2969 = vmatpush1.bf16.msra.mxu0 %v2073
    %2970 = vmatprep.subr.bf16.mxu0 %v2082
    %2971 = vmatpush1.bf16.msra.mxu0 %v2081
    %2972 = vmatprep.mubr.bf16.mxu0 %v146
    %2973 = vmatmul.mubr.bf16.gmra.mrb[0].mxu0 %v145
    %v2974 = vpop.f32.mrb[0].mxu0
    %v2975 = vadd.f32 %v2932, %v2974
    %v2976 = vpop.f32.mrb[0].mxu0
    %v2977 = vadd.f32 %v2934, %v2976
    %v2978 = vpop.f32.mrb[0].mxu0
    %v2979 = vadd.f32 %v2936, %v2978
    %v2980 = vpop.f32.mrb[0].mxu0
    %v2981 = vadd.f32 %v2938, %v2980
    %2982 = vdwg.mxu0
    %v2983 = vadd.f32 %v147, %v2588
    %v2984 = vadd.f32 %v148, %v2590
    %v2985 = vadd.f32 %v149, %v2717
    %v2986 = vadd.f32 %v150, %v2719
    %v2987 = vadd.f32 %v151, %v2846
    %v2988 = vadd.f32 %v152, %v2848
    %v2989 = vadd.f32 %v153, %v2975
    %v2990 = vadd.f32 %v154, %v2977
    %v2991 = vadd.f32 %v155, %v2592
    %v2992 = vadd.f32 %v156, %v2594
    %v2993 = vadd.f32 %v157, %v2721
    %v2994 = vadd.f32 %v158, %v2723
    %v2995 = vadd.f32 %v159, %v2850
    %v2996 = vadd.f32 %v160, %v2852
    %v2997 = vadd.f32 %v161, %v2979
    %v2998 = vadd.f32 %v162, %v2981
    %2999 = vst [vmem:[#allocation2] sm:$0xff] %v2983
    %3000 = vst [vmem:[#allocation2 + $0x8] sm:$0xff] %v2984
    %3001 = vst [vmem:[#allocation2 + $0x10] sm:$0xff] %v2985
    %3002 = vst [vmem:[#allocation2 + $0x18] sm:$0xff] %v2986
    %3003 = vst [vmem:[#allocation2 + $0x20] sm:$0xff] %v2987
    %3004 = vst [vmem:[#allocation2 + $0x28] sm:$0xff] %v2988
    %3005 = vst [vmem:[#allocation2 + $0x30] sm:$0xff] %v2989
    %3006 = vst [vmem:[#allocation2 + $0x38] sm:$0xff] %v2990
    %3007 = vst [vmem:[#allocation2 + $0x40] sm:$0xff] %v2991
    %3008 = vst [vmem:[#allocation2 + $0x48] sm:$0xff] %v2992
    %3009 = vst [vmem:[#allocation2 + $0x50] sm:$0xff] %v2993
    %3010 = vst [vmem:[#allocation2 + $0x58] sm:$0xff] %v2994
    %3011 = vst [vmem:[#allocation2 + $0x60] sm:$0xff] %v2995
    %3012 = vst [vmem:[#allocation2 + $0x68] sm:$0xff] %v2996
    %3013 = vst [vmem:[#allocation2 + $0x70] sm:$0xff] %v2997
    %3014 = vst [vmem:[#allocation2 + $0x78] sm:$0xff] %v2998
    // Predicated region
    $region66: #{_discriminator_forward_impl.1} parent=1 // pred_check
      %p3015 = pneg %p109
    $region67: #{_discriminator_forward_impl.1} parent=1 // pred_check_branch
      %3017 = sbr.rel (%p3015) target = $region69
    $region68: #{_discriminator_forward_impl.1} parent=1 // pred_region
      %v3018 = vld [vmem:[#allocation2] sm:$0xff]
      %v3019 = vld [vmem:[#allocation2 + $0x8] sm:$0xff]
      %v3020 = vld [vmem:[#allocation2 + $0x10] sm:$0xff]
      %v3021 = vld [vmem:[#allocation2 + $0x18] sm:$0xff]
      %v3022 = vld [vmem:[#allocation2 + $0x20] sm:$0xff]
      %v3023 = vld [vmem:[#allocation2 + $0x28] sm:$0xff]
      %v3024 = vld [vmem:[#allocation2 + $0x30] sm:$0xff]
      %v3025 = vld [vmem:[#allocation2 + $0x38] sm:$0xff]
      %v3026 = vld [vmem:[#allocation2 + $0x40] sm:$0xff]
      %v3027 = vld [vmem:[#allocation2 + $0x48] sm:$0xff]
      %v3028 = vld [vmem:[#allocation2 + $0x50] sm:$0xff]
      %v3029 = vld [vmem:[#allocation2 + $0x58] sm:$0xff]
      %v3030 = vld [vmem:[#allocation2 + $0x60] sm:$0xff]
      %v3031 = vld [vmem:[#allocation2 + $0x68] sm:$0xff]
      %v3032 = vld [vmem:[#allocation2 + $0x70] sm:$0xff]
      %v3033 = vld [vmem:[#allocation2 + $0x78] sm:$0xff]
      %v3034 = vld [vmem:[#allocation5] sm:$0xff]
      %v3036 = vlaneseq
      %v3037 = vshrl.u32 %v3036, 7
      %v3038 = vsub.s32 0, %v3037
      %v3039 = vrot.slane %v3034, %v3038
      %v3040 = vlaneseq
      %v3041 = vshrl.u32 %v3040, 7
      %v3042 = vsub.s32 1, %v3041
      %v3043 = vrot.slane %v3034, %v3042
      %v3044 = vlaneseq
      %v3045 = vshrl.u32 %v3044, 7
      %v3046 = vsub.s32 2, %v3045
      %v3047 = vrot.slane %v3034, %v3046
      %v3048 = vlaneseq
      %v3049 = vshrl.u32 %v3048, 7
      %v3050 = vsub.s32 3, %v3049
      %v3051 = vrot.slane %v3034, %v3050
      %v3052 = vlaneseq
      %v3053 = vshrl.u32 %v3052, 7
      %v3054 = vsub.s32 4, %v3053
      %v3055 = vrot.slane %v3034, %v3054
      %v3056 = vlaneseq
      %v3057 = vshrl.u32 %v3056, 7
      %v3058 = vsub.s32 5, %v3057
      %v3059 = vrot.slane %v3034, %v3058
      %v3060 = vlaneseq
      %v3061 = vshrl.u32 %v3060, 7
      %v3062 = vsub.s32 6, %v3061
      %v3063 = vrot.slane %v3034, %v3062
      %v3064 = vlaneseq
      %v3065 = vshrl.u32 %v3064, 7
      %v3066 = vsub.s32 7, %v3065
      %v3067 = vrot.slane %v3034, %v3066
      %v3076 = vadd.f32 %v3018, %v3039
      %v3077 = vadd.f32 %v3019, %v3043
      %v3078 = vadd.f32 %v3020, %v3047
      %v3079 = vadd.f32 %v3021, %v3051
      %v3080 = vadd.f32 %v3022, %v3055
      %v3081 = vadd.f32 %v3023, %v3059
      %v3082 = vadd.f32 %v3024, %v3063
      %v3083 = vadd.f32 %v3025, %v3067
      %v3084 = vadd.f32 %v3026, %v3039
      %v3085 = vadd.f32 %v3027, %v3043
      %v3086 = vadd.f32 %v3028, %v3047
      %v3087 = vadd.f32 %v3029, %v3051
      %v3088 = vadd.f32 %v3030, %v3055
      %v3089 = vadd.f32 %v3031, %v3059
      %v3090 = vadd.f32 %v3032, %v3063
      %v3091 = vadd.f32 %v3033, %v3067
      %vm3092 = vcmp.gt.f32.partialorder %v3076, 0.0
      %vm3093 = vcmp.gt.f32.partialorder %v3077, 0.0
      %vm3094 = vcmp.gt.f32.partialorder %v3078, 0.0
      %vm3095 = vcmp.gt.f32.partialorder %v3079, 0.0
      %vm3096 = vcmp.gt.f32.partialorder %v3080, 0.0
      %vm3097 = vcmp.gt.f32.partialorder %v3081, 0.0
      %vm3098 = vcmp.gt.f32.partialorder %v3082, 0.0
      %vm3099 = vcmp.gt.f32.partialorder %v3083, 0.0
      %vm3100 = vcmp.gt.f32.partialorder %v3084, 0.0
      %vm3101 = vcmp.gt.f32.partialorder %v3085, 0.0
      %vm3102 = vcmp.gt.f32.partialorder %v3086, 0.0
      %vm3103 = vcmp.gt.f32.partialorder %v3087, 0.0
      %vm3104 = vcmp.gt.f32.partialorder %v3088, 0.0
      %vm3105 = vcmp.gt.f32.partialorder %v3089, 0.0
      %vm3106 = vcmp.gt.f32.partialorder %v3090, 0.0
      %vm3107 = vcmp.gt.f32.partialorder %v3091, 0.0
      %v3108 = vmul.f32 %v3076, 0.01
      %v3109 = vmul.f32 %v3077, 0.01
      %v3110 = vmul.f32 %v3078, 0.01
      %v3111 = vmul.f32 %v3079, 0.01
      %v3112 = vmul.f32 %v3080, 0.01
      %v3113 = vmul.f32 %v3081, 0.01
      %v3114 = vmul.f32 %v3082, 0.01
      %v3115 = vmul.f32 %v3083, 0.01
      %v3116 = vmul.f32 %v3084, 0.01
      %v3117 = vmul.f32 %v3085, 0.01
      %v3118 = vmul.f32 %v3086, 0.01
      %v3119 = vmul.f32 %v3087, 0.01
      %v3120 = vmul.f32 %v3088, 0.01
      %v3121 = vmul.f32 %v3089, 0.01
      %v3122 = vmul.f32 %v3090, 0.01
      %v3123 = vmul.f32 %v3091, 0.01
      %v3124 = vsel %vm3092, %v3076, %v3108
      %v3125 = vsel %vm3093, %v3077, %v3109
      %v3126 = vsel %vm3094, %v3078, %v3110
      %v3127 = vsel %vm3095, %v3079, %v3111
      %v3128 = vsel %vm3096, %v3080, %v3112
      %v3129 = vsel %vm3097, %v3081, %v3113
      %v3130 = vsel %vm3098, %v3082, %v3114
      %v3131 = vsel %vm3099, %v3083, %v3115
      %v3132 = vsel %vm3100, %v3084, %v3116
      %v3133 = vsel %vm3101, %v3085, %v3117
      %v3134 = vsel %vm3102, %v3086, %v3118
      %v3135 = vsel %vm3103, %v3087, %v3119
      %v3136 = vsel %vm3104, %v3088, %v3120
      %v3137 = vsel %vm3105, %v3089, %v3121
      %v3138 = vsel %vm3106, %v3090, %v3122
      %v3139 = vsel %vm3107, %v3091, %v3123
      %v3140 = vpack.c.bf16 %v3132, %v3124
      %v3141 = vpack.c.bf16 %v3133, %v3125
      %v3142 = vpack.c.bf16 %v3134, %v3126
      %v3143 = vpack.c.bf16 %v3135, %v3127
      %v3144 = vpack.c.bf16 %v3136, %v3128
      %v3145 = vpack.c.bf16 %v3137, %v3129
      %v3146 = vpack.c.bf16 %v3138, %v3130
      %v3147 = vpack.c.bf16 %v3139, %v3131
      %v3148 = vld [vmem:[#allocation7] sm:$0xff]
      %v3149 = vld [vmem:[#allocation7 + $0x8] sm:$0xff]
      %v3150 = vld [vmem:[#allocation7 + $0x10] sm:$0xff]
      %v3151 = vld [vmem:[#allocation7 + $0x18] sm:$0xff]
      %v3152 = vld [vmem:[#allocation7 + $0x20] sm:$0xff]
      %v3153 = vld [vmem:[#allocation7 + $0x28] sm:$0xff]
      %v3154 = vld [vmem:[#allocation7 + $0x30] sm:$0xff]
      %v3155 = vld [vmem:[#allocation7 + $0x38] sm:$0xff]
      %v3156 = vld [vmem:[#allocation7 + $0x40] sm:$0xff]
      %v3157 = vld [vmem:[#allocation7 + $0x48] sm:$0xff]
      %v3158 = vld [vmem:[#allocation7 + $0x50] sm:$0xff]
      %v3159 = vld [vmem:[#allocation7 + $0x58] sm:$0xff]
      %v3160 = vld [vmem:[#allocation7 + $0x60] sm:$0xff]
      %v3161 = vld [vmem:[#allocation7 + $0x68] sm:$0xff]
      %v3162 = vld [vmem:[#allocation7 + $0x70] sm:$0xff]
      %v3163 = vld [vmem:[#allocation7 + $0x78] sm:$0xff]
      %v3164 = vld [vmem:[#allocation7 + $0x80] sm:$0xff]
      %v3165 = vld [vmem:[#allocation7 + $0x88] sm:$0xff]
      %v3166 = vld [vmem:[#allocation7 + $0x90] sm:$0xff]
      %v3167 = vld [vmem:[#allocation7 + $0x98] sm:$0xff]
      %v3168 = vld [vmem:[#allocation7 + $0xa0] sm:$0xff]
      %v3169 = vld [vmem:[#allocation7 + $0xa8] sm:$0xff]
      %v3170 = vld [vmem:[#allocation7 + $0xb0] sm:$0xff]
      %v3171 = vld [vmem:[#allocation7 + $0xb8] sm:$0xff]
      %v3172 = vld [vmem:[#allocation7 + $0xc0] sm:$0xff]
      %v3173 = vld [vmem:[#allocation7 + $0xc8] sm:$0xff]
      %v3174 = vld [vmem:[#allocation7 + $0xd0] sm:$0xff]
      %v3175 = vld [vmem:[#allocation7 + $0xd8] sm:$0xff]
      %v3176 = vld [vmem:[#allocation7 + $0xe0] sm:$0xff]
      %v3177 = vld [vmem:[#allocation7 + $0xe8] sm:$0xff]
      %v3178 = vld [vmem:[#allocation7 + $0xf0] sm:$0xff]
      %v3179 = vld [vmem:[#allocation7 + $0xf8] sm:$0xff]
      %v3180 = vld [vmem:[#allocation7 + $0x100] sm:$0xff]
      %v3181 = vld [vmem:[#allocation7 + $0x108] sm:$0xff]
      %v3182 = vld [vmem:[#allocation7 + $0x110] sm:$0xff]
      %v3183 = vld [vmem:[#allocation7 + $0x118] sm:$0xff]
      %v3184 = vld [vmem:[#allocation7 + $0x120] sm:$0xff]
      %v3185 = vld [vmem:[#allocation7 + $0x128] sm:$0xff]
      %v3186 = vld [vmem:[#allocation7 + $0x130] sm:$0xff]
      %v3187 = vld [vmem:[#allocation7 + $0x138] sm:$0xff]
      %v3188 = vld [vmem:[#allocation7 + $0x140] sm:$0xff]
      %v3189 = vld [vmem:[#allocation7 + $0x148] sm:$0xff]
      %v3190 = vld [vmem:[#allocation7 + $0x150] sm:$0xff]
      %v3191 = vld [vmem:[#allocation7 + $0x158] sm:$0xff]
      %v3192 = vld [vmem:[#allocation7 + $0x160] sm:$0xff]
      %v3193 = vld [vmem:[#allocation7 + $0x168] sm:$0xff]
      %v3194 = vld [vmem:[#allocation7 + $0x170] sm:$0xff]
      %v3195 = vld [vmem:[#allocation7 + $0x178] sm:$0xff]
      %v3196 = vld [vmem:[#allocation7 + $0x180] sm:$0xff]
      %v3197 = vld [vmem:[#allocation7 + $0x188] sm:$0xff]
      %v3198 = vld [vmem:[#allocation7 + $0x190] sm:$0xff]
      %v3199 = vld [vmem:[#allocation7 + $0x198] sm:$0xff]
      %v3200 = vld [vmem:[#allocation7 + $0x1a0] sm:$0xff]
      %v3201 = vld [vmem:[#allocation7 + $0x1a8] sm:$0xff]
      %v3202 = vld [vmem:[#allocation7 + $0x1b0] sm:$0xff]
      %v3203 = vld [vmem:[#allocation7 + $0x1b8] sm:$0xff]
      %v3204 = vld [vmem:[#allocation7 + $0x1c0] sm:$0xff]
      %v3205 = vld [vmem:[#allocation7 + $0x1c8] sm:$0xff]
      %v3206 = vld [vmem:[#allocation7 + $0x1d0] sm:$0xff]
      %v3207 = vld [vmem:[#allocation7 + $0x1d8] sm:$0xff]
      %v3208 = vld [vmem:[#allocation7 + $0x1e0] sm:$0xff]
      %v3209 = vld [vmem:[#allocation7 + $0x1e8] sm:$0xff]
      %v3210 = vld [vmem:[#allocation7 + $0x1f0] sm:$0xff]
      %v3211 = vld [vmem:[#allocation7 + $0x1f8] sm:$0xff]
      %v3212 = vld [vmem:[#allocation7 + $0x200] sm:$0xff]
      %v3213 = vld [vmem:[#allocation7 + $0x208] sm:$0xff]
      %v3214 = vld [vmem:[#allocation7 + $0x210] sm:$0xff]
      %v3215 = vld [vmem:[#allocation7 + $0x218] sm:$0xff]
      %v3216 = vld [vmem:[#allocation7 + $0x220] sm:$0xff]
      %v3217 = vld [vmem:[#allocation7 + $0x228] sm:$0xff]
      %v3218 = vld [vmem:[#allocation7 + $0x230] sm:$0xff]
      %v3219 = vld [vmem:[#allocation7 + $0x238] sm:$0xff]
      %v3220 = vld [vmem:[#allocation7 + $0x240] sm:$0xff]
      %v3221 = vld [vmem:[#allocation7 + $0x248] sm:$0xff]
      %v3222 = vld [vmem:[#allocation7 + $0x250] sm:$0xff]
      %v3223 = vld [vmem:[#allocation7 + $0x258] sm:$0xff]
      %v3224 = vld [vmem:[#allocation7 + $0x260] sm:$0xff]
      %v3225 = vld [vmem:[#allocation7 + $0x268] sm:$0xff]
      %v3226 = vld [vmem:[#allocation7 + $0x270] sm:$0xff]
      %v3227 = vld [vmem:[#allocation7 + $0x278] sm:$0xff]
      %v3228 = vld [vmem:[#allocation7 + $0x280] sm:$0xff]
      %v3229 = vld [vmem:[#allocation7 + $0x288] sm:$0xff]
      %v3230 = vld [vmem:[#allocation7 + $0x290] sm:$0xff]
      %v3231 = vld [vmem:[#allocation7 + $0x298] sm:$0xff]
      %v3232 = vld [vmem:[#allocation7 + $0x2a0] sm:$0xff]
      %v3233 = vld [vmem:[#allocation7 + $0x2a8] sm:$0xff]
      %v3234 = vld [vmem:[#allocation7 + $0x2b0] sm:$0xff]
      %v3235 = vld [vmem:[#allocation7 + $0x2b8] sm:$0xff]
      %v3236 = vld [vmem:[#allocation7 + $0x2c0] sm:$0xff]
      %v3237 = vld [vmem:[#allocation7 + $0x2c8] sm:$0xff]
      %v3238 = vld [vmem:[#allocation7 + $0x2d0] sm:$0xff]
      %v3239 = vld [vmem:[#allocation7 + $0x2d8] sm:$0xff]
      %v3240 = vld [vmem:[#allocation7 + $0x2e0] sm:$0xff]
      %v3241 = vld [vmem:[#allocation7 + $0x2e8] sm:$0xff]
      %v3242 = vld [vmem:[#allocation7 + $0x2f0] sm:$0xff]
      %v3243 = vld [vmem:[#allocation7 + $0x2f8] sm:$0xff]
      %v3244 = vld [vmem:[#allocation7 + $0x300] sm:$0xff]
      %v3245 = vld [vmem:[#allocation7 + $0x308] sm:$0xff]
      %v3246 = vld [vmem:[#allocation7 + $0x310] sm:$0xff]
      %v3247 = vld [vmem:[#allocation7 + $0x318] sm:$0xff]
      %v3248 = vld [vmem:[#allocation7 + $0x320] sm:$0xff]
      %v3249 = vld [vmem:[#allocation7 + $0x328] sm:$0xff]
      %v3250 = vld [vmem:[#allocation7 + $0x330] sm:$0xff]
      %v3251 = vld [vmem:[#allocation7 + $0x338] sm:$0xff]
      %v3252 = vld [vmem:[#allocation7 + $0x340] sm:$0xff]
      %v3253 = vld [vmem:[#allocation7 + $0x348] sm:$0xff]
      %v3254 = vld [vmem:[#allocation7 + $0x350] sm:$0xff]
      %v3255 = vld [vmem:[#allocation7 + $0x358] sm:$0xff]
      %v3256 = vld [vmem:[#allocation7 + $0x360] sm:$0xff]
      %v3257 = vld [vmem:[#allocation7 + $0x368] sm:$0xff]
      %v3258 = vld [vmem:[#allocation7 + $0x370] sm:$0xff]
      %v3259 = vld [vmem:[#allocation7 + $0x378] sm:$0xff]
      %v3260 = vld [vmem:[#allocation7 + $0x380] sm:$0xff]
      %v3261 = vld [vmem:[#allocation7 + $0x388] sm:$0xff]
      %v3262 = vld [vmem:[#allocation7 + $0x390] sm:$0xff]
      %v3263 = vld [vmem:[#allocation7 + $0x398] sm:$0xff]
      %v3264 = vld [vmem:[#allocation7 + $0x3a0] sm:$0xff]
      %v3265 = vld [vmem:[#allocation7 + $0x3a8] sm:$0xff]
      %v3266 = vld [vmem:[#allocation7 + $0x3b0] sm:$0xff]
      %v3267 = vld [vmem:[#allocation7 + $0x3b8] sm:$0xff]
      %v3268 = vld [vmem:[#allocation7 + $0x3c0] sm:$0xff]
      %v3269 = vld [vmem:[#allocation7 + $0x3c8] sm:$0xff]
      %v3270 = vld [vmem:[#allocation7 + $0x3d0] sm:$0xff]
      %v3271 = vld [vmem:[#allocation7 + $0x3d8] sm:$0xff]
      %v3272 = vld [vmem:[#allocation7 + $0x3e0] sm:$0xff]
      %v3273 = vld [vmem:[#allocation7 + $0x3e8] sm:$0xff]
      %v3274 = vld [vmem:[#allocation7 + $0x3f0] sm:$0xff]
      %v3275 = vld [vmem:[#allocation7 + $0x3f8] sm:$0xff]
      %v3276 = vld [vmem:[#allocation7 + $0x400] sm:$0xff]
      %v3277 = vld [vmem:[#allocation7 + $0x408] sm:$0xff]
      %v3278 = vld [vmem:[#allocation7 + $0x410] sm:$0xff]
      %v3279 = vld [vmem:[#allocation7 + $0x418] sm:$0xff]
      %v3280 = vld [vmem:[#allocation7 + $0x420] sm:$0xff]
      %v3281 = vld [vmem:[#allocation7 + $0x428] sm:$0xff]
      %v3282 = vld [vmem:[#allocation7 + $0x430] sm:$0xff]
      %v3283 = vld [vmem:[#allocation7 + $0x438] sm:$0xff]
      %v3284 = vld [vmem:[#allocation7 + $0x440] sm:$0xff]
      %v3285 = vld [vmem:[#allocation7 + $0x448] sm:$0xff]
      %v3286 = vld [vmem:[#allocation7 + $0x450] sm:$0xff]
      %v3287 = vld [vmem:[#allocation7 + $0x458] sm:$0xff]
      %v3288 = vld [vmem:[#allocation7 + $0x460] sm:$0xff]
      %v3289 = vld [vmem:[#allocation7 + $0x468] sm:$0xff]
      %v3290 = vld [vmem:[#allocation7 + $0x470] sm:$0xff]
      %v3291 = vld [vmem:[#allocation7 + $0x478] sm:$0xff]
      %v3292 = vld [vmem:[#allocation7 + $0x480] sm:$0xff]
      %v3293 = vld [vmem:[#allocation7 + $0x488] sm:$0xff]
      %v3294 = vld [vmem:[#allocation7 + $0x490] sm:$0xff]
      %v3295 = vld [vmem:[#allocation7 + $0x498] sm:$0xff]
      %v3296 = vld [vmem:[#allocation7 + $0x4a0] sm:$0xff]
      %v3297 = vld [vmem:[#allocation7 + $0x4a8] sm:$0xff]
      %v3298 = vld [vmem:[#allocation7 + $0x4b0] sm:$0xff]
      %v3299 = vld [vmem:[#allocation7 + $0x4b8] sm:$0xff]
      %v3300 = vld [vmem:[#allocation7 + $0x4c0] sm:$0xff]
      %v3301 = vld [vmem:[#allocation7 + $0x4c8] sm:$0xff]
      %v3302 = vld [vmem:[#allocation7 + $0x4d0] sm:$0xff]
      %v3303 = vld [vmem:[#allocation7 + $0x4d8] sm:$0xff]
      %v3304 = vld [vmem:[#allocation7 + $0x4e0] sm:$0xff]
      %v3305 = vld [vmem:[#allocation7 + $0x4e8] sm:$0xff]
      %v3306 = vld [vmem:[#allocation7 + $0x4f0] sm:$0xff]
      %v3307 = vld [vmem:[#allocation7 + $0x4f8] sm:$0xff]
      %v3308 = vld [vmem:[#allocation7 + $0x500] sm:$0xff]
      %v3309 = vld [vmem:[#allocation7 + $0x508] sm:$0xff]
      %v3310 = vld [vmem:[#allocation7 + $0x510] sm:$0xff]
      %v3311 = vld [vmem:[#allocation7 + $0x518] sm:$0xff]
      %v3312 = vld [vmem:[#allocation7 + $0x520] sm:$0xff]
      %v3313 = vld [vmem:[#allocation7 + $0x528] sm:$0xff]
      %v3314 = vld [vmem:[#allocation7 + $0x530] sm:$0xff]
      %v3315 = vld [vmem:[#allocation7 + $0x538] sm:$0xff]
      %v3316 = vld [vmem:[#allocation7 + $0x540] sm:$0xff]
      %v3317 = vld [vmem:[#allocation7 + $0x548] sm:$0xff]
      %v3318 = vld [vmem:[#allocation7 + $0x550] sm:$0xff]
      %v3319 = vld [vmem:[#allocation7 + $0x558] sm:$0xff]
      %v3320 = vld [vmem:[#allocation7 + $0x560] sm:$0xff]
      %v3321 = vld [vmem:[#allocation7 + $0x568] sm:$0xff]
      %v3322 = vld [vmem:[#allocation7 + $0x570] sm:$0xff]
      %v3323 = vld [vmem:[#allocation7 + $0x578] sm:$0xff]
      %v3324 = vld [vmem:[#allocation7 + $0x580] sm:$0xff]
      %v3325 = vld [vmem:[#allocation7 + $0x588] sm:$0xff]
      %v3326 = vld [vmem:[#allocation7 + $0x590] sm:$0xff]
      %v3327 = vld [vmem:[#allocation7 + $0x598] sm:$0xff]
      %v3328 = vld [vmem:[#allocation7 + $0x5a0] sm:$0xff]
      %v3329 = vld [vmem:[#allocation7 + $0x5a8] sm:$0xff]
      %v3330 = vld [vmem:[#allocation7 + $0x5b0] sm:$0xff]
      %v3331 = vld [vmem:[#allocation7 + $0x5b8] sm:$0xff]
      %v3332 = vld [vmem:[#allocation7 + $0x5c0] sm:$0xff]
      %v3333 = vld [vmem:[#allocation7 + $0x5c8] sm:$0xff]
      %v3334 = vld [vmem:[#allocation7 + $0x5d0] sm:$0xff]
      %v3335 = vld [vmem:[#allocation7 + $0x5d8] sm:$0xff]
      %v3336 = vld [vmem:[#allocation7 + $0x5e0] sm:$0xff]
      %v3337 = vld [vmem:[#allocation7 + $0x5e8] sm:$0xff]
      %v3338 = vld [vmem:[#allocation7 + $0x5f0] sm:$0xff]
      %v3339 = vld [vmem:[#allocation7 + $0x5f8] sm:$0xff]
      %v3340 = vld [vmem:[#allocation7 + $0x600] sm:$0xff]
      %v3341 = vld [vmem:[#allocation7 + $0x608] sm:$0xff]
      %v3342 = vld [vmem:[#allocation7 + $0x610] sm:$0xff]
      %v3343 = vld [vmem:[#allocation7 + $0x618] sm:$0xff]
      %v3344 = vld [vmem:[#allocation7 + $0x620] sm:$0xff]
      %v3345 = vld [vmem:[#allocation7 + $0x628] sm:$0xff]
      %v3346 = vld [vmem:[#allocation7 + $0x630] sm:$0xff]
      %v3347 = vld [vmem:[#allocation7 + $0x638] sm:$0xff]
      %v3348 = vld [vmem:[#allocation7 + $0x640] sm:$0xff]
      %v3349 = vld [vmem:[#allocation7 + $0x648] sm:$0xff]
      %v3350 = vld [vmem:[#allocation7 + $0x650] sm:$0xff]
      %v3351 = vld [vmem:[#allocation7 + $0x658] sm:$0xff]
      %v3352 = vld [vmem:[#allocation7 + $0x660] sm:$0xff]
      %v3353 = vld [vmem:[#allocation7 + $0x668] sm:$0xff]
      %v3354 = vld [vmem:[#allocation7 + $0x670] sm:$0xff]
      %v3355 = vld [vmem:[#allocation7 + $0x678] sm:$0xff]
      %v3356 = vld [vmem:[#allocation7 + $0x680] sm:$0xff]
      %v3357 = vld [vmem:[#allocation7 + $0x688] sm:$0xff]
      %v3358 = vld [vmem:[#allocation7 + $0x690] sm:$0xff]
      %v3359 = vld [vmem:[#allocation7 + $0x698] sm:$0xff]
      %v3360 = vld [vmem:[#allocation7 + $0x6a0] sm:$0xff]
      %v3361 = vld [vmem:[#allocation7 + $0x6a8] sm:$0xff]
      %v3362 = vld [vmem:[#allocation7 + $0x6b0] sm:$0xff]
      %v3363 = vld [vmem:[#allocation7 + $0x6b8] sm:$0xff]
      %v3364 = vld [vmem:[#allocation7 + $0x6c0] sm:$0xff]
      %v3365 = vld [vmem:[#allocation7 + $0x6c8] sm:$0xff]
      %v3366 = vld [vmem:[#allocation7 + $0x6d0] sm:$0xff]
      %v3367 = vld [vmem:[#allocation7 + $0x6d8] sm:$0xff]
      %v3368 = vld [vmem:[#allocation7 + $0x6e0] sm:$0xff]
      %v3369 = vld [vmem:[#allocation7 + $0x6e8] sm:$0xff]
      %v3370 = vld [vmem:[#allocation7 + $0x6f0] sm:$0xff]
      %v3371 = vld [vmem:[#allocation7 + $0x6f8] sm:$0xff]
      %v3372 = vld [vmem:[#allocation7 + $0x700] sm:$0xff]
      %v3373 = vld [vmem:[#allocation7 + $0x708] sm:$0xff]
      %v3374 = vld [vmem:[#allocation7 + $0x710] sm:$0xff]
      %v3375 = vld [vmem:[#allocation7 + $0x718] sm:$0xff]
      %v3376 = vld [vmem:[#allocation7 + $0x720] sm:$0xff]
      %v3377 = vld [vmem:[#allocation7 + $0x728] sm:$0xff]
      %v3378 = vld [vmem:[#allocation7 + $0x730] sm:$0xff]
      %v3379 = vld [vmem:[#allocation7 + $0x738] sm:$0xff]
      %v3380 = vld [vmem:[#allocation7 + $0x740] sm:$0xff]
      %v3381 = vld [vmem:[#allocation7 + $0x748] sm:$0xff]
      %v3382 = vld [vmem:[#allocation7 + $0x750] sm:$0xff]
      %v3383 = vld [vmem:[#allocation7 + $0x758] sm:$0xff]
      %v3384 = vld [vmem:[#allocation7 + $0x760] sm:$0xff]
      %v3385 = vld [vmem:[#allocation7 + $0x768] sm:$0xff]
      %v3386 = vld [vmem:[#allocation7 + $0x770] sm:$0xff]
      %v3387 = vld [vmem:[#allocation7 + $0x778] sm:$0xff]
      %v3388 = vld [vmem:[#allocation7 + $0x780] sm:$0xff]
      %v3389 = vld [vmem:[#allocation7 + $0x788] sm:$0xff]
      %v3390 = vld [vmem:[#allocation7 + $0x790] sm:$0xff]
      %v3391 = vld [vmem:[#allocation7 + $0x798] sm:$0xff]
      %v3392 = vld [vmem:[#allocation7 + $0x7a0] sm:$0xff]
      %v3393 = vld [vmem:[#allocation7 + $0x7a8] sm:$0xff]
      %v3394 = vld [vmem:[#allocation7 + $0x7b0] sm:$0xff]
      %v3395 = vld [vmem:[#allocation7 + $0x7b8] sm:$0xff]
      %v3396 = vld [vmem:[#allocation7 + $0x7c0] sm:$0xff]
      %v3397 = vld [vmem:[#allocation7 + $0x7c8] sm:$0xff]
      %v3398 = vld [vmem:[#allocation7 + $0x7d0] sm:$0xff]
      %v3399 = vld [vmem:[#allocation7 + $0x7d8] sm:$0xff]
      %v3400 = vld [vmem:[#allocation7 + $0x7e0] sm:$0xff]
      %v3401 = vld [vmem:[#allocation7 + $0x7e8] sm:$0xff]
      %v3402 = vld [vmem:[#allocation7 + $0x7f0] sm:$0xff]
      %v3403 = vld [vmem:[#allocation7 + $0x7f8] sm:$0xff]
      %v3404 = vld [vmem:[#allocation8] sm:$0xf]
      %v3406 = vlaneseq
      %v3407 = vshrl.u32 %v3406, 7
      %v3408 = vsub.s32 0, %v3407
      %v3409 = vrot.slane %v3404, %v3408
      %v3410 = vlaneseq
      %v3411 = vshrl.u32 %v3410, 7
      %v3412 = vsub.s32 1, %v3411
      %v3413 = vrot.slane %v3404, %v3412
      %v3414 = vlaneseq
      %v3415 = vshrl.u32 %v3414, 7
      %v3416 = vsub.s32 2, %v3415
      %v3417 = vrot.slane %v3404, %v3416
      %v3418 = vlaneseq
      %v3419 = vshrl.u32 %v3418, 7
      %v3420 = vsub.s32 3, %v3419
      %v3421 = vrot.slane %v3404, %v3420
      %v3682 = vunpack.c.l.b16 %v3148
      %v3683 = vunpack.c.h.b16 %v3148
      %v3684 = vunpack.c.l.b16 %v3149
      %v3685 = vunpack.c.h.b16 %v3149
      %v3686 = vunpack.c.l.b16 %v3150
      %v3687 = vunpack.c.h.b16 %v3150
      %v3688 = vunpack.c.l.b16 %v3151
      %v3689 = vunpack.c.h.b16 %v3151
      %v3690 = vunpack.c.l.b16 %v3152
      %v3691 = vunpack.c.h.b16 %v3152
      %v3692 = vunpack.c.l.b16 %v3153
      %v3693 = vunpack.c.h.b16 %v3153
      %v3694 = vunpack.c.l.b16 %v3154
      %v3695 = vunpack.c.h.b16 %v3154
      %v3696 = vunpack.c.l.b16 %v3155
      %v3697 = vunpack.c.h.b16 %v3155
      %v3698 = vunpack.c.l.b16 %v3156
      %v3699 = vunpack.c.h.b16 %v3156
      %v3700 = vunpack.c.l.b16 %v3157
      %v3701 = vunpack.c.h.b16 %v3157
      %v3702 = vunpack.c.l.b16 %v3158
      %v3703 = vunpack.c.h.b16 %v3158
      %v3704 = vunpack.c.l.b16 %v3159
      %v3705 = vunpack.c.h.b16 %v3159
      %v3706 = vunpack.c.l.b16 %v3160
      %v3707 = vunpack.c.h.b16 %v3160
      %v3708 = vunpack.c.l.b16 %v3161
      %v3709 = vunpack.c.h.b16 %v3161
      %v3710 = vunpack.c.l.b16 %v3162
      %v3711 = vunpack.c.h.b16 %v3162
      %v3712 = vunpack.c.l.b16 %v3163
      %v3713 = vunpack.c.h.b16 %v3163
      %v3714 = vunpack.c.l.b16 %v3164
      %v3715 = vunpack.c.h.b16 %v3164
      %v3716 = vunpack.c.l.b16 %v3165
      %v3717 = vunpack.c.h.b16 %v3165
      %v3718 = vunpack.c.l.b16 %v3166
      %v3719 = vunpack.c.h.b16 %v3166
      %v3720 = vunpack.c.l.b16 %v3167
      %v3721 = vunpack.c.h.b16 %v3167
      %v3722 = vunpack.c.l.b16 %v3168
      %v3723 = vunpack.c.h.b16 %v3168
      %v3724 = vunpack.c.l.b16 %v3169
      %v3725 = vunpack.c.h.b16 %v3169
      %v3726 = vunpack.c.l.b16 %v3170
      %v3727 = vunpack.c.h.b16 %v3170
      %v3728 = vunpack.c.l.b16 %v3171
      %v3729 = vunpack.c.h.b16 %v3171
      %v3730 = vunpack.c.l.b16 %v3172
      %v3731 = vunpack.c.h.b16 %v3172
      %v3732 = vunpack.c.l.b16 %v3173
      %v3733 = vunpack.c.h.b16 %v3173
      %v3734 = vunpack.c.l.b16 %v3174
      %v3735 = vunpack.c.h.b16 %v3174
      %v3736 = vunpack.c.l.b16 %v3175
      %v3737 = vunpack.c.h.b16 %v3175
      %v3738 = vunpack.c.l.b16 %v3176
      %v3739 = vunpack.c.h.b16 %v3176
      %v3740 = vunpack.c.l.b16 %v3177
      %v3741 = vunpack.c.h.b16 %v3177
      %v3742 = vunpack.c.l.b16 %v3178
      %v3743 = vunpack.c.h.b16 %v3178
      %v3744 = vunpack.c.l.b16 %v3179
      %v3745 = vunpack.c.h.b16 %v3179
      %v3746 = vunpack.c.l.b16 %v3180
      %v3747 = vunpack.c.h.b16 %v3180
      %v3748 = vunpack.c.l.b16 %v3181
      %v3749 = vunpack.c.h.b16 %v3181
      %v3750 = vunpack.c.l.b16 %v3182
      %v3751 = vunpack.c.h.b16 %v3182
      %v3752 = vunpack.c.l.b16 %v3183
      %v3753 = vunpack.c.h.b16 %v3183
      %v3754 = vunpack.c.l.b16 %v3184
      %v3755 = vunpack.c.h.b16 %v3184
      %v3756 = vunpack.c.l.b16 %v3185
      %v3757 = vunpack.c.h.b16 %v3185
      %v3758 = vunpack.c.l.b16 %v3186
      %v3759 = vunpack.c.h.b16 %v3186
      %v3760 = vunpack.c.l.b16 %v3187
      %v3761 = vunpack.c.h.b16 %v3187
      %v3762 = vunpack.c.l.b16 %v3188
      %v3763 = vunpack.c.h.b16 %v3188
      %v3764 = vunpack.c.l.b16 %v3189
      %v3765 = vunpack.c.h.b16 %v3189
      %v3766 = vunpack.c.l.b16 %v3190
      %v3767 = vunpack.c.h.b16 %v3190
      %v3768 = vunpack.c.l.b16 %v3191
      %v3769 = vunpack.c.h.b16 %v3191
      %v3770 = vunpack.c.l.b16 %v3192
      %v3771 = vunpack.c.h.b16 %v3192
      %v3772 = vunpack.c.l.b16 %v3193
      %v3773 = vunpack.c.h.b16 %v3193
      %v3774 = vunpack.c.l.b16 %v3194
      %v3775 = vunpack.c.h.b16 %v3194
      %v3776 = vunpack.c.l.b16 %v3195
      %v3777 = vunpack.c.h.b16 %v3195
      %v3778 = vunpack.c.l.b16 %v3196
      %v3779 = vunpack.c.h.b16 %v3196
      %v3780 = vunpack.c.l.b16 %v3197
      %v3781 = vunpack.c.h.b16 %v3197
      %v3782 = vunpack.c.l.b16 %v3198
      %v3783 = vunpack.c.h.b16 %v3198
      %v3784 = vunpack.c.l.b16 %v3199
      %v3785 = vunpack.c.h.b16 %v3199
      %v3786 = vunpack.c.l.b16 %v3200
      %v3787 = vunpack.c.h.b16 %v3200
      %v3788 = vunpack.c.l.b16 %v3201
      %v3789 = vunpack.c.h.b16 %v3201
      %v3790 = vunpack.c.l.b16 %v3202
      %v3791 = vunpack.c.h.b16 %v3202
      %v3792 = vunpack.c.l.b16 %v3203
      %v3793 = vunpack.c.h.b16 %v3203
      %v3794 = vunpack.c.l.b16 %v3204
      %v3795 = vunpack.c.h.b16 %v3204
      %v3796 = vunpack.c.l.b16 %v3205
      %v3797 = vunpack.c.h.b16 %v3205
      %v3798 = vunpack.c.l.b16 %v3206
      %v3799 = vunpack.c.h.b16 %v3206
      %v3800 = vunpack.c.l.b16 %v3207
      %v3801 = vunpack.c.h.b16 %v3207
      %v3802 = vunpack.c.l.b16 %v3208
      %v3803 = vunpack.c.h.b16 %v3208
      %v3804 = vunpack.c.l.b16 %v3209
      %v3805 = vunpack.c.h.b16 %v3209
      %v3806 = vunpack.c.l.b16 %v3210
      %v3807 = vunpack.c.h.b16 %v3210
      %v3808 = vunpack.c.l.b16 %v3211
      %v3809 = vunpack.c.h.b16 %v3211
      %v3810 = vunpack.c.l.b16 %v3212
      %v3811 = vunpack.c.h.b16 %v3212
      %v3812 = vunpack.c.l.b16 %v3213
      %v3813 = vunpack.c.h.b16 %v3213
      %v3814 = vunpack.c.l.b16 %v3214
      %v3815 = vunpack.c.h.b16 %v3214
      %v3816 = vunpack.c.l.b16 %v3215
      %v3817 = vunpack.c.h.b16 %v3215
      %v3818 = vunpack.c.l.b16 %v3216
      %v3819 = vunpack.c.h.b16 %v3216
      %v3820 = vunpack.c.l.b16 %v3217
      %v3821 = vunpack.c.h.b16 %v3217
      %v3822 = vunpack.c.l.b16 %v3218
      %v3823 = vunpack.c.h.b16 %v3218
      %v3824 = vunpack.c.l.b16 %v3219
      %v3825 = vunpack.c.h.b16 %v3219
      %v3826 = vunpack.c.l.b16 %v3220
      %v3827 = vunpack.c.h.b16 %v3220
      %v3828 = vunpack.c.l.b16 %v3221
      %v3829 = vunpack.c.h.b16 %v3221
      %v3830 = vunpack.c.l.b16 %v3222
      %v3831 = vunpack.c.h.b16 %v3222
      %v3832 = vunpack.c.l.b16 %v3223
      %v3833 = vunpack.c.h.b16 %v3223
      %v3834 = vunpack.c.l.b16 %v3224
      %v3835 = vunpack.c.h.b16 %v3224
      %v3836 = vunpack.c.l.b16 %v3225
      %v3837 = vunpack.c.h.b16 %v3225
      %v3838 = vunpack.c.l.b16 %v3226
      %v3839 = vunpack.c.h.b16 %v3226
      %v3840 = vunpack.c.l.b16 %v3227
      %v3841 = vunpack.c.h.b16 %v3227
      %v3842 = vunpack.c.l.b16 %v3228
      %v3843 = vunpack.c.h.b16 %v3228
      %v3844 = vunpack.c.l.b16 %v3229
      %v3845 = vunpack.c.h.b16 %v3229
      %v3846 = vunpack.c.l.b16 %v3230
      %v3847 = vunpack.c.h.b16 %v3230
      %v3848 = vunpack.c.l.b16 %v3231
      %v3849 = vunpack.c.h.b16 %v3231
      %v3850 = vunpack.c.l.b16 %v3232
      %v3851 = vunpack.c.h.b16 %v3232
      %v3852 = vunpack.c.l.b16 %v3233
      %v3853 = vunpack.c.h.b16 %v3233
      %v3854 = vunpack.c.l.b16 %v3234
      %v3855 = vunpack.c.h.b16 %v3234
      %v3856 = vunpack.c.l.b16 %v3235
      %v3857 = vunpack.c.h.b16 %v3235
      %v3858 = vunpack.c.l.b16 %v3236
      %v3859 = vunpack.c.h.b16 %v3236
      %v3860 = vunpack.c.l.b16 %v3237
      %v3861 = vunpack.c.h.b16 %v3237
      %v3862 = vunpack.c.l.b16 %v3238
      %v3863 = vunpack.c.h.b16 %v3238
      %v3864 = vunpack.c.l.b16 %v3239
      %v3865 = vunpack.c.h.b16 %v3239
      %v3866 = vunpack.c.l.b16 %v3240
      %v3867 = vunpack.c.h.b16 %v3240
      %v3868 = vunpack.c.l.b16 %v3241
      %v3869 = vunpack.c.h.b16 %v3241
      %v3870 = vunpack.c.l.b16 %v3242
      %v3871 = vunpack.c.h.b16 %v3242
      %v3872 = vunpack.c.l.b16 %v3243
      %v3873 = vunpack.c.h.b16 %v3243
      %v3874 = vunpack.c.l.b16 %v3244
      %v3875 = vunpack.c.h.b16 %v3244
      %v3876 = vunpack.c.l.b16 %v3245
      %v3877 = vunpack.c.h.b16 %v3245
      %v3878 = vunpack.c.l.b16 %v3246
      %v3879 = vunpack.c.h.b16 %v3246
      %v3880 = vunpack.c.l.b16 %v3247
      %v3881 = vunpack.c.h.b16 %v3247
      %v3882 = vunpack.c.l.b16 %v3248
      %v3883 = vunpack.c.h.b16 %v3248
      %v3884 = vunpack.c.l.b16 %v3249
      %v3885 = vunpack.c.h.b16 %v3249
      %v3886 = vunpack.c.l.b16 %v3250
      %v3887 = vunpack.c.h.b16 %v3250
      %v3888 = vunpack.c.l.b16 %v3251
      %v3889 = vunpack.c.h.b16 %v3251
      %v3890 = vunpack.c.l.b16 %v3252
      %v3891 = vunpack.c.h.b16 %v3252
      %v3892 = vunpack.c.l.b16 %v3253
      %v3893 = vunpack.c.h.b16 %v3253
      %v3894 = vunpack.c.l.b16 %v3254
      %v3895 = vunpack.c.h.b16 %v3254
      %v3896 = vunpack.c.l.b16 %v3255
      %v3897 = vunpack.c.h.b16 %v3255
      %v3898 = vunpack.c.l.b16 %v3256
      %v3899 = vunpack.c.h.b16 %v3256
      %v3900 = vunpack.c.l.b16 %v3257
      %v3901 = vunpack.c.h.b16 %v3257
      %v3902 = vunpack.c.l.b16 %v3258
      %v3903 = vunpack.c.h.b16 %v3258
      %v3904 = vunpack.c.l.b16 %v3259
      %v3905 = vunpack.c.h.b16 %v3259
      %v3906 = vunpack.c.l.b16 %v3260
      %v3907 = vunpack.c.h.b16 %v3260
      %v3908 = vunpack.c.l.b16 %v3261
      %v3909 = vunpack.c.h.b16 %v3261
      %v3910 = vunpack.c.l.b16 %v3262
      %v3911 = vunpack.c.h.b16 %v3262
      %v3912 = vunpack.c.l.b16 %v3263
      %v3913 = vunpack.c.h.b16 %v3263
      %v3914 = vunpack.c.l.b16 %v3264
      %v3915 = vunpack.c.h.b16 %v3264
      %v3916 = vunpack.c.l.b16 %v3265
      %v3917 = vunpack.c.h.b16 %v3265
      %v3918 = vunpack.c.l.b16 %v3266
      %v3919 = vunpack.c.h.b16 %v3266
      %v3920 = vunpack.c.l.b16 %v3267
      %v3921 = vunpack.c.h.b16 %v3267
      %v3922 = vunpack.c.l.b16 %v3268
      %v3923 = vunpack.c.h.b16 %v3268
      %v3924 = vunpack.c.l.b16 %v3269
      %v3925 = vunpack.c.h.b16 %v3269
      %v3926 = vunpack.c.l.b16 %v3270
      %v3927 = vunpack.c.h.b16 %v3270
      %v3928 = vunpack.c.l.b16 %v3271
      %v3929 = vunpack.c.h.b16 %v3271
      %v3930 = vunpack.c.l.b16 %v3272
      %v3931 = vunpack.c.h.b16 %v3272
      %v3932 = vunpack.c.l.b16 %v3273
      %v3933 = vunpack.c.h.b16 %v3273
      %v3934 = vunpack.c.l.b16 %v3274
      %v3935 = vunpack.c.h.b16 %v3274
      %v3936 = vunpack.c.l.b16 %v3275
      %v3937 = vunpack.c.h.b16 %v3275
      %v3938 = vunpack.c.l.b16 %v3276
      %v3939 = vunpack.c.h.b16 %v3276
      %v3940 = vunpack.c.l.b16 %v3277
      %v3941 = vunpack.c.h.b16 %v3277
      %v3942 = vunpack.c.l.b16 %v3278
      %v3943 = vunpack.c.h.b16 %v3278
      %v3944 = vunpack.c.l.b16 %v3279
      %v3945 = vunpack.c.h.b16 %v3279
      %v3946 = vunpack.c.l.b16 %v3280
      %v3947 = vunpack.c.h.b16 %v3280
      %v3948 = vunpack.c.l.b16 %v3281
      %v3949 = vunpack.c.h.b16 %v3281
      %v3950 = vunpack.c.l.b16 %v3282
      %v3951 = vunpack.c.h.b16 %v3282
      %v3952 = vunpack.c.l.b16 %v3283
      %v3953 = vunpack.c.h.b16 %v3283
      %v3954 = vunpack.c.l.b16 %v3284
      %v3955 = vunpack.c.h.b16 %v3284
      %v3956 = vunpack.c.l.b16 %v3285
      %v3957 = vunpack.c.h.b16 %v3285
      %v3958 = vunpack.c.l.b16 %v3286
      %v3959 = vunpack.c.h.b16 %v3286
      %v3960 = vunpack.c.l.b16 %v3287
      %v3961 = vunpack.c.h.b16 %v3287
      %v3962 = vunpack.c.l.b16 %v3288
      %v3963 = vunpack.c.h.b16 %v3288
      %v3964 = vunpack.c.l.b16 %v3289
      %v3965 = vunpack.c.h.b16 %v3289
      %v3966 = vunpack.c.l.b16 %v3290
      %v3967 = vunpack.c.h.b16 %v3290
      %v3968 = vunpack.c.l.b16 %v3291
      %v3969 = vunpack.c.h.b16 %v3291
      %v3970 = vunpack.c.l.b16 %v3292
      %v3971 = vunpack.c.h.b16 %v3292
      %v3972 = vunpack.c.l.b16 %v3293
      %v3973 = vunpack.c.h.b16 %v3293
      %v3974 = vunpack.c.l.b16 %v3294
      %v3975 = vunpack.c.h.b16 %v3294
      %v3976 = vunpack.c.l.b16 %v3295
      %v3977 = vunpack.c.h.b16 %v3295
      %v3978 = vunpack.c.l.b16 %v3296
      %v3979 = vunpack.c.h.b16 %v3296
      %v3980 = vunpack.c.l.b16 %v3297
      %v3981 = vunpack.c.h.b16 %v3297
      %v3982 = vunpack.c.l.b16 %v3298
      %v3983 = vunpack.c.h.b16 %v3298
      %v3984 = vunpack.c.l.b16 %v3299
      %v3985 = vunpack.c.h.b16 %v3299
      %v3986 = vunpack.c.l.b16 %v3300
      %v3987 = vunpack.c.h.b16 %v3300
      %v3988 = vunpack.c.l.b16 %v3301
      %v3989 = vunpack.c.h.b16 %v3301
      %v3990 = vunpack.c.l.b16 %v3302
      %v3991 = vunpack.c.h.b16 %v3302
      %v3992 = vunpack.c.l.b16 %v3303
      %v3993 = vunpack.c.h.b16 %v3303
      %v3994 = vunpack.c.l.b16 %v3304
      %v3995 = vunpack.c.h.b16 %v3304
      %v3996 = vunpack.c.l.b16 %v3305
      %v3997 = vunpack.c.h.b16 %v3305
      %v3998 = vunpack.c.l.b16 %v3306
      %v3999 = vunpack.c.h.b16 %v3306
      %v4000 = vunpack.c.l.b16 %v3307
      %v4001 = vunpack.c.h.b16 %v3307
      %v4002 = vunpack.c.l.b16 %v3308
      %v4003 = vunpack.c.h.b16 %v3308
      %v4004 = vunpack.c.l.b16 %v3309
      %v4005 = vunpack.c.h.b16 %v3309
      %v4006 = vunpack.c.l.b16 %v3310
      %v4007 = vunpack.c.h.b16 %v3310
      %v4008 = vunpack.c.l.b16 %v3311
      %v4009 = vunpack.c.h.b16 %v3311
      %v4010 = vunpack.c.l.b16 %v3312
      %v4011 = vunpack.c.h.b16 %v3312
      %v4012 = vunpack.c.l.b16 %v3313
      %v4013 = vunpack.c.h.b16 %v3313
      %v4014 = vunpack.c.l.b16 %v3314
      %v4015 = vunpack.c.h.b16 %v3314
      %v4016 = vunpack.c.l.b16 %v3315
      %v4017 = vunpack.c.h.b16 %v3315
      %v4018 = vunpack.c.l.b16 %v3316
      %v4019 = vunpack.c.h.b16 %v3316
      %v4020 = vunpack.c.l.b16 %v3317
      %v4021 = vunpack.c.h.b16 %v3317
      %v4022 = vunpack.c.l.b16 %v3318
      %v4023 = vunpack.c.h.b16 %v3318
      %v4024 = vunpack.c.l.b16 %v3319
      %v4025 = vunpack.c.h.b16 %v3319
      %v4026 = vunpack.c.l.b16 %v3320
      %v4027 = vunpack.c.h.b16 %v3320
      %v4028 = vunpack.c.l.b16 %v3321
      %v4029 = vunpack.c.h.b16 %v3321
      %v4030 = vunpack.c.l.b16 %v3322
      %v4031 = vunpack.c.h.b16 %v3322
      %v4032 = vunpack.c.l.b16 %v3323
      %v4033 = vunpack.c.h.b16 %v3323
      %v4034 = vunpack.c.l.b16 %v3324
      %v4035 = vunpack.c.h.b16 %v3324
      %v4036 = vunpack.c.l.b16 %v3325
      %v4037 = vunpack.c.h.b16 %v3325
      %v4038 = vunpack.c.l.b16 %v3326
      %v4039 = vunpack.c.h.b16 %v3326
      %v4040 = vunpack.c.l.b16 %v3327
      %v4041 = vunpack.c.h.b16 %v3327
      %v4042 = vunpack.c.l.b16 %v3328
      %v4043 = vunpack.c.h.b16 %v3328
      %v4044 = vunpack.c.l.b16 %v3329
      %v4045 = vunpack.c.h.b16 %v3329
      %v4046 = vunpack.c.l.b16 %v3330
      %v4047 = vunpack.c.h.b16 %v3330
      %v4048 = vunpack.c.l.b16 %v3331
      %v4049 = vunpack.c.h.b16 %v3331
      %v4050 = vunpack.c.l.b16 %v3332
      %v4051 = vunpack.c.h.b16 %v3332
      %v4052 = vunpack.c.l.b16 %v3333
      %v4053 = vunpack.c.h.b16 %v3333
      %v4054 = vunpack.c.l.b16 %v3334
      %v4055 = vunpack.c.h.b16 %v3334
      %v4056 = vunpack.c.l.b16 %v3335
      %v4057 = vunpack.c.h.b16 %v3335
      %v4058 = vunpack.c.l.b16 %v3336
      %v4059 = vunpack.c.h.b16 %v3336
      %v4060 = vunpack.c.l.b16 %v3337
      %v4061 = vunpack.c.h.b16 %v3337
      %v4062 = vunpack.c.l.b16 %v3338
      %v4063 = vunpack.c.h.b16 %v3338
      %v4064 = vunpack.c.l.b16 %v3339
      %v4065 = vunpack.c.h.b16 %v3339
      %v4066 = vunpack.c.l.b16 %v3340
      %v4067 = vunpack.c.h.b16 %v3340
      %v4068 = vunpack.c.l.b16 %v3341
      %v4069 = vunpack.c.h.b16 %v3341
      %v4070 = vunpack.c.l.b16 %v3342
      %v4071 = vunpack.c.h.b16 %v3342
      %v4072 = vunpack.c.l.b16 %v3343
      %v4073 = vunpack.c.h.b16 %v3343
      %v4074 = vunpack.c.l.b16 %v3344
      %v4075 = vunpack.c.h.b16 %v3344
      %v4076 = vunpack.c.l.b16 %v3345
      %v4077 = vunpack.c.h.b16 %v3345
      %v4078 = vunpack.c.l.b16 %v3346
      %v4079 = vunpack.c.h.b16 %v3346
      %v4080 = vunpack.c.l.b16 %v3347
      %v4081 = vunpack.c.h.b16 %v3347
      %v4082 = vunpack.c.l.b16 %v3348
      %v4083 = vunpack.c.h.b16 %v3348
      %v4084 = vunpack.c.l.b16 %v3349
      %v4085 = vunpack.c.h.b16 %v3349
      %v4086 = vunpack.c.l.b16 %v3350
      %v4087 = vunpack.c.h.b16 %v3350
      %v4088 = vunpack.c.l.b16 %v3351
      %v4089 = vunpack.c.h.b16 %v3351
      %v4090 = vunpack.c.l.b16 %v3352
      %v4091 = vunpack.c.h.b16 %v3352
      %v4092 = vunpack.c.l.b16 %v3353
      %v4093 = vunpack.c.h.b16 %v3353
      %v4094 = vunpack.c.l.b16 %v3354
      %v4095 = vunpack.c.h.b16 %v3354
      %v4096 = vunpack.c.l.b16 %v3355
      %v4097 = vunpack.c.h.b16 %v3355
      %v4098 = vunpack.c.l.b16 %v3356
      %v4099 = vunpack.c.h.b16 %v3356
      %v4100 = vunpack.c.l.b16 %v3357
      %v4101 = vunpack.c.h.b16 %v3357
      %v4102 = vunpack.c.l.b16 %v3358
      %v4103 = vunpack.c.h.b16 %v3358
      %v4104 = vunpack.c.l.b16 %v3359
      %v4105 = vunpack.c.h.b16 %v3359
      %v4106 = vunpack.c.l.b16 %v3360
      %v4107 = vunpack.c.h.b16 %v3360
      %v4108 = vunpack.c.l.b16 %v3361
      %v4109 = vunpack.c.h.b16 %v3361
      %v4110 = vunpack.c.l.b16 %v3362
      %v4111 = vunpack.c.h.b16 %v3362
      %v4112 = vunpack.c.l.b16 %v3363
      %v4113 = vunpack.c.h.b16 %v3363
      %v4114 = vunpack.c.l.b16 %v3364
      %v4115 = vunpack.c.h.b16 %v3364
      %v4116 = vunpack.c.l.b16 %v3365
      %v4117 = vunpack.c.h.b16 %v3365
      %v4118 = vunpack.c.l.b16 %v3366
      %v4119 = vunpack.c.h.b16 %v3366
      %v4120 = vunpack.c.l.b16 %v3367
      %v4121 = vunpack.c.h.b16 %v3367
      %v4122 = vunpack.c.l.b16 %v3368
      %v4123 = vunpack.c.h.b16 %v3368
      %v4124 = vunpack.c.l.b16 %v3369
      %v4125 = vunpack.c.h.b16 %v3369
      %v4126 = vunpack.c.l.b16 %v3370
      %v4127 = vunpack.c.h.b16 %v3370
      %v4128 = vunpack.c.l.b16 %v3371
      %v4129 = vunpack.c.h.b16 %v3371
      %v4130 = vunpack.c.l.b16 %v3372
      %v4131 = vunpack.c.h.b16 %v3372
      %v4132 = vunpack.c.l.b16 %v3373
      %v4133 = vunpack.c.h.b16 %v3373
      %v4134 = vunpack.c.l.b16 %v3374
      %v4135 = vunpack.c.h.b16 %v3374
      %v4136 = vunpack.c.l.b16 %v3375
      %v4137 = vunpack.c.h.b16 %v3375
      %v4138 = vunpack.c.l.b16 %v3376
      %v4139 = vunpack.c.h.b16 %v3376
      %v4140 = vunpack.c.l.b16 %v3377
      %v4141 = vunpack.c.h.b16 %v3377
      %v4142 = vunpack.c.l.b16 %v3378
      %v4143 = vunpack.c.h.b16 %v3378
      %v4144 = vunpack.c.l.b16 %v3379
      %v4145 = vunpack.c.h.b16 %v3379
      %v4146 = vunpack.c.l.b16 %v3380
      %v4147 = vunpack.c.h.b16 %v3380
      %v4148 = vunpack.c.l.b16 %v3381
      %v4149 = vunpack.c.h.b16 %v3381
      %v4150 = vunpack.c.l.b16 %v3382
      %v4151 = vunpack.c.h.b16 %v3382
      %v4152 = vunpack.c.l.b16 %v3383
      %v4153 = vunpack.c.h.b16 %v3383
      %v4154 = vunpack.c.l.b16 %v3384
      %v4155 = vunpack.c.h.b16 %v3384
      %v4156 = vunpack.c.l.b16 %v3385
      %v4157 = vunpack.c.h.b16 %v3385
      %v4158 = vunpack.c.l.b16 %v3386
      %v4159 = vunpack.c.h.b16 %v3386
      %v4160 = vunpack.c.l.b16 %v3387
      %v4161 = vunpack.c.h.b16 %v3387
      %v4162 = vunpack.c.l.b16 %v3388
      %v4163 = vunpack.c.h.b16 %v3388
      %v4164 = vunpack.c.l.b16 %v3389
      %v4165 = vunpack.c.h.b16 %v3389
      %v4166 = vunpack.c.l.b16 %v3390
      %v4167 = vunpack.c.h.b16 %v3390
      %v4168 = vunpack.c.l.b16 %v3391
      %v4169 = vunpack.c.h.b16 %v3391
      %v4170 = vunpack.c.l.b16 %v3392
      %v4171 = vunpack.c.h.b16 %v3392
      %v4172 = vunpack.c.l.b16 %v3393
      %v4173 = vunpack.c.h.b16 %v3393
      %v4174 = vunpack.c.l.b16 %v3394
      %v4175 = vunpack.c.h.b16 %v3394
      %v4176 = vunpack.c.l.b16 %v3395
      %v4177 = vunpack.c.h.b16 %v3395
      %v4178 = vunpack.c.l.b16 %v3396
      %v4179 = vunpack.c.h.b16 %v3396
      %v4180 = vunpack.c.l.b16 %v3397
      %v4181 = vunpack.c.h.b16 %v3397
      %v4182 = vunpack.c.l.b16 %v3398
      %v4183 = vunpack.c.h.b16 %v3398
      %v4184 = vunpack.c.l.b16 %v3399
      %v4185 = vunpack.c.h.b16 %v3399
      %v4186 = vunpack.c.l.b16 %v3400
      %v4187 = vunpack.c.h.b16 %v3400
      %v4188 = vunpack.c.l.b16 %v3401
      %v4189 = vunpack.c.h.b16 %v3401
      %v4190 = vunpack.c.l.b16 %v3402
      %v4191 = vunpack.c.h.b16 %v3402
      %v4192 = vunpack.c.l.b16 %v3403
      %v4193 = vunpack.c.h.b16 %v3403
      %v4194 = vpack.c.b16 %v3686, %v3682
      %v4195 = vpack.c.b16 %v3687, %v3683
      %v4196 = vpack.c.b16 %v3688, %v3684
      %v4197 = vpack.c.b16 %v3689, %v3685
      %v4198 = vpack.c.b16 %v3694, %v3690
      %v4199 = vpack.c.b16 %v3695, %v3691
      %v4200 = vpack.c.b16 %v3696, %v3692
      %v4201 = vpack.c.b16 %v3697, %v3693
      %v4202 = vpack.c.b16 %v3702, %v3698
      %v4203 = vpack.c.b16 %v3703, %v3699
      %v4204 = vpack.c.b16 %v3704, %v3700
      %v4205 = vpack.c.b16 %v3705, %v3701
      %v4206 = vpack.c.b16 %v3710, %v3706
      %v4207 = vpack.c.b16 %v3711, %v3707
      %v4208 = vpack.c.b16 %v3712, %v3708
      %v4209 = vpack.c.b16 %v3713, %v3709
      %v4210 = vpack.c.b16 %v3718, %v3714
      %v4211 = vpack.c.b16 %v3719, %v3715
      %v4212 = vpack.c.b16 %v3720, %v3716
      %v4213 = vpack.c.b16 %v3721, %v3717
      %v4214 = vpack.c.b16 %v3726, %v3722
      %v4215 = vpack.c.b16 %v3727, %v3723
      %v4216 = vpack.c.b16 %v3728, %v3724
      %v4217 = vpack.c.b16 %v3729, %v3725
      %v4218 = vpack.c.b16 %v3734, %v3730
      %v4219 = vpack.c.b16 %v3735, %v3731
      %v4220 = vpack.c.b16 %v3736, %v3732
      %v4221 = vpack.c.b16 %v3737, %v3733
      %v4222 = vpack.c.b16 %v3742, %v3738
      %v4223 = vpack.c.b16 %v3743, %v3739
      %v4224 = vpack.c.b16 %v3744, %v3740
      %v4225 = vpack.c.b16 %v3745, %v3741
      %v4226 = vpack.c.b16 %v3750, %v3746
      %v4227 = vpack.c.b16 %v3751, %v3747
      %v4228 = vpack.c.b16 %v3752, %v3748
      %v4229 = vpack.c.b16 %v3753, %v3749
      %v4230 = vpack.c.b16 %v3758, %v3754
      %v4231 = vpack.c.b16 %v3759, %v3755
      %v4232 = vpack.c.b16 %v3760, %v3756
      %v4233 = vpack.c.b16 %v3761, %v3757
      %v4234 = vpack.c.b16 %v3766, %v3762
      %v4235 = vpack.c.b16 %v3767, %v3763
      %v4236 = vpack.c.b16 %v3768, %v3764
      %v4237 = vpack.c.b16 %v3769, %v3765
      %v4238 = vpack.c.b16 %v3774, %v3770
      %v4239 = vpack.c.b16 %v3775, %v3771
      %v4240 = vpack.c.b16 %v3776, %v3772
      %v4241 = vpack.c.b16 %v3777, %v3773
      %v4242 = vpack.c.b16 %v3782, %v3778
      %v4243 = vpack.c.b16 %v3783, %v3779
      %v4244 = vpack.c.b16 %v3784, %v3780
      %v4245 = vpack.c.b16 %v3785, %v3781
      %v4246 = vpack.c.b16 %v3790, %v3786
      %v4247 = vpack.c.b16 %v3791, %v3787
      %v4248 = vpack.c.b16 %v3792, %v3788
      %v4249 = vpack.c.b16 %v3793, %v3789
      %v4250 = vpack.c.b16 %v3798, %v3794
      %v4251 = vpack.c.b16 %v3799, %v3795
      %v4252 = vpack.c.b16 %v3800, %v3796
      %v4253 = vpack.c.b16 %v3801, %v3797
      %v4254 = vpack.c.b16 %v3806, %v3802
      %v4255 = vpack.c.b16 %v3807, %v3803
      %v4256 = vpack.c.b16 %v3808, %v3804
      %v4257 = vpack.c.b16 %v3809, %v3805
      %v4258 = vpack.c.b16 %v3814, %v3810
      %v4259 = vpack.c.b16 %v3815, %v3811
      %v4260 = vpack.c.b16 %v3816, %v3812
      %v4261 = vpack.c.b16 %v3817, %v3813
      %v4262 = vpack.c.b16 %v3822, %v3818
      %v4263 = vpack.c.b16 %v3823, %v3819
      %v4264 = vpack.c.b16 %v3824, %v3820
      %v4265 = vpack.c.b16 %v3825, %v3821
      %v4266 = vpack.c.b16 %v3830, %v3826
      %v4267 = vpack.c.b16 %v3831, %v3827
      %v4268 = vpack.c.b16 %v3832, %v3828
      %v4269 = vpack.c.b16 %v3833, %v3829
      %v4270 = vpack.c.b16 %v3838, %v3834
      %v4271 = vpack.c.b16 %v3839, %v3835
      %v4272 = vpack.c.b16 %v3840, %v3836
      %v4273 = vpack.c.b16 %v3841, %v3837
      %v4274 = vpack.c.b16 %v3846, %v3842
      %v4275 = vpack.c.b16 %v3847, %v3843
      %v4276 = vpack.c.b16 %v3848, %v3844
      %v4277 = vpack.c.b16 %v3849, %v3845
      %v4278 = vpack.c.b16 %v3854, %v3850
      %v4279 = vpack.c.b16 %v3855, %v3851
      %v4280 = vpack.c.b16 %v3856, %v3852
      %v4281 = vpack.c.b16 %v3857, %v3853
      %v4282 = vpack.c.b16 %v3862, %v3858
      %v4283 = vpack.c.b16 %v3863, %v3859
      %v4284 = vpack.c.b16 %v3864, %v3860
      %v4285 = vpack.c.b16 %v3865, %v3861
      %v4286 = vpack.c.b16 %v3870, %v3866
      %v4287 = vpack.c.b16 %v3871, %v3867
      %v4288 = vpack.c.b16 %v3872, %v3868
      %v4289 = vpack.c.b16 %v3873, %v3869
      %v4290 = vpack.c.b16 %v3878, %v3874
      %v4291 = vpack.c.b16 %v3879, %v3875
      %v4292 = vpack.c.b16 %v3880, %v3876
      %v4293 = vpack.c.b16 %v3881, %v3877
      %v4294 = vpack.c.b16 %v3886, %v3882
      %v4295 = vpack.c.b16 %v3887, %v3883
      %v4296 = vpack.c.b16 %v3888, %v3884
      %v4297 = vpack.c.b16 %v3889, %v3885
      %v4298 = vpack.c.b16 %v3894, %v3890
      %v4299 = vpack.c.b16 %v3895, %v3891
      %v4300 = vpack.c.b16 %v3896, %v3892
      %v4301 = vpack.c.b16 %v3897, %v3893
      %v4302 = vpack.c.b16 %v3902, %v3898
      %v4303 = vpack.c.b16 %v3903, %v3899
      %v4304 = vpack.c.b16 %v3904, %v3900
      %v4305 = vpack.c.b16 %v3905, %v3901
      %v4306 = vpack.c.b16 %v3910, %v3906
      %v4307 = vpack.c.b16 %v3911, %v3907
      %v4308 = vpack.c.b16 %v3912, %v3908
      %v4309 = vpack.c.b16 %v3913, %v3909
      %v4310 = vpack.c.b16 %v3918, %v3914
      %v4311 = vpack.c.b16 %v3919, %v3915
      %v4312 = vpack.c.b16 %v3920, %v3916
      %v4313 = vpack.c.b16 %v3921, %v3917
      %v4314 = vpack.c.b16 %v3926, %v3922
      %v4315 = vpack.c.b16 %v3927, %v3923
      %v4316 = vpack.c.b16 %v3928, %v3924
      %v4317 = vpack.c.b16 %v3929, %v3925
      %v4318 = vpack.c.b16 %v3934, %v3930
      %v4319 = vpack.c.b16 %v3935, %v3931
      %v4320 = vpack.c.b16 %v3936, %v3932
      %v4321 = vpack.c.b16 %v3937, %v3933
      %v4322 = vpack.c.b16 %v3942, %v3938
      %v4323 = vpack.c.b16 %v3943, %v3939
      %v4324 = vpack.c.b16 %v3944, %v3940
      %v4325 = vpack.c.b16 %v3945, %v3941
      %v4326 = vpack.c.b16 %v3950, %v3946
      %v4327 = vpack.c.b16 %v3951, %v3947
      %v4328 = vpack.c.b16 %v3952, %v3948
      %v4329 = vpack.c.b16 %v3953, %v3949
      %v4330 = vpack.c.b16 %v3958, %v3954
      %v4331 = vpack.c.b16 %v3959, %v3955
      %v4332 = vpack.c.b16 %v3960, %v3956
      %v4333 = vpack.c.b16 %v3961, %v3957
      %v4334 = vpack.c.b16 %v3966, %v3962
      %v4335 = vpack.c.b16 %v3967, %v3963
      %v4336 = vpack.c.b16 %v3968, %v3964
      %v4337 = vpack.c.b16 %v3969, %v3965
      %v4338 = vpack.c.b16 %v3974, %v3970
      %v4339 = vpack.c.b16 %v3975, %v3971
      %v4340 = vpack.c.b16 %v3976, %v3972
      %v4341 = vpack.c.b16 %v3977, %v3973
      %v4342 = vpack.c.b16 %v3982, %v3978
      %v4343 = vpack.c.b16 %v3983, %v3979
      %v4344 = vpack.c.b16 %v3984, %v3980
      %v4345 = vpack.c.b16 %v3985, %v3981
      %v4346 = vpack.c.b16 %v3990, %v3986
      %v4347 = vpack.c.b16 %v3991, %v3987
      %v4348 = vpack.c.b16 %v3992, %v3988
      %v4349 = vpack.c.b16 %v3993, %v3989
      %v4350 = vpack.c.b16 %v3998, %v3994
      %v4351 = vpack.c.b16 %v3999, %v3995
      %v4352 = vpack.c.b16 %v4000, %v3996
      %v4353 = vpack.c.b16 %v4001, %v3997
      %v4354 = vpack.c.b16 %v4006, %v4002
      %v4355 = vpack.c.b16 %v4007, %v4003
      %v4356 = vpack.c.b16 %v4008, %v4004
      %v4357 = vpack.c.b16 %v4009, %v4005
      %v4358 = vpack.c.b16 %v4014, %v4010
      %v4359 = vpack.c.b16 %v4015, %v4011
      %v4360 = vpack.c.b16 %v4016, %v4012
      %v4361 = vpack.c.b16 %v4017, %v4013
      %v4362 = vpack.c.b16 %v4022, %v4018
      %v4363 = vpack.c.b16 %v4023, %v4019
      %v4364 = vpack.c.b16 %v4024, %v4020
      %v4365 = vpack.c.b16 %v4025, %v4021
      %v4366 = vpack.c.b16 %v4030, %v4026
      %v4367 = vpack.c.b16 %v4031, %v4027
      %v4368 = vpack.c.b16 %v4032, %v4028
      %v4369 = vpack.c.b16 %v4033, %v4029
      %v4370 = vpack.c.b16 %v4038, %v4034
      %v4371 = vpack.c.b16 %v4039, %v4035
      %v4372 = vpack.c.b16 %v4040, %v4036
      %v4373 = vpack.c.b16 %v4041, %v4037
      %v4374 = vpack.c.b16 %v4046, %v4042
      %v4375 = vpack.c.b16 %v4047, %v4043
      %v4376 = vpack.c.b16 %v4048, %v4044
      %v4377 = vpack.c.b16 %v4049, %v4045
      %v4378 = vpack.c.b16 %v4054, %v4050
      %v4379 = vpack.c.b16 %v4055, %v4051
      %v4380 = vpack.c.b16 %v4056, %v4052
      %v4381 = vpack.c.b16 %v4057, %v4053
      %v4382 = vpack.c.b16 %v4062, %v4058
      %v4383 = vpack.c.b16 %v4063, %v4059
      %v4384 = vpack.c.b16 %v4064, %v4060
      %v4385 = vpack.c.b16 %v4065, %v4061
      %v4386 = vpack.c.b16 %v4070, %v4066
      %v4387 = vpack.c.b16 %v4071, %v4067
      %v4388 = vpack.c.b16 %v4072, %v4068
      %v4389 = vpack.c.b16 %v4073, %v4069
      %v4390 = vpack.c.b16 %v4078, %v4074
      %v4391 = vpack.c.b16 %v4079, %v4075
      %v4392 = vpack.c.b16 %v4080, %v4076
      %v4393 = vpack.c.b16 %v4081, %v4077
      %v4394 = vpack.c.b16 %v4086, %v4082
      %v4395 = vpack.c.b16 %v4087, %v4083
      %v4396 = vpack.c.b16 %v4088, %v4084
      %v4397 = vpack.c.b16 %v4089, %v4085
      %v4398 = vpack.c.b16 %v4094, %v4090
      %v4399 = vpack.c.b16 %v4095, %v4091
      %v4400 = vpack.c.b16 %v4096, %v4092
      %v4401 = vpack.c.b16 %v4097, %v4093
      %v4402 = vpack.c.b16 %v4102, %v4098
      %v4403 = vpack.c.b16 %v4103, %v4099
      %v4404 = vpack.c.b16 %v4104, %v4100
      %v4405 = vpack.c.b16 %v4105, %v4101
      %v4406 = vpack.c.b16 %v4110, %v4106
      %v4407 = vpack.c.b16 %v4111, %v4107
      %v4408 = vpack.c.b16 %v4112, %v4108
      %v4409 = vpack.c.b16 %v4113, %v4109
      %v4410 = vpack.c.b16 %v4118, %v4114
      %v4411 = vpack.c.b16 %v4119, %v4115
      %v4412 = vpack.c.b16 %v4120, %v4116
      %v4413 = vpack.c.b16 %v4121, %v4117
      %v4414 = vpack.c.b16 %v4126, %v4122
      %v4415 = vpack.c.b16 %v4127, %v4123
      %v4416 = vpack.c.b16 %v4128, %v4124
      %v4417 = vpack.c.b16 %v4129, %v4125
      %v4418 = vpack.c.b16 %v4134, %v4130
      %v4419 = vpack.c.b16 %v4135, %v4131
      %v4420 = vpack.c.b16 %v4136, %v4132
      %v4421 = vpack.c.b16 %v4137, %v4133
      %v4422 = vpack.c.b16 %v4142, %v4138
      %v4423 = vpack.c.b16 %v4143, %v4139
      %v4424 = vpack.c.b16 %v4144, %v4140
      %v4425 = vpack.c.b16 %v4145, %v4141
      %v4426 = vpack.c.b16 %v4150, %v4146
      %v4427 = vpack.c.b16 %v4151, %v4147
      %v4428 = vpack.c.b16 %v4152, %v4148
      %v4429 = vpack.c.b16 %v4153, %v4149
      %v4430 = vpack.c.b16 %v4158, %v4154
      %v4431 = vpack.c.b16 %v4159, %v4155
      %v4432 = vpack.c.b16 %v4160, %v4156
      %v4433 = vpack.c.b16 %v4161, %v4157
      %v4434 = vpack.c.b16 %v4166, %v4162
      %v4435 = vpack.c.b16 %v4167, %v4163
      %v4436 = vpack.c.b16 %v4168, %v4164
      %v4437 = vpack.c.b16 %v4169, %v4165
      %v4438 = vpack.c.b16 %v4174, %v4170
      %v4439 = vpack.c.b16 %v4175, %v4171
      %v4440 = vpack.c.b16 %v4176, %v4172
      %v4441 = vpack.c.b16 %v4177, %v4173
      %v4442 = vpack.c.b16 %v4182, %v4178
      %v4443 = vpack.c.b16 %v4183, %v4179
      %v4444 = vpack.c.b16 %v4184, %v4180
      %v4445 = vpack.c.b16 %v4185, %v4181
      %v4446 = vpack.c.b16 %v4190, %v4186
      %v4447 = vpack.c.b16 %v4191, %v4187
      %v4448 = vpack.c.b16 %v4192, %v4188
      %v4449 = vpack.c.b16 %v4193, %v4189
      %4706 = vmatprep.subr.bf16.mxu0 %v4195
      %4707 = vmatpush1.bf16.msra.mxu0 %v4194
      %4708 = vmatprep.subr.bf16.mxu0 %v4199
      %4709 = vmatpush1.bf16.msra.mxu0 %v4198
      %4710 = vmatprep.subr.bf16.mxu0 %v4203
      %4711 = vmatpush1.bf16.msra.mxu0 %v4202
      %4712 = vmatprep.subr.bf16.mxu0 %v4207
      %4713 = vmatpush1.bf16.msra.mxu0 %v4206
      %4714 = vmatprep.subr.bf16.mxu0 %v4211
      %4715 = vmatpush1.bf16.msra.mxu0 %v4210
      %4716 = vmatprep.subr.bf16.mxu0 %v4215
      %4717 = vmatpush1.bf16.msra.mxu0 %v4214
      %4718 = vmatprep.subr.bf16.mxu0 %v4219
      %4719 = vmatpush1.bf16.msra.mxu0 %v4218
      %4720 = vmatprep.subr.bf16.mxu0 %v4223
      %4721 = vmatpush1.bf16.msra.mxu0 %v4222
      %4722 = vmatprep.subr.bf16.mxu0 %v4227
      %4723 = vmatpush1.bf16.msra.mxu0 %v4226
      %4724 = vmatprep.subr.bf16.mxu0 %v4231
      %4725 = vmatpush1.bf16.msra.mxu0 %v4230
      %4726 = vmatprep.subr.bf16.mxu0 %v4235
      %4727 = vmatpush1.bf16.msra.mxu0 %v4234
      %4728 = vmatprep.subr.bf16.mxu0 %v4239
      %4729 = vmatpush1.bf16.msra.mxu0 %v4238
      %4730 = vmatprep.subr.bf16.mxu0 %v4243
      %4731 = vmatpush1.bf16.msra.mxu0 %v4242
      %4732 = vmatprep.subr.bf16.mxu0 %v4247
      %4733 = vmatpush1.bf16.msra.mxu0 %v4246
      %4734 = vmatprep.subr.bf16.mxu0 %v4251
      %4735 = vmatpush1.bf16.msra.mxu0 %v4250
      %4736 = vmatprep.subr.bf16.mxu0 %v4255
      %4737 = vmatpush1.bf16.msra.mxu0 %v4254
      %4738 = vmatprep.mubr.bf16.mxu0 %v3141
      %4739 = vmatmul.mubr.bf16.gmra.mrb[0].mxu0 %v3140
      %v4740 = vpop.f32.mrb[0].mxu0
      %v4741 = vadd.f32 %v3409, %v4740
      %v4742 = vpop.f32.mrb[0].mxu0
      %v4743 = vadd.f32 %v3413, %v4742
      %v4744 = vpop.f32.mrb[0].mxu0
      %v4745 = vadd.f32 %v3409, %v4744
      %v4746 = vpop.f32.mrb[0].mxu0
      %v4747 = vadd.f32 %v3413, %v4746
      %4748 = vdwg.mxu0
      %4749 = vmatprep.subr.bf16.mxu0 %v4259
      %4750 = vmatpush1.bf16.msra.mxu0 %v4258
      %4751 = vmatprep.subr.bf16.mxu0 %v4263
      %4752 = vmatpush1.bf16.msra.mxu0 %v4262
      %4753 = vmatprep.subr.bf16.mxu0 %v4267
      %4754 = vmatpush1.bf16.msra.mxu0 %v4266
      %4755 = vmatprep.subr.bf16.mxu0 %v4271
      %4756 = vmatpush1.bf16.msra.mxu0 %v4270
      %4757 = vmatprep.subr.bf16.mxu0 %v4275
      %4758 = vmatpush1.bf16.msra.mxu0 %v4274
      %4759 = vmatprep.subr.bf16.mxu0 %v4279
      %4760 = vmatpush1.bf16.msra.mxu0 %v4278
      %4761 = vmatprep.subr.bf16.mxu0 %v4283
      %4762 = vmatpush1.bf16.msra.mxu0 %v4282
      %4763 = vmatprep.subr.bf16.mxu0 %v4287
      %4764 = vmatpush1.bf16.msra.mxu0 %v4286
      %4765 = vmatprep.subr.bf16.mxu0 %v4291
      %4766 = vmatpush1.bf16.msra.mxu0 %v4290
      %4767 = vmatprep.subr.bf16.mxu0 %v4295
      %4768 = vmatpush1.bf16.msra.mxu0 %v4294
      %4769 = vmatprep.subr.bf16.mxu0 %v4299
      %4770 = vmatpush1.bf16.msra.mxu0 %v4298
      %4771 = vmatprep.subr.bf16.mxu0 %v4303
      %4772 = vmatpush1.bf16.msra.mxu0 %v4302
      %4773 = vmatprep.subr.bf16.mxu0 %v4307
      %4774 = vmatpush1.bf16.msra.mxu0 %v4306
      %4775 = vmatprep.subr.bf16.mxu0 %v4311
      %4776 = vmatpush1.bf16.msra.mxu0 %v4310
      %4777 = vmatprep.subr.bf16.mxu0 %v4315
      %4778 = vmatpush1.bf16.msra.mxu0 %v4314
      %4779 = vmatprep.subr.bf16.mxu0 %v4319
      %4780 = vmatpush1.bf16.msra.mxu0 %v4318
      %4781 = vmatprep.mubr.bf16.mxu0 %v3143
      %4782 = vmatmul.mubr.bf16.gmra.mrb[0].mxu0 %v3142
      %v4783 = vpop.f32.mrb[0].mxu0
      %v4784 = vadd.f32 %v4741, %v4783
      %v4785 = vpop.f32.mrb[0].mxu0
      %v4786 = vadd.f32 %v4743, %v4785
      %v4787 = vpop.f32.mrb[0].mxu0
      %v4788 = vadd.f32 %v4745, %v4787
      %v4789 = vpop.f32.mrb[0].mxu0
      %v4790 = vadd.f32 %v4747, %v4789
      %4791 = vdwg.mxu0
      %4792 = vmatprep.subr.bf16.mxu0 %v4323
      %4793 = vmatpush1.bf16.msra.mxu0 %v4322
      %4794 = vmatprep.subr.bf16.mxu0 %v4327
      %4795 = vmatpush1.bf16.msra.mxu0 %v4326
      %4796 = vmatprep.subr.bf16.mxu0 %v4331
      %4797 = vmatpush1.bf16.msra.mxu0 %v4330
      %4798 = vmatprep.subr.bf16.mxu0 %v4335
      %4799 = vmatpush1.bf16.msra.mxu0 %v4334
      %4800 = vmatprep.subr.bf16.mxu0 %v4339
      %4801 = vmatpush1.bf16.msra.mxu0 %v4338
      %4802 = vmatprep.subr.bf16.mxu0 %v4343
      %4803 = vmatpush1.bf16.msra.mxu0 %v4342
      %4804 = vmatprep.subr.bf16.mxu0 %v4347
      %4805 = vmatpush1.bf16.msra.mxu0 %v4346
      %4806 = vmatprep.subr.bf16.mxu0 %v4351
      %4807 = vmatpush1.bf16.msra.mxu0 %v4350
      %4808 = vmatprep.subr.bf16.mxu0 %v4355
      %4809 = vmatpush1.bf16.msra.mxu0 %v4354
      %4810 = vmatprep.subr.bf16.mxu0 %v4359
      %4811 = vmatpush1.bf16.msra.mxu0 %v4358
      %4812 = vmatprep.subr.bf16.mxu0 %v4363
      %4813 = vmatpush1.bf16.msra.mxu0 %v4362
      %4814 = vmatprep.subr.bf16.mxu0 %v4367
      %4815 = vmatpush1.bf16.msra.mxu0 %v4366
      %4816 = vmatprep.subr.bf16.mxu0 %v4371
      %4817 = vmatpush1.bf16.msra.mxu0 %v4370
      %4818 = vmatprep.subr.bf16.mxu0 %v4375
      %4819 = vmatpush1.bf16.msra.mxu0 %v4374
      %4820 = vmatprep.subr.bf16.mxu0 %v4379
      %4821 = vmatpush1.bf16.msra.mxu0 %v4378
      %4822 = vmatprep.subr.bf16.mxu0 %v4383
      %4823 = vmatpush1.bf16.msra.mxu0 %v4382
      %4824 = vmatprep.mubr.bf16.mxu0 %v3145
      %4825 = vmatmul.mubr.bf16.gmra.mrb[0].mxu0 %v3144
      %v4826 = vpop.f32.mrb[0].mxu0
      %v4827 = vadd.f32 %v4784, %v4826
      %v4828 = vpop.f32.mrb[0].mxu0
      %v4829 = vadd.f32 %v4786, %v4828
      %v4830 = vpop.f32.mrb[0].mxu0
      %v4831 = vadd.f32 %v4788, %v4830
      %v4832 = vpop.f32.mrb[0].mxu0
      %v4833 = vadd.f32 %v4790, %v4832
      %4834 = vdwg.mxu0
      %4835 = vmatprep.subr.bf16.mxu0 %v4387
      %4836 = vmatpush1.bf16.msra.mxu0 %v4386
      %4837 = vmatprep.subr.bf16.mxu0 %v4391
      %4838 = vmatpush1.bf16.msra.mxu0 %v4390
      %4839 = vmatprep.subr.bf16.mxu0 %v4395
      %4840 = vmatpush1.bf16.msra.mxu0 %v4394
      %4841 = vmatprep.subr.bf16.mxu0 %v4399
      %4842 = vmatpush1.bf16.msra.mxu0 %v4398
      %4843 = vmatprep.subr.bf16.mxu0 %v4403
      %4844 = vmatpush1.bf16.msra.mxu0 %v4402
      %4845 = vmatprep.subr.bf16.mxu0 %v4407
      %4846 = vmatpush1.bf16.msra.mxu0 %v4406
      %4847 = vmatprep.subr.bf16.mxu0 %v4411
      %4848 = vmatpush1.bf16.msra.mxu0 %v4410
      %4849 = vmatprep.subr.bf16.mxu0 %v4415
      %4850 = vmatpush1.bf16.msra.mxu0 %v4414
      %4851 = vmatprep.subr.bf16.mxu0 %v4419
      %4852 = vmatpush1.bf16.msra.mxu0 %v4418
      %4853 = vmatprep.subr.bf16.mxu0 %v4423
      %4854 = vmatpush1.bf16.msra.mxu0 %v4422
      %4855 = vmatprep.subr.bf16.mxu0 %v4427
      %4856 = vmatpush1.bf16.msra.mxu0 %v4426
      %4857 = vmatprep.subr.bf16.mxu0 %v4431
      %4858 = vmatpush1.bf16.msra.mxu0 %v4430
      %4859 = vmatprep.subr.bf16.mxu0 %v4435
      %4860 = vmatpush1.bf16.msra.mxu0 %v4434
      %4861 = vmatprep.subr.bf16.mxu0 %v4439
      %4862 = vmatpush1.bf16.msra.mxu0 %v4438
      %4863 = vmatprep.subr.bf16.mxu0 %v4443
      %4864 = vmatpush1.bf16.msra.mxu0 %v4442
      %4865 = vmatprep.subr.bf16.mxu0 %v4447
      %4866 = vmatpush1.bf16.msra.mxu0 %v4446
      %4867 = vmatprep.mubr.bf16.mxu0 %v3147
      %4868 = vmatmul.mubr.bf16.gmra.mrb[0].mxu0 %v3146
      %v4869 = vpop.f32.mrb[0].mxu0
      %v4870 = vadd.f32 %v4827, %v4869
      %v4871 = vpop.f32.mrb[0].mxu0
      %v4872 = vadd.f32 %v4829, %v4871
      %v4873 = vpop.f32.mrb[0].mxu0
      %v4874 = vadd.f32 %v4831, %v4873
      %v4875 = vpop.f32.mrb[0].mxu0
      %v4876 = vadd.f32 %v4833, %v4875
      %4877 = vdwg.mxu0
      %4878 = vmatprep.subr.bf16.mxu0 %v4197
      %4879 = vmatpush1.bf16.msra.mxu0 %v4196
      %4880 = vmatprep.subr.bf16.mxu0 %v4201
      %4881 = vmatpush1.bf16.msra.mxu0 %v4200
      %4882 = vmatprep.subr.bf16.mxu0 %v4205
      %4883 = vmatpush1.bf16.msra.mxu0 %v4204
      %4884 = vmatprep.subr.bf16.mxu0 %v4209
      %4885 = vmatpush1.bf16.msra.mxu0 %v4208
      %4886 = vmatprep.subr.bf16.mxu0 %v4213
      %4887 = vmatpush1.bf16.msra.mxu0 %v4212
      %4888 = vmatprep.subr.bf16.mxu0 %v4217
      %4889 = vmatpush1.bf16.msra.mxu0 %v4216
      %4890 = vmatprep.subr.bf16.mxu0 %v4221
      %4891 = vmatpush1.bf16.msra.mxu0 %v4220
      %4892 = vmatprep.subr.bf16.mxu0 %v4225
      %4893 = vmatpush1.bf16.msra.mxu0 %v4224
      %4894 = vmatprep.subr.bf16.mxu0 %v4229
      %4895 = vmatpush1.bf16.msra.mxu0 %v4228
      %4896 = vmatprep.subr.bf16.mxu0 %v4233
      %4897 = vmatpush1.bf16.msra.mxu0 %v4232
      %4898 = vmatprep.subr.bf16.mxu0 %v4237
      %4899 = vmatpush1.bf16.msra.mxu0 %v4236
      %4900 = vmatprep.subr.bf16.mxu0 %v4241
      %4901 = vmatpush1.bf16.msra.mxu0 %v4240
      %4902 = vmatprep.subr.bf16.mxu0 %v4245
      %4903 = vmatpush1.bf16.msra.mxu0 %v4244
      %4904 = vmatprep.subr.bf16.mxu0 %v4249
      %4905 = vmatpush1.bf16.msra.mxu0 %v4248
      %4906 = vmatprep.subr.bf16.mxu0 %v4253
      %4907 = vmatpush1.bf16.msra.mxu0 %v4252
      %4908 = vmatprep.subr.bf16.mxu0 %v4257
      %4909 = vmatpush1.bf16.msra.mxu0 %v4256
      %4910 = vmatprep.mubr.bf16.mxu0 %v3141
      %4911 = vmatmul.mubr.bf16.gmra.mrb[0].mxu0 %v3140
      %v4912 = vpop.f32.mrb[0].mxu0
      %v4913 = vadd.f32 %v3417, %v4912
      %v4914 = vpop.f32.mrb[0].mxu0
      %v4915 = vadd.f32 %v3421, %v4914
      %v4916 = vpop.f32.mrb[0].mxu0
      %v4917 = vadd.f32 %v3417, %v4916
      %v4918 = vpop.f32.mrb[0].mxu0
      %v4919 = vadd.f32 %v3421, %v4918
      %4920 = vdwg.mxu0
      %4921 = vmatprep.subr.bf16.mxu0 %v4261
      %4922 = vmatpush1.bf16.msra.mxu0 %v4260
      %4923 = vmatprep.subr.bf16.mxu0 %v4265
      %4924 = vmatpush1.bf16.msra.mxu0 %v4264
      %4925 = vmatprep.subr.bf16.mxu0 %v4269
      %4926 = vmatpush1.bf16.msra.mxu0 %v4268
      %4927 = vmatprep.subr.bf16.mxu0 %v4273
      %4928 = vmatpush1.bf16.msra.mxu0 %v4272
      %4929 = vmatprep.subr.bf16.mxu0 %v4277
      %4930 = vmatpush1.bf16.msra.mxu0 %v4276
      %4931 = vmatprep.subr.bf16.mxu0 %v4281
      %4932 = vmatpush1.bf16.msra.mxu0 %v4280
      %4933 = vmatprep.subr.bf16.mxu0 %v4285
      %4934 = vmatpush1.bf16.msra.mxu0 %v4284
      %4935 = vmatprep.subr.bf16.mxu0 %v4289
      %4936 = vmatpush1.bf16.msra.mxu0 %v4288
      %4937 = vmatprep.subr.bf16.mxu0 %v4293
      %4938 = vmatpush1.bf16.msra.mxu0 %v4292
      %4939 = vmatprep.subr.bf16.mxu0 %v4297
      %4940 = vmatpush1.bf16.msra.mxu0 %v4296
      %4941 = vmatprep.subr.bf16.mxu0 %v4301
      %4942 = vmatpush1.bf16.msra.mxu0 %v4300
      %4943 = vmatprep.subr.bf16.mxu0 %v4305
      %4944 = vmatpush1.bf16.msra.mxu0 %v4304
      %4945 = vmatprep.subr.bf16.mxu0 %v4309
      %4946 = vmatpush1.bf16.msra.mxu0 %v4308
      %4947 = vmatprep.subr.bf16.mxu0 %v4313
      %4948 = vmatpush1.bf16.msra.mxu0 %v4312
      %4949 = vmatprep.subr.bf16.mxu0 %v4317
      %4950 = vmatpush1.bf16.msra.mxu0 %v4316
      %4951 = vmatprep.subr.bf16.mxu0 %v4321
      %4952 = vmatpush1.bf16.msra.mxu0 %v4320
      %4953 = vmatprep.mubr.bf16.mxu0 %v3143
      %4954 = vmatmul.mubr.bf16.gmra.mrb[0].mxu0 %v3142
      %v4955 = vpop.f32.mrb[0].mxu0
      %v4956 = vadd.f32 %v4913, %v4955
      %v4957 = vpop.f32.mrb[0].mxu0
      %v4958 = vadd.f32 %v4915, %v4957
      %v4959 = vpop.f32.mrb[0].mxu0
      %v4960 = vadd.f32 %v4917, %v4959
      %v4961 = vpop.f32.mrb[0].mxu0
      %v4962 = vadd.f32 %v4919, %v4961
      %4963 = vdwg.mxu0
      %4964 = vmatprep.subr.bf16.mxu0 %v4325
      %4965 = vmatpush1.bf16.msra.mxu0 %v4324
      %4966 = vmatprep.subr.bf16.mxu0 %v4329
      %4967 = vmatpush1.bf16.msra.mxu0 %v4328
      %4968 = vmatprep.subr.bf16.mxu0 %v4333
      %4969 = vmatpush1.bf16.msra.mxu0 %v4332
      %4970 = vmatprep.subr.bf16.mxu0 %v4337
      %4971 = vmatpush1.bf16.msra.mxu0 %v4336
      %4972 = vmatprep.subr.bf16.mxu0 %v4341
      %4973 = vmatpush1.bf16.msra.mxu0 %v4340
      %4974 = vmatprep.subr.bf16.mxu0 %v4345
      %4975 = vmatpush1.bf16.msra.mxu0 %v4344
      %4976 = vmatprep.subr.bf16.mxu0 %v4349
      %4977 = vmatpush1.bf16.msra.mxu0 %v4348
      %4978 = vmatprep.subr.bf16.mxu0 %v4353
      %4979 = vmatpush1.bf16.msra.mxu0 %v4352
      %4980 = vmatprep.subr.bf16.mxu0 %v4357
      %4981 = vmatpush1.bf16.msra.mxu0 %v4356
      %4982 = vmatprep.subr.bf16.mxu0 %v4361
      %4983 = vmatpush1.bf16.msra.mxu0 %v4360
      %4984 = vmatprep.subr.bf16.mxu0 %v4365
      %4985 = vmatpush1.bf16.msra.mxu0 %v4364
      %4986 = vmatprep.subr.bf16.mxu0 %v4369
      %4987 = vmatpush1.bf16.msra.mxu0 %v4368
      %4988 = vmatprep.subr.bf16.mxu0 %v4373
      %4989 = vmatpush1.bf16.msra.mxu0 %v4372
      %4990 = vmatprep.subr.bf16.mxu0 %v4377
      %4991 = vmatpush1.bf16.msra.mxu0 %v4376
      %4992 = vmatprep.subr.bf16.mxu0 %v4381
      %4993 = vmatpush1.bf16.msra.mxu0 %v4380
      %4994 = vmatprep.subr.bf16.mxu0 %v4385
      %4995 = vmatpush1.bf16.msra.mxu0 %v4384
      %4996 = vmatprep.mubr.bf16.mxu0 %v3145
      %4997 = vmatmul.mubr.bf16.gmra.mrb[0].mxu0 %v3144
      %v4998 = vpop.f32.mrb[0].mxu0
      %v4999 = vadd.f32 %v4956, %v4998
      %v5000 = vpop.f32.mrb[0].mxu0
      %v5001 = vadd.f32 %v4958, %v5000
      %v5002 = vpop.f32.mrb[0].mxu0
      %v5003 = vadd.f32 %v4960, %v5002
      %v5004 = vpop.f32.mrb[0].mxu0
      %v5005 = vadd.f32 %v4962, %v5004
      %5006 = vdwg.mxu0
      %5007 = vmatprep.subr.bf16.mxu0 %v4389
      %5008 = vmatpush1.bf16.msra.mxu0 %v4388
      %5009 = vmatprep.subr.bf16.mxu0 %v4393
      %5010 = vmatpush1.bf16.msra.mxu0 %v4392
      %5011 = vmatprep.subr.bf16.mxu0 %v4397
      %5012 = vmatpush1.bf16.msra.mxu0 %v4396
      %5013 = vmatprep.subr.bf16.mxu0 %v4401
      %5014 = vmatpush1.bf16.msra.mxu0 %v4400
      %5015 = vmatprep.subr.bf16.mxu0 %v4405
      %5016 = vmatpush1.bf16.msra.mxu0 %v4404
      %5017 = vmatprep.subr.bf16.mxu0 %v4409
      %5018 = vmatpush1.bf16.msra.mxu0 %v4408
      %5019 = vmatprep.subr.bf16.mxu0 %v4413
      %5020 = vmatpush1.bf16.msra.mxu0 %v4412
      %5021 = vmatprep.subr.bf16.mxu0 %v4417
      %5022 = vmatpush1.bf16.msra.mxu0 %v4416
      %5023 = vmatprep.subr.bf16.mxu0 %v4421
      %5024 = vmatpush1.bf16.msra.mxu0 %v4420
      %5025 = vmatprep.subr.bf16.mxu0 %v4425
      %5026 = vmatpush1.bf16.msra.mxu0 %v4424
      %5027 = vmatprep.subr.bf16.mxu0 %v4429
      %5028 = vmatpush1.bf16.msra.mxu0 %v4428
      %5029 = vmatprep.subr.bf16.mxu0 %v4433
      %5030 = vmatpush1.bf16.msra.mxu0 %v4432
      %5031 = vmatprep.subr.bf16.mxu0 %v4437
      %5032 = vmatpush1.bf16.msra.mxu0 %v4436
      %5033 = vmatprep.subr.bf16.mxu0 %v4441
      %5034 = vmatpush1.bf16.msra.mxu0 %v4440
      %5035 = vmatprep.subr.bf16.mxu0 %v4445
      %5036 = vmatpush1.bf16.msra.mxu0 %v4444
      %5037 = vmatprep.subr.bf16.mxu0 %v4449
      %5038 = vmatpush1.bf16.msra.mxu0 %v4448
      %5039 = vmatprep.mubr.bf16.mxu0 %v3147
      %5040 = vmatmul.mubr.bf16.gmra.mrb[0].mxu0 %v3146
      %v5041 = vpop.f32.mrb[0].mxu0
      %v5042 = vadd.f32 %v4999, %v5041
      %v5043 = vpop.f32.mrb[0].mxu0
      %v5044 = vadd.f32 %v5001, %v5043
      %v5045 = vpop.f32.mrb[0].mxu0
      %v5046 = vadd.f32 %v5003, %v5045
      %v5047 = vpop.f32.mrb[0].mxu0
      %v5048 = vadd.f32 %v5005, %v5047
      %5049 = vdwg.mxu0
      %vm5050 = vcmp.gt.f32.partialorder %v4870, 0.0
      %vm5051 = vcmp.gt.f32.partialorder %v4872, 0.0
      %vm5052 = vcmp.gt.f32.partialorder %v5042, 0.0
      %vm5053 = vcmp.gt.f32.partialorder %v5044, 0.0
      %vm5054 = vcmp.gt.f32.partialorder %v4874, 0.0
      %vm5055 = vcmp.gt.f32.partialorder %v4876, 0.0
      %vm5056 = vcmp.gt.f32.partialorder %v5046, 0.0
      %vm5057 = vcmp.gt.f32.partialorder %v5048, 0.0
      %v5058 = vmul.f32 %v4870, 0.01
      %v5059 = vmul.f32 %v4872, 0.01
      %v5060 = vmul.f32 %v5042, 0.01
      %v5061 = vmul.f32 %v5044, 0.01
      %v5062 = vmul.f32 %v4874, 0.01
      %v5063 = vmul.f32 %v4876, 0.01
      %v5064 = vmul.f32 %v5046, 0.01
      %v5065 = vmul.f32 %v5048, 0.01
      %v5066 = vsel %vm5050, %v4870, %v5058
      %v5067 = vsel %vm5051, %v4872, %v5059
      %v5068 = vsel %vm5052, %v5042, %v5060
      %v5069 = vsel %vm5053, %v5044, %v5061
      %v5070 = vsel %vm5054, %v4874, %v5062
      %v5071 = vsel %vm5055, %v4876, %v5063
      %v5072 = vsel %vm5056, %v5046, %v5064
      %v5073 = vsel %vm5057, %v5048, %v5065
      %v5074 = vpack.c.bf16 %v5070, %v5066
      %v5075 = vpack.c.bf16 %v5071, %v5067
      %v5076 = vpack.c.bf16 %v5072, %v5068
      %v5077 = vpack.c.bf16 %v5073, %v5069
      %v5078 = vld [vmem:[#allocation10] sm:$0xff]
      %v5079 = vld [vmem:[#allocation10 + $0x8] sm:$0xff]
      %v5080 = vld [vmem:[#allocation10 + $0x10] sm:$0xff]
      %v5081 = vld [vmem:[#allocation10 + $0x18] sm:$0xff]
      %v5082 = vld [vmem:[#allocation10 + $0x20] sm:$0xff]
      %v5083 = vld [vmem:[#allocation10 + $0x28] sm:$0xff]
      %v5084 = vld [vmem:[#allocation10 + $0x30] sm:$0xff]
      %v5085 = vld [vmem:[#allocation10 + $0x38] sm:$0xff]
      %v5086 = vld [vmem:[#allocation10 + $0x40] sm:$0xff]
      %v5087 = vld [vmem:[#allocation10 + $0x48] sm:$0xff]
      %v5088 = vld [vmem:[#allocation10 + $0x50] sm:$0xff]
      %v5089 = vld [vmem:[#allocation10 + $0x58] sm:$0xff]
      %v5090 = vld [vmem:[#allocation10 + $0x60] sm:$0xff]
      %v5091 = vld [vmem:[#allocation10 + $0x68] sm:$0xff]
      %v5092 = vld [vmem:[#allocation10 + $0x70] sm:$0xff]
      %v5093 = vld [vmem:[#allocation10 + $0x78] sm:$0xff]
      %v5094 = vld [vmem:[#allocation10 + $0x80] sm:$0xff]
      %v5095 = vld [vmem:[#allocation10 + $0x88] sm:$0xff]
      %v5096 = vld [vmem:[#allocation10 + $0x90] sm:$0xff]
      %v5097 = vld [vmem:[#allocation10 + $0x98] sm:$0xff]
      %v5098 = vld [vmem:[#allocation10 + $0xa0] sm:$0xff]
      %v5099 = vld [vmem:[#allocation10 + $0xa8] sm:$0xff]
      %v5100 = vld [vmem:[#allocation10 + $0xb0] sm:$0xff]
      %v5101 = vld [vmem:[#allocation10 + $0xb8] sm:$0xff]
      %v5102 = vld [vmem:[#allocation10 + $0xc0] sm:$0xff]
      %v5103 = vld [vmem:[#allocation10 + $0xc8] sm:$0xff]
      %v5104 = vld [vmem:[#allocation10 + $0xd0] sm:$0xff]
      %v5105 = vld [vmem:[#allocation10 + $0xd8] sm:$0xff]
      %v5106 = vld [vmem:[#allocation10 + $0xe0] sm:$0xff]
      %v5107 = vld [vmem:[#allocation10 + $0xe8] sm:$0xff]
      %v5108 = vld [vmem:[#allocation10 + $0xf0] sm:$0xff]
      %v5109 = vld [vmem:[#allocation10 + $0xf8] sm:$0xff]
      %v5110 = vld [vmem:[#allocation10 + $0x100] sm:$0xff]
      %v5111 = vld [vmem:[#allocation10 + $0x108] sm:$0xff]
      %v5112 = vld [vmem:[#allocation10 + $0x110] sm:$0xff]
      %v5113 = vld [vmem:[#allocation10 + $0x118] sm:$0xff]
      %v5114 = vld [vmem:[#allocation10 + $0x120] sm:$0xff]
      %v5115 = vld [vmem:[#allocation10 + $0x128] sm:$0xff]
      %v5116 = vld [vmem:[#allocation10 + $0x130] sm:$0xff]
      %v5117 = vld [vmem:[#allocation10 + $0x138] sm:$0xff]
      %v5118 = vld [vmem:[#allocation10 + $0x140] sm:$0xff]
      %v5119 = vld [vmem:[#allocation10 + $0x148] sm:$0xff]
      %v5120 = vld [vmem:[#allocation10 + $0x150] sm:$0xff]
      %v5121 = vld [vmem:[#allocation10 + $0x158] sm:$0xff]
      %v5122 = vld [vmem:[#allocation10 + $0x160] sm:$0xff]
      %v5123 = vld [vmem:[#allocation10 + $0x168] sm:$0xff]
      %v5124 = vld [vmem:[#allocation10 + $0x170] sm:$0xff]
      %v5125 = vld [vmem:[#allocation10 + $0x178] sm:$0xff]
      %v5126 = vld [vmem:[#allocation10 + $0x180] sm:$0xff]
      %v5127 = vld [vmem:[#allocation10 + $0x188] sm:$0xff]
      %v5128 = vld [vmem:[#allocation10 + $0x190] sm:$0xff]
      %v5129 = vld [vmem:[#allocation10 + $0x198] sm:$0xff]
      %v5130 = vld [vmem:[#allocation10 + $0x1a0] sm:$0xff]
      %v5131 = vld [vmem:[#allocation10 + $0x1a8] sm:$0xff]
      %v5132 = vld [vmem:[#allocation10 + $0x1b0] sm:$0xff]
      %v5133 = vld [vmem:[#allocation10 + $0x1b8] sm:$0xff]
      %v5134 = vld [vmem:[#allocation10 + $0x1c0] sm:$0xff]
      %v5135 = vld [vmem:[#allocation10 + $0x1c8] sm:$0xff]
      %v5136 = vld [vmem:[#allocation10 + $0x1d0] sm:$0xff]
      %v5137 = vld [vmem:[#allocation10 + $0x1d8] sm:$0xff]
      %v5138 = vld [vmem:[#allocation10 + $0x1e0] sm:$0xff]
      %v5139 = vld [vmem:[#allocation10 + $0x1e8] sm:$0xff]
      %v5140 = vld [vmem:[#allocation10 + $0x1f0] sm:$0xff]
      %v5141 = vld [vmem:[#allocation10 + $0x1f8] sm:$0xff]
      %v5142 = vld [vmem:[#allocation11] sm:$0x3]
      %v5144 = vlaneseq
      %v5145 = vshrl.u32 %v5144, 7
      %v5146 = vsub.s32 0, %v5145
      %v5147 = vrot.slane %v5142, %v5146
      %v5148 = vlaneseq
      %v5149 = vshrl.u32 %v5148, 7
      %v5150 = vsub.s32 1, %v5149
      %v5151 = vrot.slane %v5142, %v5150
      %v5218 = vunpack.c.l.b16 %v5078
      %v5219 = vunpack.c.h.b16 %v5078
      %v5220 = vunpack.c.l.b16 %v5079
      %v5221 = vunpack.c.h.b16 %v5079
      %v5222 = vunpack.c.l.b16 %v5080
      %v5223 = vunpack.c.h.b16 %v5080
      %v5224 = vunpack.c.l.b16 %v5081
      %v5225 = vunpack.c.h.b16 %v5081
      %v5226 = vunpack.c.l.b16 %v5082
      %v5227 = vunpack.c.h.b16 %v5082
      %v5228 = vunpack.c.l.b16 %v5083
      %v5229 = vunpack.c.h.b16 %v5083
      %v5230 = vunpack.c.l.b16 %v5084
      %v5231 = vunpack.c.h.b16 %v5084
      %v5232 = vunpack.c.l.b16 %v5085
      %v5233 = vunpack.c.h.b16 %v5085
      %v5234 = vunpack.c.l.b16 %v5086
      %v5235 = vunpack.c.h.b16 %v5086
      %v5236 = vunpack.c.l.b16 %v5087
      %v5237 = vunpack.c.h.b16 %v5087
      %v5238 = vunpack.c.l.b16 %v5088
      %v5239 = vunpack.c.h.b16 %v5088
      %v5240 = vunpack.c.l.b16 %v5089
      %v5241 = vunpack.c.h.b16 %v5089
      %v5242 = vunpack.c.l.b16 %v5090
      %v5243 = vunpack.c.h.b16 %v5090
      %v5244 = vunpack.c.l.b16 %v5091
      %v5245 = vunpack.c.h.b16 %v5091
      %v5246 = vunpack.c.l.b16 %v5092
      %v5247 = vunpack.c.h.b16 %v5092
      %v5248 = vunpack.c.l.b16 %v5093
      %v5249 = vunpack.c.h.b16 %v5093
      %v5250 = vunpack.c.l.b16 %v5094
      %v5251 = vunpack.c.h.b16 %v5094
      %v5252 = vunpack.c.l.b16 %v5095
      %v5253 = vunpack.c.h.b16 %v5095
      %v5254 = vunpack.c.l.b16 %v5096
      %v5255 = vunpack.c.h.b16 %v5096
      %v5256 = vunpack.c.l.b16 %v5097
      %v5257 = vunpack.c.h.b16 %v5097
      %v5258 = vunpack.c.l.b16 %v5098
      %v5259 = vunpack.c.h.b16 %v5098
      %v5260 = vunpack.c.l.b16 %v5099
      %v5261 = vunpack.c.h.b16 %v5099
      %v5262 = vunpack.c.l.b16 %v5100
      %v5263 = vunpack.c.h.b16 %v5100
      %v5264 = vunpack.c.l.b16 %v5101
      %v5265 = vunpack.c.h.b16 %v5101
      %v5266 = vunpack.c.l.b16 %v5102
      %v5267 = vunpack.c.h.b16 %v5102
      %v5268 = vunpack.c.l.b16 %v5103
      %v5269 = vunpack.c.h.b16 %v5103
      %v5270 = vunpack.c.l.b16 %v5104
      %v5271 = vunpack.c.h.b16 %v5104
      %v5272 = vunpack.c.l.b16 %v5105
      %v5273 = vunpack.c.h.b16 %v5105
      %v5274 = vunpack.c.l.b16 %v5106
      %v5275 = vunpack.c.h.b16 %v5106
      %v5276 = vunpack.c.l.b16 %v5107
      %v5277 = vunpack.c.h.b16 %v5107
      %v5278 = vunpack.c.l.b16 %v5108
      %v5279 = vunpack.c.h.b16 %v5108
      %v5280 = vunpack.c.l.b16 %v5109
      %v5281 = vunpack.c.h.b16 %v5109
      %v5282 = vunpack.c.l.b16 %v5110
      %v5283 = vunpack.c.h.b16 %v5110
      %v5284 = vunpack.c.l.b16 %v5111
      %v5285 = vunpack.c.h.b16 %v5111
      %v5286 = vunpack.c.l.b16 %v5112
      %v5287 = vunpack.c.h.b16 %v5112
      %v5288 = vunpack.c.l.b16 %v5113
      %v5289 = vunpack.c.h.b16 %v5113
      %v5290 = vunpack.c.l.b16 %v5114
      %v5291 = vunpack.c.h.b16 %v5114
      %v5292 = vunpack.c.l.b16 %v5115
      %v5293 = vunpack.c.h.b16 %v5115
      %v5294 = vunpack.c.l.b16 %v5116
      %v5295 = vunpack.c.h.b16 %v5116
      %v5296 = vunpack.c.l.b16 %v5117
      %v5297 = vunpack.c.h.b16 %v5117
      %v5298 = vunpack.c.l.b16 %v5118
      %v5299 = vunpack.c.h.b16 %v5118
      %v5300 = vunpack.c.l.b16 %v5119
      %v5301 = vunpack.c.h.b16 %v5119
      %v5302 = vunpack.c.l.b16 %v5120
      %v5303 = vunpack.c.h.b16 %v5120
      %v5304 = vunpack.c.l.b16 %v5121
      %v5305 = vunpack.c.h.b16 %v5121
      %v5306 = vunpack.c.l.b16 %v5122
      %v5307 = vunpack.c.h.b16 %v5122
      %v5308 = vunpack.c.l.b16 %v5123
      %v5309 = vunpack.c.h.b16 %v5123
      %v5310 = vunpack.c.l.b16 %v5124
      %v5311 = vunpack.c.h.b16 %v5124
      %v5312 = vunpack.c.l.b16 %v5125
      %v5313 = vunpack.c.h.b16 %v5125
      %v5314 = vunpack.c.l.b16 %v5126
      %v5315 = vunpack.c.h.b16 %v5126
      %v5316 = vunpack.c.l.b16 %v5127
      %v5317 = vunpack.c.h.b16 %v5127
      %v5318 = vunpack.c.l.b16 %v5128
      %v5319 = vunpack.c.h.b16 %v5128
      %v5320 = vunpack.c.l.b16 %v5129
      %v5321 = vunpack.c.h.b16 %v5129
      %v5322 = vunpack.c.l.b16 %v5130
      %v5323 = vunpack.c.h.b16 %v5130
      %v5324 = vunpack.c.l.b16 %v5131
      %v5325 = vunpack.c.h.b16 %v5131
      %v5326 = vunpack.c.l.b16 %v5132
      %v5327 = vunpack.c.h.b16 %v5132
      %v5328 = vunpack.c.l.b16 %v5133
      %v5329 = vunpack.c.h.b16 %v5133
      %v5330 = vunpack.c.l.b16 %v5134
      %v5331 = vunpack.c.h.b16 %v5134
      %v5332 = vunpack.c.l.b16 %v5135
      %v5333 = vunpack.c.h.b16 %v5135
      %v5334 = vunpack.c.l.b16 %v5136
      %v5335 = vunpack.c.h.b16 %v5136
      %v5336 = vunpack.c.l.b16 %v5137
      %v5337 = vunpack.c.h.b16 %v5137
      %v5338 = vunpack.c.l.b16 %v5138
      %v5339 = vunpack.c.h.b16 %v5138
      %v5340 = vunpack.c.l.b16 %v5139
      %v5341 = vunpack.c.h.b16 %v5139
      %v5342 = vunpack.c.l.b16 %v5140
      %v5343 = vunpack.c.h.b16 %v5140
      %v5344 = vunpack.c.l.b16 %v5141
      %v5345 = vunpack.c.h.b16 %v5141
      %v5346 = vpack.c.b16 %v5220, %v5218
      %v5347 = vpack.c.b16 %v5221, %v5219
      %v5348 = vpack.c.b16 %v5224, %v5222
      %v5349 = vpack.c.b16 %v5225, %v5223
      %v5350 = vpack.c.b16 %v5228, %v5226
      %v5351 = vpack.c.b16 %v5229, %v5227
      %v5352 = vpack.c.b16 %v5232, %v5230
      %v5353 = vpack.c.b16 %v5233, %v5231
      %v5354 = vpack.c.b16 %v5236, %v5234
      %v5355 = vpack.c.b16 %v5237, %v5235
      %v5356 = vpack.c.b16 %v5240, %v5238
      %v5357 = vpack.c.b16 %v5241, %v5239
      %v5358 = vpack.c.b16 %v5244, %v5242
      %v5359 = vpack.c.b16 %v5245, %v5243
      %v5360 = vpack.c.b16 %v5248, %v5246
      %v5361 = vpack.c.b16 %v5249, %v5247
      %v5362 = vpack.c.b16 %v5252, %v5250
      %v5363 = vpack.c.b16 %v5253, %v5251
      %v5364 = vpack.c.b16 %v5256, %v5254
      %v5365 = vpack.c.b16 %v5257, %v5255
      %v5366 = vpack.c.b16 %v5260, %v5258
      %v5367 = vpack.c.b16 %v5261, %v5259
      %v5368 = vpack.c.b16 %v5264, %v5262
      %v5369 = vpack.c.b16 %v5265, %v5263
      %v5370 = vpack.c.b16 %v5268, %v5266
      %v5371 = vpack.c.b16 %v5269, %v5267
      %v5372 = vpack.c.b16 %v5272, %v5270
      %v5373 = vpack.c.b16 %v5273, %v5271
      %v5374 = vpack.c.b16 %v5276, %v5274
      %v5375 = vpack.c.b16 %v5277, %v5275
      %v5376 = vpack.c.b16 %v5280, %v5278
      %v5377 = vpack.c.b16 %v5281, %v5279
      %v5378 = vpack.c.b16 %v5284, %v5282
      %v5379 = vpack.c.b16 %v5285, %v5283
      %v5380 = vpack.c.b16 %v5288, %v5286
      %v5381 = vpack.c.b16 %v5289, %v5287
      %v5382 = vpack.c.b16 %v5292, %v5290
      %v5383 = vpack.c.b16 %v5293, %v5291
      %v5384 = vpack.c.b16 %v5296, %v5294
      %v5385 = vpack.c.b16 %v5297, %v5295
      %v5386 = vpack.c.b16 %v5300, %v5298
      %v5387 = vpack.c.b16 %v5301, %v5299
      %v5388 = vpack.c.b16 %v5304, %v5302
      %v5389 = vpack.c.b16 %v5305, %v5303
      %v5390 = vpack.c.b16 %v5308, %v5306
      %v5391 = vpack.c.b16 %v5309, %v5307
      %v5392 = vpack.c.b16 %v5312, %v5310
      %v5393 = vpack.c.b16 %v5313, %v5311
      %v5394 = vpack.c.b16 %v5316, %v5314
      %v5395 = vpack.c.b16 %v5317, %v5315
      %v5396 = vpack.c.b16 %v5320, %v5318
      %v5397 = vpack.c.b16 %v5321, %v5319
      %v5398 = vpack.c.b16 %v5324, %v5322
      %v5399 = vpack.c.b16 %v5325, %v5323
      %v5400 = vpack.c.b16 %v5328, %v5326
      %v5401 = vpack.c.b16 %v5329, %v5327
      %v5402 = vpack.c.b16 %v5332, %v5330
      %v5403 = vpack.c.b16 %v5333, %v5331
      %v5404 = vpack.c.b16 %v5336, %v5334
      %v5405 = vpack.c.b16 %v5337, %v5335
      %v5406 = vpack.c.b16 %v5340, %v5338
      %v5407 = vpack.c.b16 %v5341, %v5339
      %v5408 = vpack.c.b16 %v5344, %v5342
      %v5409 = vpack.c.b16 %v5345, %v5343
      %5474 = vmatprep.subr.bf16.mxu0 %v5347
      %5475 = vmatpush1.bf16.msra.mxu0 %v5346
      %5476 = vmatprep.subr.bf16.mxu0 %v5349
      %5477 = vmatpush1.bf16.msra.mxu0 %v5348
      %5478 = vmatprep.subr.bf16.mxu0 %v5351
      %5479 = vmatpush1.bf16.msra.mxu0 %v5350
      %5480 = vmatprep.subr.bf16.mxu0 %v5353
      %5481 = vmatpush1.bf16.msra.mxu0 %v5352
      %5482 = vmatprep.subr.bf16.mxu0 %v5355
      %5483 = vmatpush1.bf16.msra.mxu0 %v5354
      %5484 = vmatprep.subr.bf16.mxu0 %v5357
      %5485 = vmatpush1.bf16.msra.mxu0 %v5356
      %5486 = vmatprep.subr.bf16.mxu0 %v5359
      %5487 = vmatpush1.bf16.msra.mxu0 %v5358
      %5488 = vmatprep.subr.bf16.mxu0 %v5361
      %5489 = vmatpush1.bf16.msra.mxu0 %v5360
      %5490 = vmatprep.subr.bf16.mxu0 %v5363
      %5491 = vmatpush1.bf16.msra.mxu0 %v5362
      %5492 = vmatprep.subr.bf16.mxu0 %v5365
      %5493 = vmatpush1.bf16.msra.mxu0 %v5364
      %5494 = vmatprep.subr.bf16.mxu0 %v5367
      %5495 = vmatpush1.bf16.msra.mxu0 %v5366
      %5496 = vmatprep.subr.bf16.mxu0 %v5369
      %5497 = vmatpush1.bf16.msra.mxu0 %v5368
      %5498 = vmatprep.subr.bf16.mxu0 %v5371
      %5499 = vmatpush1.bf16.msra.mxu0 %v5370
      %5500 = vmatprep.subr.bf16.mxu0 %v5373
      %5501 = vmatpush1.bf16.msra.mxu0 %v5372
      %5502 = vmatprep.subr.bf16.mxu0 %v5375
      %5503 = vmatpush1.bf16.msra.mxu0 %v5374
      %5504 = vmatprep.subr.bf16.mxu0 %v5377
      %5505 = vmatpush1.bf16.msra.mxu0 %v5376
      %5506 = vmatprep.mubr.bf16.mxu0 %v5075
      %5507 = vmatmul.mubr.bf16.gmra.mrb[0].mxu0 %v5074
      %v5508 = vpop.f32.mrb[0].mxu0
      %v5509 = vadd.f32 %v5147, %v5508
      %v5510 = vpop.f32.mrb[0].mxu0
      %v5511 = vadd.f32 %v5151, %v5510
      %v5512 = vpop.f32.mrb[0].mxu0
      %v5513 = vadd.f32 %v5147, %v5512
      %v5514 = vpop.f32.mrb[0].mxu0
      %v5515 = vadd.f32 %v5151, %v5514
      %5516 = vdwg.mxu0
      %5517 = vmatprep.subr.bf16.mxu0 %v5379
      %5518 = vmatpush1.bf16.msra.mxu0 %v5378
      %5519 = vmatprep.subr.bf16.mxu0 %v5381
      %5520 = vmatpush1.bf16.msra.mxu0 %v5380
      %5521 = vmatprep.subr.bf16.mxu0 %v5383
      %5522 = vmatpush1.bf16.msra.mxu0 %v5382
      %5523 = vmatprep.subr.bf16.mxu0 %v5385
      %5524 = vmatpush1.bf16.msra.mxu0 %v5384
      %5525 = vmatprep.subr.bf16.mxu0 %v5387
      %5526 = vmatpush1.bf16.msra.mxu0 %v5386
      %5527 = vmatprep.subr.bf16.mxu0 %v5389
      %5528 = vmatpush1.bf16.msra.mxu0 %v5388
      %5529 = vmatprep.subr.bf16.mxu0 %v5391
      %5530 = vmatpush1.bf16.msra.mxu0 %v5390
      %5531 = vmatprep.subr.bf16.mxu0 %v5393
      %5532 = vmatpush1.bf16.msra.mxu0 %v5392
      %5533 = vmatprep.subr.bf16.mxu0 %v5395
      %5534 = vmatpush1.bf16.msra.mxu0 %v5394
      %5535 = vmatprep.subr.bf16.mxu0 %v5397
      %5536 = vmatpush1.bf16.msra.mxu0 %v5396
      %5537 = vmatprep.subr.bf16.mxu0 %v5399
      %5538 = vmatpush1.bf16.msra.mxu0 %v5398
      %5539 = vmatprep.subr.bf16.mxu0 %v5401
      %5540 = vmatpush1.bf16.msra.mxu0 %v5400
      %5541 = vmatprep.subr.bf16.mxu0 %v5403
      %5542 = vmatpush1.bf16.msra.mxu0 %v5402
      %5543 = vmatprep.subr.bf16.mxu0 %v5405
      %5544 = vmatpush1.bf16.msra.mxu0 %v5404
      %5545 = vmatprep.subr.bf16.mxu0 %v5407
      %5546 = vmatpush1.bf16.msra.mxu0 %v5406
      %5547 = vmatprep.subr.bf16.mxu0 %v5409
      %5548 = vmatpush1.bf16.msra.mxu0 %v5408
      %5549 = vmatprep.mubr.bf16.mxu0 %v5077
      %5550 = vmatmul.mubr.bf16.gmra.mrb[0].mxu0 %v5076
      %v5551 = vpop.f32.mrb[0].mxu0
      %v5552 = vadd.f32 %v5509, %v5551
      %v5553 = vpop.f32.mrb[0].mxu0
      %v5554 = vadd.f32 %v5511, %v5553
      %v5555 = vpop.f32.mrb[0].mxu0
      %v5556 = vadd.f32 %v5513, %v5555
      %v5557 = vpop.f32.mrb[0].mxu0
      %v5558 = vadd.f32 %v5515, %v5557
      %5559 = vdwg.mxu0
      %vm5560 = vcmp.gt.f32.partialorder %v5552, 0.0
      %vm5561 = vcmp.gt.f32.partialorder %v5554, 0.0
      %vm5562 = vcmp.gt.f32.partialorder %v5556, 0.0
      %vm5563 = vcmp.gt.f32.partialorder %v5558, 0.0
      %v5564 = vmul.f32 %v5552, 0.01
      %v5565 = vmul.f32 %v5554, 0.01
      %v5566 = vmul.f32 %v5556, 0.01
      %v5567 = vmul.f32 %v5558, 0.01
      %v5568 = vsel %vm5560, %v5552, %v5564
      %v5569 = vsel %vm5561, %v5554, %v5565
      %v5570 = vsel %vm5562, %v5556, %v5566
      %v5571 = vsel %vm5563, %v5558, %v5567
      %v5572 = vpack.c.bf16 %v5570, %v5568
      %v5573 = vpack.c.bf16 %v5571, %v5569
      %v5574 = vld [vmem:[%s7] sm:$0xf]
      %v5575 = vld [vmem:[%s7 + $0x4] sm:$0xf]
      %v5576 = vld [vmem:[%s7 + $0x8] sm:$0xf]
      %v5577 = vld [vmem:[%s7 + $0xc] sm:$0xf]
      %v5578 = vld [vmem:[%s7 + $0x10] sm:$0xf]
      %v5579 = vld [vmem:[%s7 + $0x14] sm:$0xf]
      %v5580 = vld [vmem:[%s7 + $0x18] sm:$0xf]
      %v5581 = vld [vmem:[%s7 + $0x1c] sm:$0xf]
      %v5582 = vld [vmem:[%s7 + $0x20] sm:$0xf]
      %v5583 = vld [vmem:[%s7 + $0x24] sm:$0xf]
      %v5584 = vld [vmem:[%s7 + $0x28] sm:$0xf]
      %v5585 = vld [vmem:[%s7 + $0x2c] sm:$0xf]
      %v5586 = vld [vmem:[%s7 + $0x30] sm:$0xf]
      %v5587 = vld [vmem:[%s7 + $0x34] sm:$0xf]
      %v5588 = vld [vmem:[%s7 + $0x38] sm:$0xf]
      %v5589 = vld [vmem:[%s7 + $0x3c] sm:$0xf]
      %v5590 = vld [vmem:[%s7 + $0x40] sm:$0xf]
      %v5591 = vld [vmem:[%s7 + $0x44] sm:$0xf]
      %v5592 = vld [vmem:[%s7 + $0x48] sm:$0xf]
      %v5593 = vld [vmem:[%s7 + $0x4c] sm:$0xf]
      %v5594 = vld [vmem:[%s7 + $0x50] sm:$0xf]
      %v5595 = vld [vmem:[%s7 + $0x54] sm:$0xf]
      %v5596 = vld [vmem:[%s7 + $0x58] sm:$0xf]
      %v5597 = vld [vmem:[%s7 + $0x5c] sm:$0xf]
      %v5598 = vld [vmem:[%s7 + $0x60] sm:$0xf]
      %v5599 = vld [vmem:[%s7 + $0x64] sm:$0xf]
      %v5600 = vld [vmem:[%s7 + $0x68] sm:$0xf]
      %v5601 = vld [vmem:[%s7 + $0x6c] sm:$0xf]
      %v5602 = vld [vmem:[%s7 + $0x70] sm:$0xf]
      %v5603 = vld [vmem:[%s7 + $0x74] sm:$0xf]
      %v5604 = vld [vmem:[%s7 + $0x78] sm:$0xf]
      %v5605 = vld [vmem:[%s7 + $0x7c] sm:$0xf]
      %v5606 = vld [vmem:[%s8] sm:$0x1]
      %v5608 = vlaneseq
      %v5609 = vshrl.u32 %v5608, 7
      %v5610 = vsub.s32 0, %v5609
      %v5611 = vrot.slane %v5606, %v5610
      %v5645 = vunpack.c.l.b16 %v5574
      %v5646 = vunpack.c.l.b16 %v5575
      %v5647 = vunpack.c.l.b16 %v5576
      %v5648 = vunpack.c.l.b16 %v5577
      %v5649 = vunpack.c.l.b16 %v5578
      %v5650 = vunpack.c.l.b16 %v5579
      %v5651 = vunpack.c.l.b16 %v5580
      %v5652 = vunpack.c.l.b16 %v5581
      %v5653 = vunpack.c.l.b16 %v5582
      %v5654 = vunpack.c.l.b16 %v5583
      %v5655 = vunpack.c.l.b16 %v5584
      %v5656 = vunpack.c.l.b16 %v5585
      %v5657 = vunpack.c.l.b16 %v5586
      %v5658 = vunpack.c.l.b16 %v5587
      %v5659 = vunpack.c.l.b16 %v5588
      %v5660 = vunpack.c.l.b16 %v5589
      %v5661 = vunpack.c.l.b16 %v5590
      %v5662 = vunpack.c.l.b16 %v5591
      %v5663 = vunpack.c.l.b16 %v5592
      %v5664 = vunpack.c.l.b16 %v5593
      %v5665 = vunpack.c.l.b16 %v5594
      %v5666 = vunpack.c.l.b16 %v5595
      %v5667 = vunpack.c.l.b16 %v5596
      %v5668 = vunpack.c.l.b16 %v5597
      %v5669 = vunpack.c.l.b16 %v5598
      %v5670 = vunpack.c.l.b16 %v5599
      %v5671 = vunpack.c.l.b16 %v5600
      %v5672 = vunpack.c.l.b16 %v5601
      %v5673 = vunpack.c.l.b16 %v5602
      %v5674 = vunpack.c.l.b16 %v5603
      %v5675 = vunpack.c.l.b16 %v5604
      %v5676 = vunpack.c.l.b16 %v5605
      %v5677 = vpack.c.b16 %v5646, %v5645
      %v5678 = vpack.c.b16 %v5648, %v5647
      %v5679 = vpack.c.b16 %v5650, %v5649
      %v5680 = vpack.c.b16 %v5652, %v5651
      %v5681 = vpack.c.b16 %v5654, %v5653
      %v5682 = vpack.c.b16 %v5656, %v5655
      %v5683 = vpack.c.b16 %v5658, %v5657
      %v5684 = vpack.c.b16 %v5660, %v5659
      %v5685 = vpack.c.b16 %v5662, %v5661
      %v5686 = vpack.c.b16 %v5664, %v5663
      %v5687 = vpack.c.b16 %v5666, %v5665
      %v5688 = vpack.c.b16 %v5668, %v5667
      %v5689 = vpack.c.b16 %v5670, %v5669
      %v5690 = vpack.c.b16 %v5672, %v5671
      %v5691 = vpack.c.b16 %v5674, %v5673
      %v5692 = vpack.c.b16 %v5676, %v5675
      %5709 = vmatprep.subr.bf16.mxu0 0
      %5710 = vmatpush1.bf16.msra.mxu0 %v5677
      %5711 = vmatprep.subr.bf16.mxu0 0
      %5712 = vmatpush1.bf16.msra.mxu0 %v5678
      %5713 = vmatprep.subr.bf16.mxu0 0
      %5714 = vmatpush1.bf16.msra.mxu0 %v5679
      %5715 = vmatprep.subr.bf16.mxu0 0
      %5716 = vmatpush1.bf16.msra.mxu0 %v5680
      %5717 = vmatprep.subr.bf16.mxu0 0
      %5718 = vmatpush1.bf16.msra.mxu0 %v5681
      %5719 = vmatprep.subr.bf16.mxu0 0
      %5720 = vmatpush1.bf16.msra.mxu0 %v5682
      %5721 = vmatprep.subr.bf16.mxu0 0
      %5722 = vmatpush1.bf16.msra.mxu0 %v5683
      %5723 = vmatprep.subr.bf16.mxu0 0
      %5724 = vmatpush1.bf16.msra.mxu0 %v5684
      %5725 = vmatprep.subr.bf16.mxu0 0
      %5726 = vmatpush1.bf16.msra.mxu0 %v5685
      %5727 = vmatprep.subr.bf16.mxu0 0
      %5728 = vmatpush1.bf16.msra.mxu0 %v5686
      %5729 = vmatprep.subr.bf16.mxu0 0
      %5730 = vmatpush1.bf16.msra.mxu0 %v5687
      %5731 = vmatprep.subr.bf16.mxu0 0
      %5732 = vmatpush1.bf16.msra.mxu0 %v5688
      %5733 = vmatprep.subr.bf16.mxu0 0
      %5734 = vmatpush1.bf16.msra.mxu0 %v5689
      %5735 = vmatprep.subr.bf16.mxu0 0
      %5736 = vmatpush1.bf16.msra.mxu0 %v5690
      %5737 = vmatprep.subr.bf16.mxu0 0
      %5738 = vmatpush1.bf16.msra.mxu0 %v5691
      %5739 = vmatprep.subr.bf16.mxu0 0
      %5740 = vmatpush1.bf16.msra.mxu0 %v5692
      %5741 = vmatprep.mubr.bf16.mxu0 %v5573
      %5742 = vmatmul.mubr.bf16.gmra.mrb[0].mxu0 %v5572
      %v5743 = vpop.f32.mrb[0].mxu0
      %v5744 = vadd.f32 %v5611, %v5743
      %v5745 = vpop.f32.mrb[0].mxu0
      %v5746 = vpop.f32.mrb[0].mxu0
      %v5747 = vadd.f32 %v5611, %v5746
      %v5748 = vpop.f32.mrb[0].mxu0
      %5749 = vdwg.mxu0
      %v5750 = vxor.u32 %v5744, 2147483648
      %v5751 = vxor.u32 %v5747, 2147483648
      %v5752 = vmul.f32 %v5750, 1.442695
      %v5753 = vpow.pop %v5752
      %v5754 = vmul.f32 %v5751, 1.442695
      %v5755 = vpow.pop %v5754
      %v5756 = vadd.f32 %v5753, 1.0
      %v5757 = vadd.f32 %v5755, 1.0
      %v5758 = vrcp.pop %v5756
      %v5759 = vmul.f32 1.0, %v5758
      %v5760 = vrcp.pop %v5757
      %v5761 = vmul.f32 1.0, %v5760
      %5762 = vst [vmem:[%s9] sm:$0xff] %v5759
      %5763 = vst [vmem:[%s9 + $0x8] sm:$0xff] %v5761
    $region69: #{_discriminator_forward_impl.1} parent=1 // pred_fallthru
      _
    // Predicated region
    $region70: #{_discriminator_forward_impl.1} parent=1 // pred_check
      _
    $region71: #{_discriminator_forward_impl.1} parent=1 // pred_check_branch
      %5765 = sbr.rel (0) target = $region73
    $region72: #{_discriminator_forward_impl.1} parent=1 // pred_region
      _
    $region73: #{_discriminator_forward_impl.1} parent=1 // pred_fallthru
      _
    // Predicated region
    $region74: #{_discriminator_forward_impl.1} parent=1 // pred_check
      _
    $region75: #{_discriminator_forward_impl.1} parent=1 // pred_check_branch
      %5767 = sbr.rel (0) target = $region77
    $region76: #{_discriminator_forward_impl.1} parent=1 // pred_region
      _
    $region77: #{_discriminator_forward_impl.1} parent=1 // pred_fallthru
      _
    %5768 = vsyncpa [#allocation4], 1
    %5769 = vsyncpa [#allocation6], 1
    %5770 = vsyncpa [#allocation9], 1
    %5771 = vsyncpa [#allocation12], 1

</llo_original>
